<compile_context>
chip_gen: v7x
topology: tpu7x:2x2x1
jax: 0.10.0
libtpu: 0.0.40
codegen_flags: <defaults>
</compile_context>

<pallas_src>
import math

import jax
import jax.numpy as jnp
from jax.experimental import pallas as pl
from jax.experimental.pallas import tpu as pltpu

SAMPLE_RATE = 16000
N_FFT = 512
N_MELS = 80
HOP_LENGTH = 160
N_FREQS = N_FFT // 2 + 1            # 257 (onesided)
FREQ_PAD = 384                      # 257 padded up to a multiple of 128
MEL_PAD = 128                       # 80 padded up to a multiple of 128
K_PAD = 4 * HOP_LENGTH              # 640 = 5*128: frame-scratch / DFT K dim
FRAME_TILE = 256                    # frames per grid step (fills v6e/v7x MXU)
TAIL_ROWS = 16                      # extra hop chunks needed past a tile (>=3)
EPS = 1e-6

# Each frame spans exactly 4 consecutive hop chunks: 512 = 3*160 + 32 <= 640.
assert 3 * HOP_LENGTH < N_FFT <= 4 * HOP_LENGTH
assert FRAME_TILE % TAIL_ROWS == 0 and TAIL_ROWS >= 3
assert K_PAD % 128 == 0 and FRAME_TILE % 16 == 0 and TAIL_ROWS % 16 == 0


# ---------------------------------------------------------------------------
# Deterministic "parameter" construction (no checkpoint loading).
# ---------------------------------------------------------------------------
def _windowed_dft(dtype=jnp.bfloat16) -> jnp.ndarray:
    """Fused windowed onesided-DFT matrix [win*cos | -win*sin].

    Shape (K_PAD, 2*FREQ_PAD) = (640, 768).  (x ⊙ w)·C == x·(diag(w)·C), so the
    Hamming window is folded directly into the matmul RHS.  Rows 512..639 are
    zero so the extra 128 samples of chunk (i+3) in each frame contribute 0.
    """
    n = jnp.arange(N_FFT, dtype=jnp.float32)
    # torch.hamming_window(N_FFT, periodic=True): 0.54 - 0.46*cos(2*pi*n/N)
    win = 0.54 - 0.46 * jnp.cos(2.0 * math.pi * n / N_FFT)
    k = jnp.arange(N_FREQS, dtype=jnp.float32)
    ang = 2.0 * math.pi * n[:, None] * k[None, :] / N_FFT
    cos_m = jnp.cos(ang) * win[:, None]
    sin_m = -jnp.sin(ang) * win[:, None]
    zpad = ((0, K_PAD - N_FFT), (0, FREQ_PAD - N_FREQS))
    w = jnp.concatenate([jnp.pad(cos_m, zpad), jnp.pad(sin_m, zpad)], axis=1)
    return w.astype(dtype)


def _mel_filterbank() -> jnp.ndarray:
    """torchaudio melscale_fbanks (htk, norm=None), zero-padded to (384, 128)."""
    all_freqs = jnp.linspace(0.0, SAMPLE_RATE / 2.0, N_FREQS)

    def hz_to_mel(f):
        return 2595.0 * jnp.log10(1.0 + f / 700.0)

    def mel_to_hz(m):
        return 700.0 * (10.0 ** (m / 2595.0) - 1.0)

    m_min = hz_to_mel(jnp.asarray(0.0))
    m_max = hz_to_mel(jnp.asarray(SAMPLE_RATE / 2.0))
    f_pts = mel_to_hz(jnp.linspace(m_min, m_max, N_MELS + 2))
    f_diff = f_pts[1:] - f_pts[:-1]
    slopes = f_pts[None, :] - all_freqs[:, None]
    down = -slopes[:, :-2] / f_diff[:-1]
    up = slopes[:, 2:] / f_diff[1:]
    fb = jnp.maximum(0.0, jnp.minimum(down, up)).astype(jnp.float32)   # (257, 80)
    return jnp.pad(fb, ((0, FREQ_PAD - N_FREQS), (0, MEL_PAD - N_MELS)))


# ---------------------------------------------------------------------------
# Pallas kernel: one (batch, frame-tile) step of the mel spectrogram.
# ---------------------------------------------------------------------------
def mel_kernel(chunk_ref, tail_ref, w_ref, fb_ref, out_ref, frame_ref):
    # chunk_ref: (1, FRAME_TILE, HOP)   bf16  hop chunks [t*F, t*F + F)
    # tail_ref : (1, TAIL_ROWS, HOP)    bf16  hop chunks [t*F + F, t*F + F + 16)
    # w_ref    : (K_PAD, 2*FREQ_PAD)    bf16  windowed [cos | -sin], rows>=512 zero
    # fb_ref   : (FREQ_PAD, MEL_PAD)    f32   mel filterbank
    # out_ref  : (1, N_MELS, FRAME_TILE) f32
    # frame_ref: (FRAME_TILE, K_PAD)    bf16  frame-build scratch
    F, H = FRAME_TILE, HOP_LENGTH

    # Build frame i = [chunk i | chunk i+1 | chunk i+2 | chunk i+3] directly in
    # the bf16 scratch with static-slice stores: no concat temporary, no f32
    # accumulator read-modify-write.  Every row/column of frame_ref is written.
    for j in range(4):
        c0 = j * H
        frame_ref[: F - j, c0 : c0 + H] = chunk_ref[0, j:F, :]
        if j:
            frame_ref[F - j : F, c0 : c0 + H] = tail_ref[0, :j, :]

    # Single K=640 MXU matmul; accumulation stays inside the MXU.
    s = jnp.dot(frame_ref[...], w_ref[...],
                preferred_element_type=jnp.float32)             # (F, 2*FREQ_PAD) f32

    re = s[:, :FREQ_PAD]                                        # lane-aligned split
    im = s[:, FREQ_PAD:]
    power = re * re + im * im                                   # (F, FREQ_PAD) f32
    mel = jnp.dot(power, fb_ref[...],
                  preferred_element_type=jnp.float32)           # (F, MEL_PAD) f32

    # Lane-dense output: (n_mels, frames) with frames on the 128-lane axis.
    out_ref[0] = mel.T[:N_MELS, :] + EPS


def mel_spectrogram(x: jnp.ndarray, compute_dtype=jnp.bfloat16) -> jnp.ndarray:
    """x: (B, T_samples) float32 -> (B, n_mels, n_frames) float32."""
    x = x.astype(jnp.float32)
    B, T = x.shape
    pad = N_FFT // 2
    if T <= pad:
        raise ValueError("reflect padding (center=True) requires T > n_fft // 2")

    n_frames = 1 + T // HOP_LENGTH
    n_tiles = pl.cdiv(n_frames, FRAME_TILE)
    n_rows = n_tiles * FRAME_TILE + TAIL_ROWS
    total_samples = n_rows * HOP_LENGTH

    # center=True reflect padding, then zero-pad to a whole number of hop rows.
    xp = jnp.pad(x, ((0, 0), (pad, pad)), mode="reflect")
    xp = jnp.pad(xp, ((0, 0), (0, total_samples - xp.shape[1])))
    # Non-overlapping hop chunks (free row-major reshape, no frames gather),
    # cast once to bf16: halves input DMA and in-kernel relayout traffic.
    chunks = xp.reshape(B, n_rows, HOP_LENGTH).astype(compute_dtype)

    w = _windowed_dft(compute_dtype)                            # (640, 768) bf16
    fb = _mel_filterbank()                                      # (384, 128) f32

    steps = B * n_tiles
    per_step_flops = (2 * FRAME_TILE * K_PAD * 2 * FREQ_PAD     # DFT matmul
                      + 2 * FRAME_TILE * FREQ_PAD * MEL_PAD     # mel matmul
                      + 3 * FRAME_TILE * FREQ_PAD)              # power spectrum
    cost = pl.CostEstimate(
        flops=steps * per_step_flops,
        transcendentals=0,
        bytes_accessed=(chunks.size * 2 + w.size * 2 + fb.size * 4
                        + B * N_MELS * n_tiles * FRAME_TILE * 4),
    )

    out = pl.pallas_call(
        mel_kernel,
        out_shape=jax.ShapeDtypeStruct((B, N_MELS, n_tiles * FRAME_TILE), jnp.float32),
        grid_spec=pltpu.PrefetchScalarGridSpec(
            num_scalar_prefetch=0,
            grid=(B, n_tiles),
            in_specs=[
                # Main hop-chunk tile for this frame tile.
                pl.BlockSpec((1, FRAME_TILE, HOP_LENGTH), lambda b, t: (b, t, 0)),
                # Overlap tail: the first TAIL_ROWS hop chunks of the next tile.
                pl.BlockSpec((1, TAIL_ROWS, HOP_LENGTH),
                             lambda b, t: (b, (t + 1) * (FRAME_TILE // TAIL_ROWS), 0)),
                # Fused windowed-DFT matrix and mel filterbank: constant block
                # index -> the pipeline fetches them once, no per-step re-DMA.
                pl.BlockSpec((K_PAD, 2 * FREQ_PAD), lambda b, t: (0, 0)),
                pl.BlockSpec((FREQ_PAD, MEL_PAD), lambda b, t: (0, 0)),
            ],
            out_specs=pl.BlockSpec((1, N_MELS, FRAME_TILE), lambda b, t: (b, 0, t)),
            scratch_shapes=[pltpu.VMEM((FRAME_TILE, K_PAD), compute_dtype)],
        ),
        compiler_params=pltpu.CompilerParams(
            dimension_semantics=("parallel", "parallel"),
            vmem_limit_bytes=32 * 1024 * 1024,
        ),
        cost_estimate=cost,
    )(chunks, chunks, w, fb)

    # Already in PyTorch layout (B, n_mels, n_frames); drop the padded frames.
    return out[:, :, :n_frames]


# ---------------------------------------------------------------------------
# Plain-JAX reference (same bf16 DFT coefficients) for a self-check.
# TODO(synk): true torchaudio (f32 STFT) parity would need an f32 DFT matmul.
# ---------------------------------------------------------------------------
def _reference(x: jnp.ndarray, compute_dtype=jnp.bfloat16) -> jnp.ndarray:
    x = x.astype(jnp.float32)
    B, T = x.shape
    pad = N_FFT // 2
    n_frames = 1 + T // HOP_LENGTH
    xp = jnp.pad(x, ((0, 0), (pad, pad)), mode="reflect")
    idx = jnp.arange(n_frames)[:, None] * HOP_LENGTH + jnp.arange(N_FFT)[None, :]
    frames = xp[:, idx]                                               # (B, F, 512)
    w = _windowed_dft(compute_dtype)[:N_FFT]                          # (512, 768)
    s = jnp.dot(frames.reshape(-1, N_FFT).astype(compute_dtype), w,
                preferred_element_type=jnp.float32)
    s = s.reshape(B, n_frames, 2 * FREQ_PAD)
    power = s[..., :FREQ_PAD] ** 2 + s[..., FREQ_PAD:] ** 2
    mel = jnp.dot(power.reshape(-1, FREQ_PAD), _mel_filterbank(),
                  precision=jax.lax.Precision.HIGHEST)
    mel = mel.reshape(B, n_frames, MEL_PAD)
    return jnp.swapaxes(mel, -1, -2)[:, :N_MELS, :] + EPS


if __name__ == "__main__":
    key = jax.random.PRNGKey(0)
    B, T = 2, 1600  # 0.1 s of 16 kHz audio -> n_frames = 1 + 1600 // 160 = 11
    x = jax.random.normal(key, (B, T), dtype=jnp.float32)

    y = jax.jit(mel_spectrogram)(x)
    jax.block_until_ready(y)

    n_frames = 1 + T // HOP_LENGTH
    assert y.shape == (B, N_MELS, n_frames), y.shape
    assert y.dtype == jnp.float32
    assert bool(jnp.all(jnp.isfinite(y)))

    # Framing / indexing self-check against a plain-JAX reference that uses the
    # same bf16 windowed-DFT coefficients.
    y_ref = _reference(x)
    assert bool(jnp.allclose(y, y_ref, rtol=2e-2, atol=1e-4)), \
        float(jnp.max(jnp.abs(y - y_ref)))

    print("KERNEL_OK")
</pallas_src>

<mosaic_0001>
module attributes {stable_mosaic.version = 11 : i64} {
  func.func @mel_kernel(%arg0: i32, %arg1: i32, %arg2: memref<1x256x160xbf16, #tpu.memory_space<vmem>>, %arg3: memref<1x16x160xbf16, #tpu.memory_space<vmem>>, %arg4: memref<640x768xbf16, #tpu.memory_space<vmem>>, %arg5: memref<384x128xf32, #tpu.memory_space<vmem>>, %arg6: memref<1x80x256xf32, #tpu.memory_space<vmem>>, %arg7: memref<256x640xbf16, #tpu.memory_space<vmem>>) attributes {dimension_semantics = [#tpu.dimension_semantics<parallel>, #tpu.dimension_semantics<parallel>], iteration_bounds = array<i64: 2, 1>, scalar_prefetch = 0 : i64, scratch_operands = 1 : i64, tpu.core_type = #tpu.core_type<tc>, window_params = [{transform_indices = @transform_0, window_bounds = array<i64: 1, 256, 160>}, {transform_indices = @transform_1, window_bounds = array<i64: 1, 16, 160>}, {pipeline_mode = #tpu.pipeline_mode<synchronous>, transform_indices = @transform_2, window_bounds = array<i64: 640, 768>}, {pipeline_mode = #tpu.pipeline_mode<synchronous>, transform_indices = @transform_3, window_bounds = array<i64: 384, 128>}, {transform_indices = @transform_4, window_bounds = array<i64: 1, 80, 256>}]} {
    %c0 = arith.constant 0 : index
    %c0_0 = arith.constant 0 : index
    %c0_1 = arith.constant 0 : index
    %0 = vector.load %arg2[%c0, %c0_0, %c0_1] : memref<1x256x160xbf16, #tpu.memory_space<vmem>>, vector<1x256x160xbf16>
    %1 = vector.shape_cast %0 : vector<1x256x160xbf16> to vector<256x160xbf16>
    %c0_2 = arith.constant 0 : index
    %c0_3 = arith.constant 0 : index
    %2 = vector.load %arg7[%c0_2, %c0_3] : memref<256x640xbf16, #tpu.memory_space<vmem>>, vector<256x160xbf16>
    tpu.vector_store %arg7[%c0_2, %c0_3], %1 {strides = array<i32>} : memref<256x640xbf16, #tpu.memory_space<vmem>>, vector<256x160xbf16>,
    %c0_4 = arith.constant 0 : index
    %c1 = arith.constant 1 : index
    %c0_5 = arith.constant 0 : index
    %3 = vector.load %arg2[%c0_4, %c1, %c0_5] : memref<1x256x160xbf16, #tpu.memory_space<vmem>>, vector<1x255x160xbf16>
    %4 = vector.shape_cast %3 : vector<1x255x160xbf16> to vector<255x160xbf16>
    %c0_6 = arith.constant 0 : index
    %c160 = arith.constant 160 : index
    %5 = vector.load %arg7[%c0_6, %c160] : memref<256x640xbf16, #tpu.memory_space<vmem>>, vector<255x160xbf16>
    tpu.vector_store %arg7[%c0_6, %c160], %4 {strides = array<i32>} : memref<256x640xbf16, #tpu.memory_space<vmem>>, vector<255x160xbf16>,
    %c0_7 = arith.constant 0 : index
    %c0_8 = arith.constant 0 : index
    %c0_9 = arith.constant 0 : index
    %6 = vector.load %arg3[%c0_7, %c0_8, %c0_9] : memref<1x16x160xbf16, #tpu.memory_space<vmem>>, vector<1x1x160xbf16>
    %7 = vector.shape_cast %6 : vector<1x1x160xbf16> to vector<1x160xbf16>
    %c255 = arith.constant 255 : index
    %c160_10 = arith.constant 160 : index
    %8 = vector.load %arg7[%c255, %c160_10] : memref<256x640xbf16, #tpu.memory_space<vmem>>, vector<1x160xbf16>
    tpu.vector_store %arg7[%c255, %c160_10], %7 {strides = array<i32>} : memref<256x640xbf16, #tpu.memory_space<vmem>>, vector<1x160xbf16>,
    %c0_11 = arith.constant 0 : index
    %c2 = arith.constant 2 : index
    %c0_12 = arith.constant 0 : index
    %9 = vector.load %arg2[%c0_11, %c2, %c0_12] : memref<1x256x160xbf16, #tpu.memory_space<vmem>>, vector<1x254x160xbf16>
    %10 = vector.shape_cast %9 : vector<1x254x160xbf16> to vector<254x160xbf16>
    %c0_13 = arith.constant 0 : index
    %c320 = arith.constant 320 : index
    %11 = vector.load %arg7[%c0_13, %c320] : memref<256x640xbf16, #tpu.memory_space<vmem>>, vector<254x160xbf16>
    tpu.vector_store %arg7[%c0_13, %c320], %10 {strides = array<i32>} : memref<256x640xbf16, #tpu.memory_space<vmem>>, vector<254x160xbf16>,
    %c0_14 = arith.constant 0 : index
    %c0_15 = arith.constant 0 : index
    %c0_16 = arith.constant 0 : index
    %12 = vector.load %arg3[%c0_14, %c0_15, %c0_16] : memref<1x16x160xbf16, #tpu.memory_space<vmem>>, vector<1x2x160xbf16>
    %13 = vector.shape_cast %12 : vector<1x2x160xbf16> to vector<2x160xbf16>
    %c254 = arith.constant 254 : index
    %c320_17 = arith.constant 320 : index
    %14 = vector.load %arg7[%c254, %c320_17] : memref<256x640xbf16, #tpu.memory_space<vmem>>, vector<2x160xbf16>
    tpu.vector_store %arg7[%c254, %c320_17], %13 {strides = array<i32>} : memref<256x640xbf16, #tpu.memory_space<vmem>>, vector<2x160xbf16>,
    %c0_18 = arith.constant 0 : index
    %c3 = arith.constant 3 : index
    %c0_19 = arith.constant 0 : index
    %15 = vector.load %arg2[%c0_18, %c3, %c0_19] : memref<1x256x160xbf16, #tpu.memory_space<vmem>>, vector<1x253x160xbf16>
    %16 = vector.shape_cast %15 : vector<1x253x160xbf16> to vector<253x160xbf16>
    %c0_20 = arith.constant 0 : index
    %c480 = arith.constant 480 : index
    %17 = vector.load %arg7[%c0_20, %c480] : memref<256x640xbf16, #tpu.memory_space<vmem>>, vector<253x160xbf16>
    tpu.vector_store %arg7[%c0_20, %c480], %16 {strides = array<i32>} : memref<256x640xbf16, #tpu.memory_space<vmem>>, vector<253x160xbf16>,
    %c0_21 = arith.constant 0 : index
    %c0_22 = arith.constant 0 : index
    %c0_23 = arith.constant 0 : index
    %18 = vector.load %arg3[%c0_21, %c0_22, %c0_23] : memref<1x16x160xbf16, #tpu.memory_space<vmem>>, vector<1x3x160xbf16>
    %19 = vector.shape_cast %18 : vector<1x3x160xbf16> to vector<3x160xbf16>
    %c253 = arith.constant 253 : index
    %c480_24 = arith.constant 480 : index
    %20 = vector.load %arg7[%c253, %c480_24] : memref<256x640xbf16, #tpu.memory_space<vmem>>, vector<3x160xbf16>
    tpu.vector_store %arg7[%c253, %c480_24], %19 {strides = array<i32>} : memref<256x640xbf16, #tpu.memory_space<vmem>>, vector<3x160xbf16>,
    %c0_25 = arith.constant 0 : index
    %c0_26 = arith.constant 0 : index
    %21 = vector.load %arg7[%c0_25, %c0_26] : memref<256x640xbf16, #tpu.memory_space<vmem>>, vector<256x640xbf16>
    %c0_27 = arith.constant 0 : index
    %c0_28 = arith.constant 0 : index
    %22 = vector.load %arg4[%c0_27, %c0_28] : memref<640x768xbf16, #tpu.memory_space<vmem>>, vector<640x768xbf16>
    %cst = arith.constant dense<0.000000e+00> : vector<256x768xf32>
    %23 = tpu.matmul %21, %22, %cst {dimension_numbers = #tpu.dot_dimension_numbers<[1], [0], [0], [1], [0, 0, 1, 1], [], []>} : vector<256x640xbf16>, vector<640x768xbf16>, vector<256x768xf32> -> vector<256x768xf32>
    %24 = vector.extract_strided_slice %23 {offsets = [0, 0], sizes = [256, 384], strides = [1, 1]} : vector<256x768xf32> to vector<256x384xf32>
    %25 = vector.extract_strided_slice %23 {offsets = [0, 384], sizes = [256, 384], strides = [1, 1]} : vector<256x768xf32> to vector<256x384xf32>
    %26 = arith.mulf %24, %24 : vector<256x384xf32>
    %27 = arith.mulf %25, %25 : vector<256x384xf32>
    %28 = arith.addf %26, %27 : vector<256x384xf32>
    %c0_29 = arith.constant 0 : index
    %c0_30 = arith.constant 0 : index
    %29 = vector.load %arg5[%c0_29, %c0_30] : memref<384x128xf32, #tpu.memory_space<vmem>>, vector<384x128xf32>
    %cst_31 = arith.constant dense<0.000000e+00> : vector<256x128xf32>
    %30 = tpu.matmul %28, %29, %cst_31 {dimension_numbers = #tpu.dot_dimension_numbers<[1], [0], [0], [1], [0, 0, 1, 1], [], []>} : vector<256x384xf32>, vector<384x128xf32>, vector<256x128xf32> -> vector<256x128xf32>
    %31 = tpu.transpose %30, [1, 0] : vector<256x128xf32> -> vector<128x256xf32>
    %32 = vector.extract_strided_slice %31 {offsets = [0, 0], sizes = [80, 256], strides = [1, 1]} : vector<128x256xf32> to vector<80x256xf32>
    %cst_32 = arith.constant 9.99999997E-7 : f32
    %33 = vector.broadcast %cst_32 : f32 to vector<80x256xf32>
    %34 = arith.addf %32, %33 : vector<80x256xf32>
    %c0_33 = arith.constant 0 : index
    %c0_34 = arith.constant 0 : index
    %c0_35 = arith.constant 0 : index
    %35 = vector.load %arg6[%c0_33, %c0_34, %c0_35] : memref<1x80x256xf32, #tpu.memory_space<vmem>>, vector<1x80x256xf32>
    %36 = vector.shape_cast %35 : vector<1x80x256xf32> to vector<80x256xf32>
    %37 = vector.shape_cast %34 : vector<80x256xf32> to vector<1x80x256xf32>
    tpu.vector_store %arg6[%c0_33, %c0_34, %c0_35], %37 {strides = array<i32>} : memref<1x80x256xf32, #tpu.memory_space<vmem>>, vector<1x80x256xf32>,
    return
  }
  func.func @transform_0(%arg0: i32, %arg1: i32) -> (i32, i32, i32) {
    %c0_i32 = arith.constant 0 : i32
    %c0_i32_0 = arith.constant 0 : i32
    return %arg0, %arg1, %c0_i32 : i32, i32, i32
  }
  func.func @transform_1(%arg0: i32, %arg1: i32) -> (i32, i32, i32) {
    %c1_i32 = arith.constant 1 : i32
    %0 = arith.addi %arg1, %c1_i32 : i32
    %c16_i32 = arith.constant 16 : i32
    %1 = arith.muli %0, %c16_i32 : i32
    %c0_i32 = arith.constant 0 : i32
    %c0_i32_0 = arith.constant 0 : i32
    return %arg0, %1, %c0_i32 : i32, i32, i32
  }
  func.func @transform_2(%arg0: i32, %arg1: i32) -> (i32, i32) {
    %c0_i32 = arith.constant 0 : i32
    %c0_i32_0 = arith.constant 0 : i32
    %c0_i32_1 = arith.constant 0 : i32
    return %c0_i32, %c0_i32_0 : i32, i32
  }
  func.func @transform_3(%arg0: i32, %arg1: i32) -> (i32, i32) {
    %c0_i32 = arith.constant 0 : i32
    %c0_i32_0 = arith.constant 0 : i32
    %c0_i32_1 = arith.constant 0 : i32
    return %c0_i32, %c0_i32_0 : i32, i32
  }
  func.func @transform_4(%arg0: i32, %arg1: i32) -> (i32, i32, i32) {
    %c0_i32 = arith.constant 0 : i32
    %c0_i32_0 = arith.constant 0 : i32
    return %arg0, %c0_i32, %arg1 : i32, i32, i32
  }
}

</mosaic_0001>

<llo_original>
// kernel: mel_spectrogram.1
$region0: #{mel_spectrogram.1}
  #allocation0 [shape = 'u32[]', space=smem, size = 0x4, offset = 0x4, fixed_abs, tag = 'smem constant byte address 0x4 - core index']
  #allocation1 [shape = 'u32[144,128]{1,0:T(1,128)}', space=vmem, size = 0x12000, scoped, tag = 'internal scratch']
  #allocation2 [shape = 'bf16[256,640]{1,0:T(16,128)(2,1)}', space=vmem, size = 0x50000, scoped, tag = 'scratch operand']
  %s0 = inlined_call_operand.vmem [shape: bf16[2,272,160], index: 0, kind: input, shape index: {}, may-alias: {0,1}]
  %s1 = inlined_call_operand.vmem [shape: bf16[2,272,160], index: 1, kind: input, shape index: {}, may-alias: {0,1}]
  %s2 = inlined_call_operand.vmem [shape: bf16[640,768], index: 2, kind: input, shape index: {}]
  %s3 = inlined_call_operand.vmem [shape: f32[384,128], index: 3, kind: input, shape index: {}]
  %s4 = inlined_call_operand.vmem [shape: f32[2,80,256], index: 4, kind: output, shape index: {}]
  %s5 = sld [smem:[#allocation0]]
  $region49: #{mel_spectrogram.1} parent=0
    _
  %s7 = ssub.s32 1, %s5
  %s8 = scalar_select 0, %s7, %s5
  loop: start=0, step=1, limit=4
  $region2: #{mel_spectrogram.1} parent=0 // loop_pre_header
    _
  $region3: #{mel_spectrogram.1} parent=0 // loop_header
    %s10 = sphi 0, %s14
    %p11 = scmp.ge.s32.totalorder %s10, 4
    %s17 = sphi 0, %s29
    %s18 = sphi 0, %s25
    %s19 = sphi 0, %s17
    %s20 = sphi 0, %s18
    %s21 = sphi 0, %s19
    %s22 = sphi 0, %s20
    %s34 = sphi 0, %s36
    %s37 = sphi 0, %s34
    %s38 = sphi 0, %s37
    %s54 = sphi 0, %s38
    %s66 = sphi 0, %s68
    %s69 = sphi 0, %s66
    %s70 = sphi 0, %s69
    %s86 = sphi 0, %s70
    %s90 = sphi 0, %s90
    %s92 = sphi 0, %s90
    %s93 = sphi 0, %s92
    %s107 = sphi 0, %s93
    %s111 = sphi 0, %s111
    %s113 = sphi 0, %s111
    %s114 = sphi 0, %s113
    %s128 = sphi 0, %s114
    %s136 = sphi 0, %s138
    %s139 = sphi 0, %s136
    %s140 = sphi 0, %s139
    %s156 = sphi 0, %s140
  $region4: #{mel_spectrogram.1} parent=0 // loop_header_branch
    %13 = sbr.rel (%p11) target = $region8
  $region5: #{mel_spectrogram.1} parent=0 // loop_body
    %s15 = ssub.s32 %s10, 1
    %s16 = ssub.s32 %s10, 2
    %s23 = sadd.s32 1, %s18
    %p24 = scmp.ge.s32.totalorder %s23, 1
    %s25 = scalar_select %p24, 0, %s23
    %s26 = sadd.s32 1, %s17
    %s27 = scalar_select %p24, %s26, %s17
    %p28 = scmp.ge.s32.totalorder %s27, 2
    %s29 = scalar_select %p28, 0, %s27
    %s30 = ssub.s32 %s17, %s29
    %s31 = ssub.s32 %s18, %s25
    %s32 = sor.u32 %s30, %s31
    %p33 = scmp.eq.s32.totalorder %s32, 0
    %s35 = sadd.s32 %s34, 1
    %s36 = scalar_select %p33, %s34, %s35
    %p39 = pneg %p33
    %p40 = scmp.eq.s32.totalorder %s10, 1
    %p41 = por %p39, %p40
    %p42 = scmp.ne.s32.totalorder %s34, %s37
    %p43 = scmp.eq.s32.totalorder %s10, 0
    %p44 = por %p42, %p43
    %p45 = scmp.ne.s32.totalorder %s34, %s37
    %p46 = scmp.eq.s32.totalorder %s15, 1
    %p47 = por %p45, %p46
    %p48 = scmp.ne.s32.totalorder %s37, %s38
    %p49 = scmp.eq.s32.totalorder %s15, 0
    %p50 = por %p48, %p49
    %p51 = scmp.ne.s32.totalorder %s37, %s38
    %p52 = scmp.eq.s32.totalorder %s16, 1
    %p53 = por %p51, %p52
    %p55 = scmp.ne.s32.totalorder %s38, %s54
    %p56 = scmp.eq.s32.totalorder %s16, 0
    %p57 = por %p55, %p56
    %s58 = sadd.s32 %s18, 1
    %s59 = smul.u32 %s58, 16
    %s60 = sadd.s32 %s25, 1
    %s61 = smul.u32 %s60, 16
    %s62 = ssub.s32 %s17, %s29
    %s63 = ssub.s32 %s59, %s61
    %s64 = sor.u32 %s62, %s63
    %p65 = scmp.eq.s32.totalorder %s64, 0
    %s67 = sadd.s32 %s66, 1
    %s68 = scalar_select %p65, %s66, %s67
    %p71 = pneg %p65
    %p72 = scmp.eq.s32.totalorder %s10, 1
    %p73 = por %p71, %p72
    %p74 = scmp.ne.s32.totalorder %s66, %s69
    %p75 = scmp.eq.s32.totalorder %s10, 0
    %p76 = por %p74, %p75
    %p77 = scmp.ne.s32.totalorder %s66, %s69
    %p78 = scmp.eq.s32.totalorder %s15, 1
    %p79 = por %p77, %p78
    %p80 = scmp.ne.s32.totalorder %s69, %s70
    %p81 = scmp.eq.s32.totalorder %s15, 0
    %p82 = por %p80, %p81
    %p83 = scmp.ne.s32.totalorder %s69, %s70
    %p84 = scmp.eq.s32.totalorder %s16, 1
    %p85 = por %p83, %p84
    %p87 = scmp.ne.s32.totalorder %s70, %s86
    %p88 = scmp.eq.s32.totalorder %s16, 0
    %p89 = por %p87, %p88
    %s91 = sadd.s32 %s90, 1
    %p94 = scmp.eq.s32.totalorder %s10, 1
    %p95 = scmp.ne.s32.totalorder %s90, %s92
    %p96 = scmp.eq.s32.totalorder %s10, 0
    %p97 = por %p95, %p96
    %p98 = scmp.ne.s32.totalorder %s90, %s92
    %p99 = scmp.eq.s32.totalorder %s15, 1
    %p100 = por %p98, %p99
    %p101 = scmp.ne.s32.totalorder %s92, %s93
    %p102 = scmp.eq.s32.totalorder %s15, 0
    %p103 = por %p101, %p102
    %p104 = scmp.ne.s32.totalorder %s92, %s93
    %p105 = scmp.eq.s32.totalorder %s16, 1
    %p106 = por %p104, %p105
    %p108 = scmp.ne.s32.totalorder %s93, %s107
    %p109 = scmp.eq.s32.totalorder %s16, 0
    %p110 = por %p108, %p109
    %s112 = sadd.s32 %s111, 1
    %p115 = scmp.eq.s32.totalorder %s10, 1
    %p116 = scmp.ne.s32.totalorder %s111, %s113
    %p117 = scmp.eq.s32.totalorder %s10, 0
    %p118 = por %p116, %p117
    %p119 = scmp.ne.s32.totalorder %s111, %s113
    %p120 = scmp.eq.s32.totalorder %s15, 1
    %p121 = por %p119, %p120
    %p122 = scmp.ne.s32.totalorder %s113, %s114
    %p123 = scmp.eq.s32.totalorder %s15, 0
    %p124 = por %p122, %p123
    %p125 = scmp.ne.s32.totalorder %s113, %s114
    %p126 = scmp.eq.s32.totalorder %s16, 1
    %p127 = por %p125, %p126
    %p129 = scmp.ne.s32.totalorder %s114, %s128
    %p130 = scmp.eq.s32.totalorder %s16, 0
    %p131 = por %p129, %p130
    %s132 = ssub.s32 %s17, %s29
    %s133 = ssub.s32 %s18, %s25
    %s134 = sor.u32 %s132, %s133
    %p135 = scmp.eq.s32.totalorder %s134, 0
    %s137 = sadd.s32 %s136, 1
    %s138 = scalar_select %p135, %s136, %s137
    %p141 = pneg %p135
    %p142 = scmp.eq.s32.totalorder %s10, 1
    %p143 = por %p141, %p142
    %p144 = scmp.ne.s32.totalorder %s136, %s139
    %p145 = scmp.eq.s32.totalorder %s10, 0
    %p146 = por %p144, %p145
    %p147 = scmp.ne.s32.totalorder %s136, %s139
    %p148 = scmp.eq.s32.totalorder %s15, 1
    %p149 = por %p147, %p148
    %p150 = scmp.ne.s32.totalorder %s139, %s140
    %p151 = scmp.eq.s32.totalorder %s15, 0
    %p152 = por %p150, %p151
    %p153 = scmp.ne.s32.totalorder %s139, %s140
    %p154 = scmp.eq.s32.totalorder %s16, 1
    %p155 = por %p153, %p154
    %p157 = scmp.ne.s32.totalorder %s140, %s156
    %p158 = scmp.eq.s32.totalorder %s16, 0
    %p159 = por %p157, %p158
    %p160 = scmp.le.s32.totalorder 1, %s10
    %p161 = scmp.lt.s32.totalorder %s10, 3
    %p162 = pnand %p160, %p161
    %p163 = pneg %p162
    // Predicated region
    $region9: #{mel_spectrogram.1} parent=5 // pred_check
      _
    $region10: #{mel_spectrogram.1} parent=5 // pred_check_branch
      %165 = sbr.rel (%p162) target = $region12
    $region11: #{mel_spectrogram.1} parent=5 // pred_region
      %s166 = ssub.s32 %s10, 1
      // Predicated region
      $region13: #{mel_spectrogram.1} parent=11 // pred_check
        %p167 = pneg %p103
      $region14: #{mel_spectrogram.1} parent=11 // pred_check_branch
        %169 = sbr.rel (%p167) target = $region16
      $region15: #{mel_spectrogram.1} parent=11 // pred_region
        _
      $region16: #{mel_spectrogram.1} parent=11 // pred_fallthru
        _
      // Predicated region
      $region17: #{mel_spectrogram.1} parent=11 // pred_check
        %p170 = pneg %p124
      $region18: #{mel_spectrogram.1} parent=11 // pred_check_branch
        %172 = sbr.rel (%p170) target = $region20
      $region19: #{mel_spectrogram.1} parent=11 // pred_region
        _
      $region20: #{mel_spectrogram.1} parent=11 // pred_fallthru
        _
    $region12: #{mel_spectrogram.1} parent=5 // pred_fallthru
      _
    %p173 = scmp.lt.s32.totalorder %s10, 2
    // Predicated region
    $region21: #{mel_spectrogram.1} parent=5 // pred_check
      %p174 = pneg %p173
    $region22: #{mel_spectrogram.1} parent=5 // pred_check_branch
      %176 = sbr.rel (%p174) target = $region24
    $region23: #{mel_spectrogram.1} parent=5 // pred_region
      // Predicated region
      $region25: #{mel_spectrogram.1} parent=23 // pred_check
        %p177 = pneg %p44
      $region26: #{mel_spectrogram.1} parent=23 // pred_check_branch
        %179 = sbr.rel (%p177) target = $region28
      $region27: #{mel_spectrogram.1} parent=23 // pred_region
        %s180 = smul.u32 32, %s18
        %s181 = ssub.s32 34, %s180
        %p182 = scmp.lt.s32.totalorder %s181, 32
        %s183 = scalar_select %p182, %s181, 32
        %s184 = smul.u32 64, %s183
        %s185 = smul.u32 %s184, 2
        %p186 = scmp.lt.s32.totalorder %s17, 1
        %s187 = scalar_select %p186, %s17, 1
        %p188 = scmp.lt.s32.totalorder %s180, 33
        %s189 = scalar_select %p188, %s180, 33
        %s190 = smul.addr %s189, 2
        %s191 = smul.addr %s187, 68
        %s192 = sadd.s32 %s190, %s191
        %s193 = smul.addr %s192, 4
        %s194 = scalar_lea.vmem %s0, %s193
        %s195 = smul.u32 32, %s18
        %s196 = ssub.s32 34, %s195
        %p197 = scmp.lt.s32.totalorder %s196, 32
        %s198 = scalar_select %p197, %s196, 32
        %s199 = smul.u32 64, %s198
        %s200 = smul.u32 %s199, 2
      $region28: #{mel_spectrogram.1} parent=23 // pred_fallthru
        _
      // Predicated region
      $region29: #{mel_spectrogram.1} parent=23 // pred_check
        %p201 = pneg %p76
      $region30: #{mel_spectrogram.1} parent=23 // pred_check_branch
        %203 = sbr.rel (%p201) target = $region32
      $region31: #{mel_spectrogram.1} parent=23 // pred_region
        %s204 = sadd.s32 %s18, 1
        %s205 = smul.u32 %s204, 16
        %s206 = smul.u32 2, %s205
        %p207 = scmp.lt.s32.totalorder %s17, 1
        %s208 = scalar_select %p207, %s17, 1
        %p209 = scmp.lt.s32.totalorder %s206, 33
        %s210 = scalar_select %p209, %s206, 33
        %s211 = smul.addr %s210, 2
        %s212 = smul.addr %s208, 68
        %s213 = sadd.s32 %s211, %s212
        %s214 = smul.addr %s213, 4
        %s215 = scalar_lea.vmem %s1, %s214
        %s216 = sadd.s32 %s18, 1
        %s217 = smul.u32 %s216, 16
        %s218 = smul.u32 2, %s217
      $region32: #{mel_spectrogram.1} parent=23 // pred_fallthru
        _
    $region24: #{mel_spectrogram.1} parent=5 // pred_fallthru
      _
    %p219 = scmp.le.s32.totalorder 1, %s10
    %p220 = scmp.lt.s32.totalorder %s10, 3
    %p221 = pnand %p219, %p220
    %p222 = pneg %p221
    // Predicated region
    $region33: #{mel_spectrogram.1} parent=5 // pred_check
      _
    $region34: #{mel_spectrogram.1} parent=5 // pred_check_branch
      %224 = sbr.rel (%p221) target = $region36
    $region35: #{mel_spectrogram.1} parent=5 // pred_region
      %s225 = ssub.s32 %s10, 1
      %s226 = smul.u32 32, %s20
      %s227 = ssub.s32 34, %s226
      %p228 = scmp.lt.s32.totalorder %s227, 32
      %s229 = scalar_select %p228, %s227, 32
      %s230 = smul.u32 64, %s229
      %s231 = smul.u32 %s230, 2
      %p232 = scmp.lt.s32.totalorder %s19, 1
      %s233 = scalar_select %p232, %s19, 1
      %p234 = scmp.lt.s32.totalorder %s226, 33
      %s235 = scalar_select %p234, %s226, 33
      %s236 = smul.addr %s235, 2
      %s237 = smul.addr %s233, 68
      %s238 = sadd.s32 %s236, %s237
      %s239 = smul.addr %s238, 4
      %s240 = scalar_lea.vmem %s0, %s239
      %p241 = pneg %p50
      %p242 = pneg %p47
      %s243 = sadd.s32 %s20, 1
      %s244 = smul.u32 %s243, 16
      %s245 = smul.u32 2, %s244
      %p246 = scmp.lt.s32.totalorder %s19, 1
      %s247 = scalar_select %p246, %s19, 1
      %p248 = scmp.lt.s32.totalorder %s245, 33
      %s249 = scalar_select %p248, %s245, 33
      %s250 = smul.addr %s249, 2
      %s251 = smul.addr %s247, 68
      %s252 = sadd.s32 %s250, %s251
      %s253 = smul.addr %s252, 4
      %s254 = scalar_lea.vmem %s1, %s253
      %p255 = pneg %p82
      %p256 = pneg %p79
      %p257 = pneg %p103
      %p258 = pneg %p100
      %p259 = pneg %p124
      %p260 = pneg %p121
      %p261 = pneg %p152
      %p262 = pneg %p149
      %s263 = smul.u32 2, %s20
      %p264 = scmp.lt.s32.totalorder %s19, 1
      %s265 = scalar_select %p264, %s19, 1
      %p266 = scmp.lt.s32.totalorder %s263, 1
      %s267 = scalar_select %p266, %s263, 1
      %s268 = smul.addr %s265, 20
      %s269 = sadd.s32 %s267, %s268
      %s270 = smul.addr %s269, 8
      %s271 = scalar_lea.vmem %s4, %s270
      %s272 = smul.u32 32, %s20
      %s273 = ssub.s32 34, %s272
      %p274 = scmp.lt.s32.totalorder %s273, 32
      %s275 = scalar_select %p274, %s273, 32
      %s276 = smul.u32 64, %s275
      %s277 = smul.u32 %s276, 2
      %p278 = scmp.lt.s32.totalorder %s19, 1
      %s279 = scalar_select %p278, %s19, 1
      %p280 = scmp.lt.s32.totalorder %s272, 33
      %s281 = scalar_select %p280, %s272, 33
      %s282 = smul.addr %s281, 2
      %s283 = smul.addr %s279, 68
      %s284 = sadd.s32 %s282, %s283
      %s285 = smul.addr %s284, 4
      %s286 = scalar_lea.vmem %s0, %s285
      %s287 = smul.u32 32, %s20
      %s288 = ssub.s32 34, %s287
      %p289 = scmp.lt.s32.totalorder %s288, 32
      %s290 = scalar_select %p289, %s288, 32
      %s291 = smul.u32 64, %s290
      %s292 = smul.u32 %s291, 2
      %s293 = sadd.s32 %s20, 1
      %s294 = smul.u32 %s293, 16
      %s295 = smul.u32 2, %s294
      %p296 = scmp.lt.s32.totalorder %s19, 1
      %s297 = scalar_select %p296, %s19, 1
      %p298 = scmp.lt.s32.totalorder %s295, 33
      %s299 = scalar_select %p298, %s295, 33
      %s300 = smul.addr %s299, 2
      %s301 = smul.addr %s297, 68
      %s302 = sadd.s32 %s300, %s301
      %s303 = smul.addr %s302, 4
      %s304 = scalar_lea.vmem %s1, %s303
      %s305 = sadd.s32 %s20, 1
      %s306 = smul.u32 %s305, 16
      %s307 = smul.u32 2, %s306
      %s308 = smul.u32 2, %s20
      %p309 = scmp.lt.s32.totalorder %s19, 1
      %s310 = scalar_select %p309, %s19, 1
      %p311 = scmp.lt.s32.totalorder %s308, 1
      %s312 = scalar_select %p311, %s308, 1
      %s313 = smul.addr %s310, 20
      %s314 = sadd.s32 %s312, %s313
      %s315 = smul.addr %s314, 8
      %s316 = scalar_lea.vmem %s4, %s315
      %s317 = smul.u32 2, %s20
      %v319 = vld [vmem:[%s286] sm:$0xff]
      %v320 = vld [vmem:[%s286 + $0x8] sm:$0xff]
      %v321 = vld [vmem:[%s286 + $0x10] sm:$0xff]
      %v322 = vld [vmem:[%s286 + $0x18] sm:$0xff]
      %v323 = vld [vmem:[%s286 + $0x20] sm:$0xff]
      %v324 = vld [vmem:[%s286 + $0x28] sm:$0xff]
      %v325 = vld [vmem:[%s286 + $0x30] sm:$0xff]
      %v326 = vld [vmem:[%s286 + $0x38] sm:$0xff]
      %v327 = vld [vmem:[%s286 + $0x40] sm:$0xff]
      %v328 = vld [vmem:[%s286 + $0x48] sm:$0xff]
      %v329 = vld [vmem:[%s286 + $0x50] sm:$0xff]
      %v330 = vld [vmem:[%s286 + $0x58] sm:$0xff]
      %v331 = vld [vmem:[%s286 + $0x60] sm:$0xff]
      %v332 = vld [vmem:[%s286 + $0x68] sm:$0xff]
      %v333 = vld [vmem:[%s286 + $0x70] sm:$0xff]
      %v334 = vld [vmem:[%s286 + $0x78] sm:$0xff]
      %v335 = vld [vmem:[%s286 + $0x80] sm:$0xff]
      %v336 = vld [vmem:[%s286 + $0x88] sm:$0xff]
      %v337 = vld [vmem:[%s286 + $0x90] sm:$0xff]
      %v338 = vld [vmem:[%s286 + $0x98] sm:$0xff]
      %v339 = vld [vmem:[%s286 + $0xa0] sm:$0xff]
      %v340 = vld [vmem:[%s286 + $0xa8] sm:$0xff]
      %v341 = vld [vmem:[%s286 + $0xb0] sm:$0xff]
      %v342 = vld [vmem:[%s286 + $0xb8] sm:$0xff]
      %v343 = vld [vmem:[%s286 + $0xc0] sm:$0xff]
      %v344 = vld [vmem:[%s286 + $0xc8] sm:$0xff]
      %v345 = vld [vmem:[%s286 + $0xd0] sm:$0xff]
      %v346 = vld [vmem:[%s286 + $0xd8] sm:$0xff]
      %v347 = vld [vmem:[%s286 + $0xe0] sm:$0xff]
      %v348 = vld [vmem:[%s286 + $0xe8] sm:$0xff]
      %v349 = vld [vmem:[%s286 + $0xf0] sm:$0xff]
      %v350 = vld [vmem:[%s286 + $0xf8] sm:$0xff]
      %v383 = vunpack.c.l.b16 %v319
      %v384 = vunpack.c.h.b16 %v319
      %v385 = vunpack.c.l.b16 %v320
      %v386 = vunpack.c.h.b16 %v320
      %v387 = vunpack.c.l.b16 %v321
      %v388 = vunpack.c.h.b16 %v321
      %v389 = vunpack.c.l.b16 %v322
      %v390 = vunpack.c.h.b16 %v322
      %v391 = vunpack.c.l.b16 %v323
      %v392 = vunpack.c.h.b16 %v323
      %v393 = vunpack.c.l.b16 %v324
      %v394 = vunpack.c.h.b16 %v324
      %v395 = vunpack.c.l.b16 %v325
      %v396 = vunpack.c.h.b16 %v325
      %v397 = vunpack.c.l.b16 %v326
      %v398 = vunpack.c.h.b16 %v326
      %v399 = vunpack.c.l.b16 %v327
      %v400 = vunpack.c.h.b16 %v327
      %v401 = vunpack.c.l.b16 %v328
      %v402 = vunpack.c.h.b16 %v328
      %v403 = vunpack.c.l.b16 %v329
      %v404 = vunpack.c.h.b16 %v329
      %v405 = vunpack.c.l.b16 %v330
      %v406 = vunpack.c.h.b16 %v330
      %v407 = vunpack.c.l.b16 %v331
      %v408 = vunpack.c.h.b16 %v331
      %v409 = vunpack.c.l.b16 %v332
      %v410 = vunpack.c.h.b16 %v332
      %v411 = vunpack.c.l.b16 %v333
      %v412 = vunpack.c.h.b16 %v333
      %v413 = vunpack.c.l.b16 %v334
      %v414 = vunpack.c.h.b16 %v334
      %v415 = vunpack.c.l.b16 %v335
      %v416 = vunpack.c.h.b16 %v335
      %v417 = vunpack.c.l.b16 %v336
      %v418 = vunpack.c.h.b16 %v336
      %v419 = vunpack.c.l.b16 %v337
      %v420 = vunpack.c.h.b16 %v337
      %v421 = vunpack.c.l.b16 %v338
      %v422 = vunpack.c.h.b16 %v338
      %v423 = vunpack.c.l.b16 %v339
      %v424 = vunpack.c.h.b16 %v339
      %v425 = vunpack.c.l.b16 %v340
      %v426 = vunpack.c.h.b16 %v340
      %v427 = vunpack.c.l.b16 %v341
      %v428 = vunpack.c.h.b16 %v341
      %v429 = vunpack.c.l.b16 %v342
      %v430 = vunpack.c.h.b16 %v342
      %v431 = vunpack.c.l.b16 %v343
      %v432 = vunpack.c.h.b16 %v343
      %v433 = vunpack.c.l.b16 %v344
      %v434 = vunpack.c.h.b16 %v344
      %v435 = vunpack.c.l.b16 %v345
      %v436 = vunpack.c.h.b16 %v345
      %v437 = vunpack.c.l.b16 %v346
      %v438 = vunpack.c.h.b16 %v346
      %v439 = vunpack.c.l.b16 %v347
      %v440 = vunpack.c.h.b16 %v347
      %v441 = vunpack.c.l.b16 %v348
      %v442 = vunpack.c.h.b16 %v348
      %v443 = vunpack.c.l.b16 %v349
      %v444 = vunpack.c.h.b16 %v349
      %v445 = vunpack.c.l.b16 %v350
      %v446 = vunpack.c.h.b16 %v350
      %v447 = vpack.c.b16 %v385, %v383
      %v448 = vpack.c.b16 %v386, %v384
      %v449 = vpack.c.b16 %v389, %v387
      %v450 = vpack.c.b16 %v390, %v388
      %v451 = vpack.c.b16 %v393, %v391
      %v452 = vpack.c.b16 %v394, %v392
      %v453 = vpack.c.b16 %v397, %v395
      %v454 = vpack.c.b16 %v398, %v396
      %v455 = vpack.c.b16 %v401, %v399
      %v456 = vpack.c.b16 %v402, %v400
      %v457 = vpack.c.b16 %v405, %v403
      %v458 = vpack.c.b16 %v406, %v404
      %v459 = vpack.c.b16 %v409, %v407
      %v460 = vpack.c.b16 %v410, %v408
      %v461 = vpack.c.b16 %v413, %v411
      %v462 = vpack.c.b16 %v414, %v412
      %v463 = vpack.c.b16 %v417, %v415
      %v464 = vpack.c.b16 %v418, %v416
      %v465 = vpack.c.b16 %v421, %v419
      %v466 = vpack.c.b16 %v422, %v420
      %v467 = vpack.c.b16 %v425, %v423
      %v468 = vpack.c.b16 %v426, %v424
      %v469 = vpack.c.b16 %v429, %v427
      %v470 = vpack.c.b16 %v430, %v428
      %v471 = vpack.c.b16 %v433, %v431
      %v472 = vpack.c.b16 %v434, %v432
      %v473 = vpack.c.b16 %v437, %v435
      %v474 = vpack.c.b16 %v438, %v436
      %v475 = vpack.c.b16 %v441, %v439
      %v476 = vpack.c.b16 %v442, %v440
      %v477 = vpack.c.b16 %v445, %v443
      %v478 = vpack.c.b16 %v446, %v444
      %511 = vst [vmem:[#allocation2] sm:$0xff] %v447
      %vm512 = vcmask 261120
      %513 = vst.msk [vmem:[#allocation2 + $0x8] sm:$0xff] %vm512, %v448
      %514 = vst [vmem:[#allocation2 + $0x28] sm:$0xff] %v449
      %515 = vst.msk [vmem:[#allocation2 + $0x30] sm:$0xff] %vm512, %v450
      %516 = vst [vmem:[#allocation2 + $0x50] sm:$0xff] %v451
      %517 = vst.msk [vmem:[#allocation2 + $0x58] sm:$0xff] %vm512, %v452
      %518 = vst [vmem:[#allocation2 + $0x78] sm:$0xff] %v453
      %519 = vst.msk [vmem:[#allocation2 + $0x80] sm:$0xff] %vm512, %v454
      %520 = vst [vmem:[#allocation2 + $0xa0] sm:$0xff] %v455
      %521 = vst.msk [vmem:[#allocation2 + $0xa8] sm:$0xff] %vm512, %v456
      %522 = vst [vmem:[#allocation2 + $0xc8] sm:$0xff] %v457
      %523 = vst.msk [vmem:[#allocation2 + $0xd0] sm:$0xff] %vm512, %v458
      %524 = vst [vmem:[#allocation2 + $0xf0] sm:$0xff] %v459
      %525 = vst.msk [vmem:[#allocation2 + $0xf8] sm:$0xff] %vm512, %v460
      %526 = vst [vmem:[#allocation2 + $0x118] sm:$0xff] %v461
      %527 = vst.msk [vmem:[#allocation2 + $0x120] sm:$0xff] %vm512, %v462
      %528 = vst [vmem:[#allocation2 + $0x140] sm:$0xff] %v463
      %529 = vst.msk [vmem:[#allocation2 + $0x148] sm:$0xff] %vm512, %v464
      %530 = vst [vmem:[#allocation2 + $0x168] sm:$0xff] %v465
      %531 = vst.msk [vmem:[#allocation2 + $0x170] sm:$0xff] %vm512, %v466
      %532 = vst [vmem:[#allocation2 + $0x190] sm:$0xff] %v467
      %533 = vst.msk [vmem:[#allocation2 + $0x198] sm:$0xff] %vm512, %v468
      %534 = vst [vmem:[#allocation2 + $0x1b8] sm:$0xff] %v469
      %535 = vst.msk [vmem:[#allocation2 + $0x1c0] sm:$0xff] %vm512, %v470
      %536 = vst [vmem:[#allocation2 + $0x1e0] sm:$0xff] %v471
      %537 = vst.msk [vmem:[#allocation2 + $0x1e8] sm:$0xff] %vm512, %v472
      %538 = vst [vmem:[#allocation2 + $0x208] sm:$0xff] %v473
      %539 = vst.msk [vmem:[#allocation2 + $0x210] sm:$0xff] %vm512, %v474
      %540 = vst [vmem:[#allocation2 + $0x230] sm:$0xff] %v475
      %541 = vst.msk [vmem:[#allocation2 + $0x238] sm:$0xff] %vm512, %v476
      %542 = vst [vmem:[#allocation2 + $0x258] sm:$0xff] %v477
      %543 = vst.msk [vmem:[#allocation2 + $0x260] sm:$0xff] %vm512, %v478
      %v544 = vld [vmem:[%s286] sm:$0xff]
      %v545 = vld [vmem:[%s286 + $0x8] sm:$0xff]
      %v546 = vld [vmem:[%s286 + $0x10] sm:$0xff]
      %v547 = vld [vmem:[%s286 + $0x18] sm:$0xff]
      %v548 = vld [vmem:[%s286 + $0x20] sm:$0xff]
      %v549 = vld [vmem:[%s286 + $0x28] sm:$0xff]
      %v550 = vld [vmem:[%s286 + $0x30] sm:$0xff]
      %v551 = vld [vmem:[%s286 + $0x38] sm:$0xff]
      %v552 = vld [vmem:[%s286 + $0x40] sm:$0xff]
      %v553 = vld [vmem:[%s286 + $0x48] sm:$0xff]
      %v554 = vld [vmem:[%s286 + $0x50] sm:$0xff]
      %v555 = vld [vmem:[%s286 + $0x58] sm:$0xff]
      %v556 = vld [vmem:[%s286 + $0x60] sm:$0xff]
      %v557 = vld [vmem:[%s286 + $0x68] sm:$0xff]
      %v558 = vld [vmem:[%s286 + $0x70] sm:$0xff]
      %v559 = vld [vmem:[%s286 + $0x78] sm:$0xff]
      %v560 = vld [vmem:[%s286 + $0x80] sm:$0xff]
      %v561 = vld [vmem:[%s286 + $0x88] sm:$0xff]
      %v562 = vld [vmem:[%s286 + $0x90] sm:$0xff]
      %v563 = vld [vmem:[%s286 + $0x98] sm:$0xff]
      %v564 = vld [vmem:[%s286 + $0xa0] sm:$0xff]
      %v565 = vld [vmem:[%s286 + $0xa8] sm:$0xff]
      %v566 = vld [vmem:[%s286 + $0xb0] sm:$0xff]
      %v567 = vld [vmem:[%s286 + $0xb8] sm:$0xff]
      %v568 = vld [vmem:[%s286 + $0xc0] sm:$0xff]
      %v569 = vld [vmem:[%s286 + $0xc8] sm:$0xff]
      %v570 = vld [vmem:[%s286 + $0xd0] sm:$0xff]
      %v571 = vld [vmem:[%s286 + $0xd8] sm:$0xff]
      %v572 = vld [vmem:[%s286 + $0xe0] sm:$0xff]
      %v573 = vld [vmem:[%s286 + $0xe8] sm:$0xff]
      %v574 = vld [vmem:[%s286 + $0xf0] sm:$0xff]
      %v575 = vld [vmem:[%s286 + $0xf8] sm:$0xff]
      %v608 = vunpack.c.l.b16 %v544
      %v609 = vunpack.c.h.b16 %v544
      %v610 = vunpack.c.l.b16 %v545
      %v611 = vunpack.c.h.b16 %v545
      %v612 = vunpack.c.l.b16 %v546
      %v613 = vunpack.c.h.b16 %v546
      %v614 = vunpack.c.l.b16 %v547
      %v615 = vunpack.c.h.b16 %v547
      %v616 = vunpack.c.l.b16 %v548
      %v617 = vunpack.c.h.b16 %v548
      %v618 = vunpack.c.l.b16 %v549
      %v619 = vunpack.c.h.b16 %v549
      %v620 = vunpack.c.l.b16 %v550
      %v621 = vunpack.c.h.b16 %v550
      %v622 = vunpack.c.l.b16 %v551
      %v623 = vunpack.c.h.b16 %v551
      %v624 = vunpack.c.l.b16 %v552
      %v625 = vunpack.c.h.b16 %v552
      %v626 = vunpack.c.l.b16 %v553
      %v627 = vunpack.c.h.b16 %v553
      %v628 = vunpack.c.l.b16 %v554
      %v629 = vunpack.c.h.b16 %v554
      %v630 = vunpack.c.l.b16 %v555
      %v631 = vunpack.c.h.b16 %v555
      %v632 = vunpack.c.l.b16 %v556
      %v633 = vunpack.c.h.b16 %v556
      %v634 = vunpack.c.l.b16 %v557
      %v635 = vunpack.c.h.b16 %v557
      %v636 = vunpack.c.l.b16 %v558
      %v637 = vunpack.c.h.b16 %v558
      %v638 = vunpack.c.l.b16 %v559
      %v639 = vunpack.c.h.b16 %v559
      %v640 = vunpack.c.l.b16 %v560
      %v641 = vunpack.c.h.b16 %v560
      %v642 = vunpack.c.l.b16 %v561
      %v643 = vunpack.c.h.b16 %v561
      %v644 = vunpack.c.l.b16 %v562
      %v645 = vunpack.c.h.b16 %v562
      %v646 = vunpack.c.l.b16 %v563
      %v647 = vunpack.c.h.b16 %v563
      %v648 = vunpack.c.l.b16 %v564
      %v649 = vunpack.c.h.b16 %v564
      %v650 = vunpack.c.l.b16 %v565
      %v651 = vunpack.c.h.b16 %v565
      %v652 = vunpack.c.l.b16 %v566
      %v653 = vunpack.c.h.b16 %v566
      %v654 = vunpack.c.l.b16 %v567
      %v655 = vunpack.c.h.b16 %v567
      %v656 = vunpack.c.l.b16 %v568
      %v657 = vunpack.c.h.b16 %v568
      %v658 = vunpack.c.l.b16 %v569
      %v659 = vunpack.c.h.b16 %v569
      %v660 = vunpack.c.l.b16 %v570
      %v661 = vunpack.c.h.b16 %v570
      %v662 = vunpack.c.l.b16 %v571
      %v663 = vunpack.c.h.b16 %v571
      %v664 = vunpack.c.l.b16 %v572
      %v665 = vunpack.c.h.b16 %v572
      %v666 = vunpack.c.l.b16 %v573
      %v667 = vunpack.c.h.b16 %v573
      %v668 = vunpack.c.l.b16 %v574
      %v669 = vunpack.c.h.b16 %v574
      %v670 = vunpack.c.l.b16 %v575
      %v671 = vunpack.c.h.b16 %v575
      %v672 = vpack.c.b16 %v610, %v608
      %v673 = vpack.c.b16 %v611, %v609
      %v674 = vpack.c.b16 %v614, %v612
      %v675 = vpack.c.b16 %v615, %v613
      %v676 = vpack.c.b16 %v618, %v616
      %v677 = vpack.c.b16 %v619, %v617
      %v678 = vpack.c.b16 %v622, %v620
      %v679 = vpack.c.b16 %v623, %v621
      %v680 = vpack.c.b16 %v626, %v624
      %v681 = vpack.c.b16 %v627, %v625
      %v682 = vpack.c.b16 %v630, %v628
      %v683 = vpack.c.b16 %v631, %v629
      %v684 = vpack.c.b16 %v634, %v632
      %v685 = vpack.c.b16 %v635, %v633
      %v686 = vpack.c.b16 %v638, %v636
      %v687 = vpack.c.b16 %v639, %v637
      %v688 = vpack.c.b16 %v642, %v640
      %v689 = vpack.c.b16 %v643, %v641
      %v690 = vpack.c.b16 %v646, %v644
      %v691 = vpack.c.b16 %v647, %v645
      %v692 = vpack.c.b16 %v650, %v648
      %v693 = vpack.c.b16 %v651, %v649
      %v694 = vpack.c.b16 %v654, %v652
      %v695 = vpack.c.b16 %v655, %v653
      %v696 = vpack.c.b16 %v658, %v656
      %v697 = vpack.c.b16 %v659, %v657
      %v698 = vpack.c.b16 %v662, %v660
      %v699 = vpack.c.b16 %v663, %v661
      %v700 = vpack.c.b16 %v666, %v664
      %v701 = vpack.c.b16 %v667, %v665
      %v702 = vpack.c.b16 %v670, %v668
      %v703 = vpack.c.b16 %v671, %v669
      %vm704 = vsmask.f32 7424
      %v706 = vshrl.u32 %v672, 16
      %v708 = vshll.u32 %v672, 16
      %v710 = vrot.slane %v708, 1
      %v711 = vor.u32 %v706, %v710
      %v713 = vshll.u32 %v674, 16
      %v715 = vrot.slane %v713, 1
      %v716 = vsel %vm704, %v711, %v715
      %v718 = vshrl.u32 %v673, 16
      %v720 = vshll.u32 %v673, 16
      %v722 = vrot.slane %v720, 1
      %v723 = vor.u32 %v718, %v722
      %v725 = vshll.u32 %v675, 16
      %v727 = vrot.slane %v725, 1
      %v728 = vsel %vm704, %v723, %v727
      %v729 = vshrl.u32 %v674, 16
      %v731 = vor.u32 %v729, %v715
      %v733 = vshll.u32 %v676, 16
      %v735 = vrot.slane %v733, 1
      %v736 = vsel %vm704, %v731, %v735
      %v737 = vshrl.u32 %v675, 16
      %v739 = vor.u32 %v737, %v727
      %v741 = vshll.u32 %v677, 16
      %v743 = vrot.slane %v741, 1
      %v744 = vsel %vm704, %v739, %v743
      %v745 = vshrl.u32 %v676, 16
      %v747 = vor.u32 %v745, %v735
      %v749 = vshll.u32 %v678, 16
      %v751 = vrot.slane %v749, 1
      %v752 = vsel %vm704, %v747, %v751
      %v753 = vshrl.u32 %v677, 16
      %v755 = vor.u32 %v753, %v743
      %v757 = vshll.u32 %v679, 16
      %v759 = vrot.slane %v757, 1
      %v760 = vsel %vm704, %v755, %v759
      %v761 = vshrl.u32 %v678, 16
      %v763 = vor.u32 %v761, %v751
      %v765 = vshll.u32 %v680, 16
      %v767 = vrot.slane %v765, 1
      %v768 = vsel %vm704, %v763, %v767
      %v769 = vshrl.u32 %v679, 16
      %v771 = vor.u32 %v769, %v759
      %v773 = vshll.u32 %v681, 16
      %v775 = vrot.slane %v773, 1
      %v776 = vsel %vm704, %v771, %v775
      %v777 = vshrl.u32 %v680, 16
      %v779 = vor.u32 %v777, %v767
      %v781 = vshll.u32 %v682, 16
      %v783 = vrot.slane %v781, 1
      %v784 = vsel %vm704, %v779, %v783
      %v785 = vshrl.u32 %v681, 16
      %v787 = vor.u32 %v785, %v775
      %v789 = vshll.u32 %v683, 16
      %v791 = vrot.slane %v789, 1
      %v792 = vsel %vm704, %v787, %v791
      %v793 = vshrl.u32 %v682, 16
      %v795 = vor.u32 %v793, %v783
      %v797 = vshll.u32 %v684, 16
      %v799 = vrot.slane %v797, 1
      %v800 = vsel %vm704, %v795, %v799
      %v801 = vshrl.u32 %v683, 16
      %v803 = vor.u32 %v801, %v791
      %v805 = vshll.u32 %v685, 16
      %v807 = vrot.slane %v805, 1
      %v808 = vsel %vm704, %v803, %v807
      %v809 = vshrl.u32 %v684, 16
      %v811 = vor.u32 %v809, %v799
      %v813 = vshll.u32 %v686, 16
      %v815 = vrot.slane %v813, 1
      %v816 = vsel %vm704, %v811, %v815
      %v817 = vshrl.u32 %v685, 16
      %v819 = vor.u32 %v817, %v807
      %v821 = vshll.u32 %v687, 16
      %v823 = vrot.slane %v821, 1
      %v824 = vsel %vm704, %v819, %v823
      %v825 = vshrl.u32 %v686, 16
      %v827 = vor.u32 %v825, %v815
      %v829 = vshll.u32 %v688, 16
      %v831 = vrot.slane %v829, 1
      %v832 = vsel %vm704, %v827, %v831
      %v833 = vshrl.u32 %v687, 16
      %v835 = vor.u32 %v833, %v823
      %v837 = vshll.u32 %v689, 16
      %v839 = vrot.slane %v837, 1
      %v840 = vsel %vm704, %v835, %v839
      %v841 = vshrl.u32 %v688, 16
      %v843 = vor.u32 %v841, %v831
      %v845 = vshll.u32 %v690, 16
      %v847 = vrot.slane %v845, 1
      %v848 = vsel %vm704, %v843, %v847
      %v849 = vshrl.u32 %v689, 16
      %v851 = vor.u32 %v849, %v839
      %v853 = vshll.u32 %v691, 16
      %v855 = vrot.slane %v853, 1
      %v856 = vsel %vm704, %v851, %v855
      %v857 = vshrl.u32 %v690, 16
      %v859 = vor.u32 %v857, %v847
      %v861 = vshll.u32 %v692, 16
      %v863 = vrot.slane %v861, 1
      %v864 = vsel %vm704, %v859, %v863
      %v865 = vshrl.u32 %v691, 16
      %v867 = vor.u32 %v865, %v855
      %v869 = vshll.u32 %v693, 16
      %v871 = vrot.slane %v869, 1
      %v872 = vsel %vm704, %v867, %v871
      %v873 = vshrl.u32 %v692, 16
      %v875 = vor.u32 %v873, %v863
      %v877 = vshll.u32 %v694, 16
      %v879 = vrot.slane %v877, 1
      %v880 = vsel %vm704, %v875, %v879
      %v881 = vshrl.u32 %v693, 16
      %v883 = vor.u32 %v881, %v871
      %v885 = vshll.u32 %v695, 16
      %v887 = vrot.slane %v885, 1
      %v888 = vsel %vm704, %v883, %v887
      %v889 = vshrl.u32 %v694, 16
      %v891 = vor.u32 %v889, %v879
      %v893 = vshll.u32 %v696, 16
      %v895 = vrot.slane %v893, 1
      %v896 = vsel %vm704, %v891, %v895
      %v897 = vshrl.u32 %v695, 16
      %v899 = vor.u32 %v897, %v887
      %v901 = vshll.u32 %v697, 16
      %v903 = vrot.slane %v901, 1
      %v904 = vsel %vm704, %v899, %v903
      %v905 = vshrl.u32 %v696, 16
      %v907 = vor.u32 %v905, %v895
      %v909 = vshll.u32 %v698, 16
      %v911 = vrot.slane %v909, 1
      %v912 = vsel %vm704, %v907, %v911
      %v913 = vshrl.u32 %v697, 16
      %v915 = vor.u32 %v913, %v903
      %v917 = vshll.u32 %v699, 16
      %v919 = vrot.slane %v917, 1
      %v920 = vsel %vm704, %v915, %v919
      %v921 = vshrl.u32 %v698, 16
      %v923 = vor.u32 %v921, %v911
      %v925 = vshll.u32 %v700, 16
      %v927 = vrot.slane %v925, 1
      %v928 = vsel %vm704, %v923, %v927
      %v929 = vshrl.u32 %v699, 16
      %v931 = vor.u32 %v929, %v919
      %v933 = vshll.u32 %v701, 16
      %v935 = vrot.slane %v933, 1
      %v936 = vsel %vm704, %v931, %v935
      %v937 = vshrl.u32 %v700, 16
      %v939 = vor.u32 %v937, %v927
      %v941 = vshll.u32 %v702, 16
      %v943 = vrot.slane %v941, 1
      %v944 = vsel %vm704, %v939, %v943
      %v945 = vshrl.u32 %v701, 16
      %v947 = vor.u32 %v945, %v935
      %v949 = vshll.u32 %v703, 16
      %v951 = vrot.slane %v949, 1
      %v952 = vsel %vm704, %v947, %v951
      %v953 = vshrl.u32 %v702, 16
      %v955 = vor.u32 %v953, %v943
      %v956 = vshrl.u32 %v703, 16
      %v958 = vor.u32 %v956, %v951
      %959 = vrot.lane.b32.xlu0 %v716, 32
      %v960 = vpop.permute.xlu0 %959
      %961 = vrot.lane.b32.xlu0 %v728, 32
      %v962 = vpop.permute.xlu0 %961
      %963 = vrot.lane.b32.xlu0 %v736, 32
      %v964 = vpop.permute.xlu0 %963
      %965 = vrot.lane.b32.xlu0 %v744, 32
      %v966 = vpop.permute.xlu0 %965
      %967 = vrot.lane.b32.xlu0 %v752, 32
      %v968 = vpop.permute.xlu0 %967
      %969 = vrot.lane.b32.xlu0 %v760, 32
      %v970 = vpop.permute.xlu0 %969
      %971 = vrot.lane.b32.xlu0 %v768, 32
      %v972 = vpop.permute.xlu0 %971
      %973 = vrot.lane.b32.xlu0 %v776, 32
      %v974 = vpop.permute.xlu0 %973
      %975 = vrot.lane.b32.xlu0 %v784, 32
      %v976 = vpop.permute.xlu0 %975
      %977 = vrot.lane.b32.xlu0 %v792, 32
      %v978 = vpop.permute.xlu0 %977
      %979 = vrot.lane.b32.xlu0 %v800, 32
      %v980 = vpop.permute.xlu0 %979
      %981 = vrot.lane.b32.xlu0 %v808, 32
      %v982 = vpop.permute.xlu0 %981
      %983 = vrot.lane.b32.xlu0 %v816, 32
      %v984 = vpop.permute.xlu0 %983
      %985 = vrot.lane.b32.xlu0 %v824, 32
      %v986 = vpop.permute.xlu0 %985
      %987 = vrot.lane.b32.xlu0 %v832, 32
      %v988 = vpop.permute.xlu0 %987
      %989 = vrot.lane.b32.xlu0 %v840, 32
      %v990 = vpop.permute.xlu0 %989
      %991 = vrot.lane.b32.xlu0 %v848, 32
      %v992 = vpop.permute.xlu0 %991
      %993 = vrot.lane.b32.xlu0 %v856, 32
      %v994 = vpop.permute.xlu0 %993
      %995 = vrot.lane.b32.xlu0 %v864, 32
      %v996 = vpop.permute.xlu0 %995
      %997 = vrot.lane.b32.xlu0 %v872, 32
      %v998 = vpop.permute.xlu0 %997
      %999 = vrot.lane.b32.xlu0 %v880, 32
      %v1000 = vpop.permute.xlu0 %999
      %1001 = vrot.lane.b32.xlu0 %v888, 32
      %v1002 = vpop.permute.xlu0 %1001
      %1003 = vrot.lane.b32.xlu0 %v896, 32
      %v1004 = vpop.permute.xlu0 %1003
      %1005 = vrot.lane.b32.xlu0 %v904, 32
      %v1006 = vpop.permute.xlu0 %1005
      %1007 = vrot.lane.b32.xlu0 %v912, 32
      %v1008 = vpop.permute.xlu0 %1007
      %1009 = vrot.lane.b32.xlu0 %v920, 32
      %v1010 = vpop.permute.xlu0 %1009
      %1011 = vrot.lane.b32.xlu0 %v928, 32
      %v1012 = vpop.permute.xlu0 %1011
      %1013 = vrot.lane.b32.xlu0 %v936, 32
      %v1014 = vpop.permute.xlu0 %1013
      %1015 = vrot.lane.b32.xlu0 %v944, 32
      %v1016 = vpop.permute.xlu0 %1015
      %1017 = vrot.lane.b32.xlu0 %v952, 32
      %v1018 = vpop.permute.xlu0 %1017
      %1019 = vrot.lane.b32.xlu0 %v955, 32
      %v1020 = vpop.permute.xlu0 %1019
      %1021 = vrot.lane.b32.xlu0 %v958, 32
      %v1022 = vpop.permute.xlu0 %1021
      %vm1023 = vcmask 261120
      %v1024 = vsel %vm1023, %v960, %v962
      %v1025 = vsel %vm1023, %v964, %v966
      %v1026 = vsel %vm1023, %v968, %v970
      %v1027 = vsel %vm1023, %v972, %v974
      %v1028 = vsel %vm1023, %v976, %v978
      %v1029 = vsel %vm1023, %v980, %v982
      %v1030 = vsel %vm1023, %v984, %v986
      %v1031 = vsel %vm1023, %v988, %v990
      %v1032 = vsel %vm1023, %v992, %v994
      %v1033 = vsel %vm1023, %v996, %v998
      %v1034 = vsel %vm1023, %v1000, %v1002
      %v1035 = vsel %vm1023, %v1004, %v1006
      %v1036 = vsel %vm1023, %v1008, %v1010
      %v1037 = vsel %vm1023, %v1012, %v1014
      %v1038 = vsel %vm1023, %v1016, %v1018
      %v1039 = vsel %vm1023, %v1020, %v1022
      %vm1072 = vcmask 1047808
      %1073 = vst.msk [vmem:[#allocation2 + $0x8] sm:$0xff] %vm1072, %v960
      %vm1074 = vcmask 523264
      %1075 = vst.msk [vmem:[#allocation2 + $0x10] sm:$0xff] %vm1074, %v1024
      %1076 = vst.msk [vmem:[#allocation2 + $0x30] sm:$0xff] %vm1072, %v964
      %1077 = vst.msk [vmem:[#allocation2 + $0x38] sm:$0xff] %vm1074, %v1025
      %1078 = vst.msk [vmem:[#allocation2 + $0x58] sm:$0xff] %vm1072, %v968
      %1079 = vst.msk [vmem:[#allocation2 + $0x60] sm:$0xff] %vm1074, %v1026
      %1080 = vst.msk [vmem:[#allocation2 + $0x80] sm:$0xff] %vm1072, %v972
      %1081 = vst.msk [vmem:[#allocation2 + $0x88] sm:$0xff] %vm1074, %v1027
      %1082 = vst.msk [vmem:[#allocation2 + $0xa8] sm:$0xff] %vm1072, %v976
      %1083 = vst.msk [vmem:[#allocation2 + $0xb0] sm:$0xff] %vm1074, %v1028
      %1084 = vst.msk [vmem:[#allocation2 + $0xd0] sm:$0xff] %vm1072, %v980
      %1085 = vst.msk [vmem:[#allocation2 + $0xd8] sm:$0xff] %vm1074, %v1029
      %1086 = vst.msk [vmem:[#allocation2 + $0xf8] sm:$0xff] %vm1072, %v984
      %1087 = vst.msk [vmem:[#allocation2 + $0x100] sm:$0xff] %vm1074, %v1030
      %1088 = vst.msk [vmem:[#allocation2 + $0x120] sm:$0xff] %vm1072, %v988
      %1089 = vst.msk [vmem:[#allocation2 + $0x128] sm:$0xff] %vm1074, %v1031
      %1090 = vst.msk [vmem:[#allocation2 + $0x148] sm:$0xff] %vm1072, %v992
      %1091 = vst.msk [vmem:[#allocation2 + $0x150] sm:$0xff] %vm1074, %v1032
      %1092 = vst.msk [vmem:[#allocation2 + $0x170] sm:$0xff] %vm1072, %v996
      %1093 = vst.msk [vmem:[#allocation2 + $0x178] sm:$0xff] %vm1074, %v1033
      %1094 = vst.msk [vmem:[#allocation2 + $0x198] sm:$0xff] %vm1072, %v1000
      %1095 = vst.msk [vmem:[#allocation2 + $0x1a0] sm:$0xff] %vm1074, %v1034
      %1096 = vst.msk [vmem:[#allocation2 + $0x1c0] sm:$0xff] %vm1072, %v1004
      %1097 = vst.msk [vmem:[#allocation2 + $0x1c8] sm:$0xff] %vm1074, %v1035
      %1098 = vst.msk [vmem:[#allocation2 + $0x1e8] sm:$0xff] %vm1072, %v1008
      %1099 = vst.msk [vmem:[#allocation2 + $0x1f0] sm:$0xff] %vm1074, %v1036
      %1100 = vst.msk [vmem:[#allocation2 + $0x210] sm:$0xff] %vm1072, %v1012
      %1101 = vst.msk [vmem:[#allocation2 + $0x218] sm:$0xff] %vm1074, %v1037
      %1102 = vst.msk [vmem:[#allocation2 + $0x238] sm:$0xff] %vm1072, %v1016
      %1103 = vst.msk [vmem:[#allocation2 + $0x240] sm:$0xff] %vm1074, %v1038
      %vm1104 = vcmask 1047808
      %vm1105 = vmand %vm1104, %vm704
      %v1106 = vld [vmem:[#allocation2 + $0x260] sm:$0xff]
      %v1107 = vsel %vm1105, %v1020, %v1106
      %1108 = vst [vmem:[#allocation2 + $0x260] sm:$0xff] %v1107
      %vm1109 = vcmask 523264
      %vm1110 = vmand %vm1109, %vm704
      %v1111 = vld [vmem:[#allocation2 + $0x268] sm:$0xff]
      %v1112 = vsel %vm1110, %v1039, %v1111
      %1113 = vst [vmem:[#allocation2 + $0x268] sm:$0xff] %v1112
      %v1114 = vld [vmem:[%s304] sm:$0x11]
      %v1116 = vunpack.c.l.b16 %v1114
      %v1117 = vunpack.c.h.b16 %v1114
      %v1118 = vpack.c.b16 %v1116, %v1116
      %v1119 = vpack.c.b16 %v1117, %v1117
      %v1121 = vshll.u32 %v1118, 16
      %v1123 = vrot.slane %v1121, 1
      %v1125 = vshll.u32 %v1119, 16
      %v1127 = vrot.slane %v1125, 1
      %1128 = vrot.lane.b32.xlu0 %v1123, 32
      %v1129 = vpop.permute.xlu0 %1128
      %1130 = vrot.lane.b32.xlu0 %v1127, 32
      %v1131 = vpop.permute.xlu0 %1130
      %v1132 = vsel %vm1023, %v1129, %v1131
      %vm1135 = vcmask 1047815
      %vm1136 = vsmask.f32 7966
      %vm1137 = vmand %vm1135, %vm1136
      %v1138 = vld [vmem:[#allocation2 + $0x260] sm:$0x80]
      %v1139 = vsel %vm1137, %v1129, %v1138
      %1140 = vst [vmem:[#allocation2 + $0x260] sm:$0x80] %v1139
      %vm1141 = vcmask 523271
      %vm1142 = vmand %vm1141, %vm1136
      %v1143 = vld [vmem:[#allocation2 + $0x268] sm:$0x80]
      %v1144 = vsel %vm1142, %v1132, %v1143
      %1145 = vst [vmem:[#allocation2 + $0x268] sm:$0x80] %v1144
      %v1146 = vld [vmem:[%s286] sm:$0xee]
      %v1147 = vld [vmem:[%s286 + $0x8] sm:$0xff]
      %v1148 = vld [vmem:[%s286 + $0x10] sm:$0xff]
      %v1149 = vld [vmem:[%s286 + $0x18] sm:$0xff]
      %v1150 = vld [vmem:[%s286 + $0x20] sm:$0xff]
      %v1151 = vld [vmem:[%s286 + $0x28] sm:$0xff]
      %v1152 = vld [vmem:[%s286 + $0x30] sm:$0xff]
      %v1153 = vld [vmem:[%s286 + $0x38] sm:$0xff]
      %v1154 = vld [vmem:[%s286 + $0x40] sm:$0xff]
      %v1155 = vld [vmem:[%s286 + $0x48] sm:$0xff]
      %v1156 = vld [vmem:[%s286 + $0x50] sm:$0xff]
      %v1157 = vld [vmem:[%s286 + $0x58] sm:$0xff]
      %v1158 = vld [vmem:[%s286 + $0x60] sm:$0xff]
      %v1159 = vld [vmem:[%s286 + $0x68] sm:$0xff]
      %v1160 = vld [vmem:[%s286 + $0x70] sm:$0xff]
      %v1161 = vld [vmem:[%s286 + $0x78] sm:$0xff]
      %v1162 = vld [vmem:[%s286 + $0x80] sm:$0xff]
      %v1163 = vld [vmem:[%s286 + $0x88] sm:$0xff]
      %v1164 = vld [vmem:[%s286 + $0x90] sm:$0xff]
      %v1165 = vld [vmem:[%s286 + $0x98] sm:$0xff]
      %v1166 = vld [vmem:[%s286 + $0xa0] sm:$0xff]
      %v1167 = vld [vmem:[%s286 + $0xa8] sm:$0xff]
      %v1168 = vld [vmem:[%s286 + $0xb0] sm:$0xff]
      %v1169 = vld [vmem:[%s286 + $0xb8] sm:$0xff]
      %v1170 = vld [vmem:[%s286 + $0xc0] sm:$0xff]
      %v1171 = vld [vmem:[%s286 + $0xc8] sm:$0xff]
      %v1172 = vld [vmem:[%s286 + $0xd0] sm:$0xff]
      %v1173 = vld [vmem:[%s286 + $0xd8] sm:$0xff]
      %v1174 = vld [vmem:[%s286 + $0xe0] sm:$0xff]
      %v1175 = vld [vmem:[%s286 + $0xe8] sm:$0xff]
      %v1176 = vld [vmem:[%s286 + $0xf0] sm:$0xff]
      %v1177 = vld [vmem:[%s286 + $0xf8] sm:$0xff]
      %v1210 = vunpack.c.l.b16 %v1146
      %v1211 = vunpack.c.h.b16 %v1146
      %v1212 = vunpack.c.l.b16 %v1147
      %v1213 = vunpack.c.h.b16 %v1147
      %v1214 = vunpack.c.l.b16 %v1148
      %v1215 = vunpack.c.h.b16 %v1148
      %v1216 = vunpack.c.l.b16 %v1149
      %v1217 = vunpack.c.h.b16 %v1149
      %v1218 = vunpack.c.l.b16 %v1150
      %v1219 = vunpack.c.h.b16 %v1150
      %v1220 = vunpack.c.l.b16 %v1151
      %v1221 = vunpack.c.h.b16 %v1151
      %v1222 = vunpack.c.l.b16 %v1152
      %v1223 = vunpack.c.h.b16 %v1152
      %v1224 = vunpack.c.l.b16 %v1153
      %v1225 = vunpack.c.h.b16 %v1153
      %v1226 = vunpack.c.l.b16 %v1154
      %v1227 = vunpack.c.h.b16 %v1154
      %v1228 = vunpack.c.l.b16 %v1155
      %v1229 = vunpack.c.h.b16 %v1155
      %v1230 = vunpack.c.l.b16 %v1156
      %v1231 = vunpack.c.h.b16 %v1156
      %v1232 = vunpack.c.l.b16 %v1157
      %v1233 = vunpack.c.h.b16 %v1157
      %v1234 = vunpack.c.l.b16 %v1158
      %v1235 = vunpack.c.h.b16 %v1158
      %v1236 = vunpack.c.l.b16 %v1159
      %v1237 = vunpack.c.h.b16 %v1159
      %v1238 = vunpack.c.l.b16 %v1160
      %v1239 = vunpack.c.h.b16 %v1160
      %v1240 = vunpack.c.l.b16 %v1161
      %v1241 = vunpack.c.h.b16 %v1161
      %v1242 = vunpack.c.l.b16 %v1162
      %v1243 = vunpack.c.h.b16 %v1162
      %v1244 = vunpack.c.l.b16 %v1163
      %v1245 = vunpack.c.h.b16 %v1163
      %v1246 = vunpack.c.l.b16 %v1164
      %v1247 = vunpack.c.h.b16 %v1164
      %v1248 = vunpack.c.l.b16 %v1165
      %v1249 = vunpack.c.h.b16 %v1165
      %v1250 = vunpack.c.l.b16 %v1166
      %v1251 = vunpack.c.h.b16 %v1166
      %v1252 = vunpack.c.l.b16 %v1167
      %v1253 = vunpack.c.h.b16 %v1167
      %v1254 = vunpack.c.l.b16 %v1168
      %v1255 = vunpack.c.h.b16 %v1168
      %v1256 = vunpack.c.l.b16 %v1169
      %v1257 = vunpack.c.h.b16 %v1169
      %v1258 = vunpack.c.l.b16 %v1170
      %v1259 = vunpack.c.h.b16 %v1170
      %v1260 = vunpack.c.l.b16 %v1171
      %v1261 = vunpack.c.h.b16 %v1171
      %v1262 = vunpack.c.l.b16 %v1172
      %v1263 = vunpack.c.h.b16 %v1172
      %v1264 = vunpack.c.l.b16 %v1173
      %v1265 = vunpack.c.h.b16 %v1173
      %v1266 = vunpack.c.l.b16 %v1174
      %v1267 = vunpack.c.h.b16 %v1174
      %v1268 = vunpack.c.l.b16 %v1175
      %v1269 = vunpack.c.h.b16 %v1175
      %v1270 = vunpack.c.l.b16 %v1176
      %v1271 = vunpack.c.h.b16 %v1176
      %v1272 = vunpack.c.l.b16 %v1177
      %v1273 = vunpack.c.h.b16 %v1177
      %v1274 = vpack.c.b16 %v1212, %v1210
      %v1275 = vpack.c.b16 %v1213, %v1211
      %v1276 = vpack.c.b16 %v1216, %v1214
      %v1277 = vpack.c.b16 %v1217, %v1215
      %v1278 = vpack.c.b16 %v1220, %v1218
      %v1279 = vpack.c.b16 %v1221, %v1219
      %v1280 = vpack.c.b16 %v1224, %v1222
      %v1281 = vpack.c.b16 %v1225, %v1223
      %v1282 = vpack.c.b16 %v1228, %v1226
      %v1283 = vpack.c.b16 %v1229, %v1227
      %v1284 = vpack.c.b16 %v1232, %v1230
      %v1285 = vpack.c.b16 %v1233, %v1231
      %v1286 = vpack.c.b16 %v1236, %v1234
      %v1287 = vpack.c.b16 %v1237, %v1235
      %v1288 = vpack.c.b16 %v1240, %v1238
      %v1289 = vpack.c.b16 %v1241, %v1239
      %v1290 = vpack.c.b16 %v1244, %v1242
      %v1291 = vpack.c.b16 %v1245, %v1243
      %v1292 = vpack.c.b16 %v1248, %v1246
      %v1293 = vpack.c.b16 %v1249, %v1247
      %v1294 = vpack.c.b16 %v1252, %v1250
      %v1295 = vpack.c.b16 %v1253, %v1251
      %v1296 = vpack.c.b16 %v1256, %v1254
      %v1297 = vpack.c.b16 %v1257, %v1255
      %v1298 = vpack.c.b16 %v1260, %v1258
      %v1299 = vpack.c.b16 %v1261, %v1259
      %v1300 = vpack.c.b16 %v1264, %v1262
      %v1301 = vpack.c.b16 %v1265, %v1263
      %v1302 = vpack.c.b16 %v1268, %v1266
      %v1303 = vpack.c.b16 %v1269, %v1267
      %v1304 = vpack.c.b16 %v1272, %v1270
      %v1305 = vpack.c.b16 %v1273, %v1271
      %vm1306 = vcmask 1046528
      %v1307 = vrot.slane %v1274, 1
      %v1308 = vrot.slane %v1276, 1
      %v1309 = vsel %vm1306, %v1307, %v1308
      %v1310 = vrot.slane %v1275, 1
      %v1311 = vrot.slane %v1277, 1
      %v1312 = vsel %vm1306, %v1310, %v1311
      %v1313 = vrot.slane %v1278, 1
      %v1314 = vsel %vm1306, %v1308, %v1313
      %v1315 = vrot.slane %v1279, 1
      %v1316 = vsel %vm1306, %v1311, %v1315
      %v1317 = vrot.slane %v1280, 1
      %v1318 = vsel %vm1306, %v1313, %v1317
      %v1319 = vrot.slane %v1281, 1
      %v1320 = vsel %vm1306, %v1315, %v1319
      %v1321 = vrot.slane %v1282, 1
      %v1322 = vsel %vm1306, %v1317, %v1321
      %v1323 = vrot.slane %v1283, 1
      %v1324 = vsel %vm1306, %v1319, %v1323
      %v1325 = vrot.slane %v1284, 1
      %v1326 = vsel %vm1306, %v1321, %v1325
      %v1327 = vrot.slane %v1285, 1
      %v1328 = vsel %vm1306, %v1323, %v1327
      %v1329 = vrot.slane %v1286, 1
      %v1330 = vsel %vm1306, %v1325, %v1329
      %v1331 = vrot.slane %v1287, 1
      %v1332 = vsel %vm1306, %v1327, %v1331
      %v1333 = vrot.slane %v1288, 1
      %v1334 = vsel %vm1306, %v1329, %v1333
      %v1335 = vrot.slane %v1289, 1
      %v1336 = vsel %vm1306, %v1331, %v1335
      %v1337 = vrot.slane %v1290, 1
      %v1338 = vsel %vm1306, %v1333, %v1337
      %v1339 = vrot.slane %v1291, 1
      %v1340 = vsel %vm1306, %v1335, %v1339
      %v1341 = vrot.slane %v1292, 1
      %v1342 = vsel %vm1306, %v1337, %v1341
      %v1343 = vrot.slane %v1293, 1
      %v1344 = vsel %vm1306, %v1339, %v1343
      %v1345 = vrot.slane %v1294, 1
      %v1346 = vsel %vm1306, %v1341, %v1345
      %v1347 = vrot.slane %v1295, 1
      %v1348 = vsel %vm1306, %v1343, %v1347
      %v1349 = vrot.slane %v1296, 1
      %v1350 = vsel %vm1306, %v1345, %v1349
      %v1351 = vrot.slane %v1297, 1
      %v1352 = vsel %vm1306, %v1347, %v1351
      %v1353 = vrot.slane %v1298, 1
      %v1354 = vsel %vm1306, %v1349, %v1353
      %v1355 = vrot.slane %v1299, 1
      %v1356 = vsel %vm1306, %v1351, %v1355
      %v1357 = vrot.slane %v1300, 1
      %v1358 = vsel %vm1306, %v1353, %v1357
      %v1359 = vrot.slane %v1301, 1
      %v1360 = vsel %vm1306, %v1355, %v1359
      %v1361 = vrot.slane %v1302, 1
      %v1362 = vsel %vm1306, %v1357, %v1361
      %v1363 = vrot.slane %v1303, 1
      %v1364 = vsel %vm1306, %v1359, %v1363
      %v1365 = vrot.slane %v1304, 1
      %v1366 = vsel %vm1306, %v1361, %v1365
      %v1367 = vrot.slane %v1305, 1
      %v1368 = vsel %vm1306, %v1363, %v1367
      %1369 = vrot.lane.b32.xlu0 %v1309, 64
      %v1370 = vpop.permute.xlu0 %1369
      %1371 = vrot.lane.b32.xlu0 %v1312, 64
      %v1372 = vpop.permute.xlu0 %1371
      %1373 = vrot.lane.b32.xlu0 %v1314, 64
      %v1374 = vpop.permute.xlu0 %1373
      %1375 = vrot.lane.b32.xlu0 %v1316, 64
      %v1376 = vpop.permute.xlu0 %1375
      %1377 = vrot.lane.b32.xlu0 %v1318, 64
      %v1378 = vpop.permute.xlu0 %1377
      %1379 = vrot.lane.b32.xlu0 %v1320, 64
      %v1380 = vpop.permute.xlu0 %1379
      %1381 = vrot.lane.b32.xlu0 %v1322, 64
      %v1382 = vpop.permute.xlu0 %1381
      %1383 = vrot.lane.b32.xlu0 %v1324, 64
      %v1384 = vpop.permute.xlu0 %1383
      %1385 = vrot.lane.b32.xlu0 %v1326, 64
      %v1386 = vpop.permute.xlu0 %1385
      %1387 = vrot.lane.b32.xlu0 %v1328, 64
      %v1388 = vpop.permute.xlu0 %1387
      %1389 = vrot.lane.b32.xlu0 %v1330, 64
      %v1390 = vpop.permute.xlu0 %1389
      %1391 = vrot.lane.b32.xlu0 %v1332, 64
      %v1392 = vpop.permute.xlu0 %1391
      %1393 = vrot.lane.b32.xlu0 %v1334, 64
      %v1394 = vpop.permute.xlu0 %1393
      %1395 = vrot.lane.b32.xlu0 %v1336, 64
      %v1396 = vpop.permute.xlu0 %1395
      %1397 = vrot.lane.b32.xlu0 %v1338, 64
      %v1398 = vpop.permute.xlu0 %1397
      %1399 = vrot.lane.b32.xlu0 %v1340, 64
      %v1400 = vpop.permute.xlu0 %1399
      %1401 = vrot.lane.b32.xlu0 %v1342, 64
      %v1402 = vpop.permute.xlu0 %1401
      %1403 = vrot.lane.b32.xlu0 %v1344, 64
      %v1404 = vpop.permute.xlu0 %1403
      %1405 = vrot.lane.b32.xlu0 %v1346, 64
      %v1406 = vpop.permute.xlu0 %1405
      %1407 = vrot.lane.b32.xlu0 %v1348, 64
      %v1408 = vpop.permute.xlu0 %1407
      %1409 = vrot.lane.b32.xlu0 %v1350, 64
      %v1410 = vpop.permute.xlu0 %1409
      %1411 = vrot.lane.b32.xlu0 %v1352, 64
      %v1412 = vpop.permute.xlu0 %1411
      %1413 = vrot.lane.b32.xlu0 %v1354, 64
      %v1414 = vpop.permute.xlu0 %1413
      %1415 = vrot.lane.b32.xlu0 %v1356, 64
      %v1416 = vpop.permute.xlu0 %1415
      %1417 = vrot.lane.b32.xlu0 %v1358, 64
      %v1418 = vpop.permute.xlu0 %1417
      %1419 = vrot.lane.b32.xlu0 %v1360, 64
      %v1420 = vpop.permute.xlu0 %1419
      %1421 = vrot.lane.b32.xlu0 %v1362, 64
      %v1422 = vpop.permute.xlu0 %1421
      %1423 = vrot.lane.b32.xlu0 %v1364, 64
      %v1424 = vpop.permute.xlu0 %1423
      %1425 = vrot.lane.b32.xlu0 %v1366, 64
      %v1426 = vpop.permute.xlu0 %1425
      %1427 = vrot.lane.b32.xlu0 %v1368, 64
      %v1428 = vpop.permute.xlu0 %1427
      %1429 = vrot.lane.b32.xlu0 %v1365, 64
      %v1430 = vpop.permute.xlu0 %1429
      %1431 = vrot.lane.b32.xlu0 %v1367, 64
      %v1432 = vpop.permute.xlu0 %1431
      %v1433 = vsel %vm1109, %v1370, %v1372
      %v1434 = vsel %vm1109, %v1374, %v1376
      %v1435 = vsel %vm1109, %v1378, %v1380
      %v1436 = vsel %vm1109, %v1382, %v1384
      %v1437 = vsel %vm1109, %v1386, %v1388
      %v1438 = vsel %vm1109, %v1390, %v1392
      %v1439 = vsel %vm1109, %v1394, %v1396
      %v1440 = vsel %vm1109, %v1398, %v1400
      %v1441 = vsel %vm1109, %v1402, %v1404
      %v1442 = vsel %vm1109, %v1406, %v1408
      %v1443 = vsel %vm1109, %v1410, %v1412
      %v1444 = vsel %vm1109, %v1414, %v1416
      %v1445 = vsel %vm1109, %v1418, %v1420
      %v1446 = vsel %vm1109, %v1422, %v1424
      %v1447 = vsel %vm1109, %v1426, %v1428
      %v1448 = vsel %vm1109, %v1430, %v1432
      %vm1481 = vcmask 1048064
      %1482 = vst.msk [vmem:[#allocation2 + $0x10] sm:$0xff] %vm1481, %v1370
      %vm1483 = vcmask 785408
      %1484 = vst.msk [vmem:[#allocation2 + $0x18] sm:$0xff] %vm1483, %v1433
      %1485 = vst.msk [vmem:[#allocation2 + $0x38] sm:$0xff] %vm1481, %v1374
      %1486 = vst.msk [vmem:[#allocation2 + $0x40] sm:$0xff] %vm1483, %v1434
      %1487 = vst.msk [vmem:[#allocation2 + $0x60] sm:$0xff] %vm1481, %v1378
      %1488 = vst.msk [vmem:[#allocation2 + $0x68] sm:$0xff] %vm1483, %v1435
      %1489 = vst.msk [vmem:[#allocation2 + $0x88] sm:$0xff] %vm1481, %v1382
      %1490 = vst.msk [vmem:[#allocation2 + $0x90] sm:$0xff] %vm1483, %v1436
      %1491 = vst.msk [vmem:[#allocation2 + $0xb0] sm:$0xff] %vm1481, %v1386
      %1492 = vst.msk [vmem:[#allocation2 + $0xb8] sm:$0xff] %vm1483, %v1437
      %1493 = vst.msk [vmem:[#allocation2 + $0xd8] sm:$0xff] %vm1481, %v1390
      %1494 = vst.msk [vmem:[#allocation2 + $0xe0] sm:$0xff] %vm1483, %v1438
      %1495 = vst.msk [vmem:[#allocation2 + $0x100] sm:$0xff] %vm1481, %v1394
      %1496 = vst.msk [vmem:[#allocation2 + $0x108] sm:$0xff] %vm1483, %v1439
      %1497 = vst.msk [vmem:[#allocation2 + $0x128] sm:$0xff] %vm1481, %v1398
      %1498 = vst.msk [vmem:[#allocation2 + $0x130] sm:$0xff] %vm1483, %v1440
      %1499 = vst.msk [vmem:[#allocation2 + $0x150] sm:$0xff] %vm1481, %v1402
      %1500 = vst.msk [vmem:[#allocation2 + $0x158] sm:$0xff] %vm1483, %v1441
      %1501 = vst.msk [vmem:[#allocation2 + $0x178] sm:$0xff] %vm1481, %v1406
      %1502 = vst.msk [vmem:[#allocation2 + $0x180] sm:$0xff] %vm1483, %v1442
      %1503 = vst.msk [vmem:[#allocation2 + $0x1a0] sm:$0xff] %vm1481, %v1410
      %1504 = vst.msk [vmem:[#allocation2 + $0x1a8] sm:$0xff] %vm1483, %v1443
      %1505 = vst.msk [vmem:[#allocation2 + $0x1c8] sm:$0xff] %vm1481, %v1414
      %1506 = vst.msk [vmem:[#allocation2 + $0x1d0] sm:$0xff] %vm1483, %v1444
      %1507 = vst.msk [vmem:[#allocation2 + $0x1f0] sm:$0xff] %vm1481, %v1418
      %1508 = vst.msk [vmem:[#allocation2 + $0x1f8] sm:$0xff] %vm1483, %v1445
      %1509 = vst.msk [vmem:[#allocation2 + $0x218] sm:$0xff] %vm1481, %v1422
      %1510 = vst.msk [vmem:[#allocation2 + $0x220] sm:$0xff] %vm1483, %v1446
      %1511 = vst.msk [vmem:[#allocation2 + $0x240] sm:$0xff] %vm1481, %v1426
      %1512 = vst.msk [vmem:[#allocation2 + $0x248] sm:$0xff] %vm1483, %v1447
      %vm1513 = vcmask 1047040
      %1514 = vst.msk [vmem:[#allocation2 + $0x268] sm:$0x7f] %vm1513, %v1430
      %vm1515 = vcmask 784384
      %1516 = vst.msk [vmem:[#allocation2 + $0x270] sm:$0x7f] %vm1515, %v1448
      %v1517 = vld [vmem:[%s304] sm:$0x11]
      %v1519 = vunpack.c.l.b16 %v1517
      %v1520 = vunpack.c.h.b16 %v1517
      %v1521 = vpack.c.b16 %v1519, %v1519
      %v1522 = vpack.c.b16 %v1520, %v1520
      %v1523 = vrot.slane %v1521, 1
      %v1524 = vrot.slane %v1522, 1
      %1525 = vrot.lane.b32.xlu0 %v1523, 64
      %v1526 = vpop.permute.xlu0 %1525
      %1527 = vrot.lane.b32.xlu0 %v1524, 64
      %v1528 = vpop.permute.xlu0 %1527
      %v1529 = vsel %vm1109, %v1526, %v1528
      %vm1532 = vcmask 1048071
      %1533 = vst.msk [vmem:[#allocation2 + $0x268] sm:$0x80] %vm1532, %v1526
      %vm1534 = vcmask 785415
      %1535 = vst.msk [vmem:[#allocation2 + $0x270] sm:$0x80] %vm1534, %v1529
      %v1536 = vld [vmem:[%s286] sm:$0xee]
      %v1537 = vld [vmem:[%s286 + $0x8] sm:$0xff]
      %v1538 = vld [vmem:[%s286 + $0x10] sm:$0xff]
      %v1539 = vld [vmem:[%s286 + $0x18] sm:$0xff]
      %v1540 = vld [vmem:[%s286 + $0x20] sm:$0xff]
      %v1541 = vld [vmem:[%s286 + $0x28] sm:$0xff]
      %v1542 = vld [vmem:[%s286 + $0x30] sm:$0xff]
      %v1543 = vld [vmem:[%s286 + $0x38] sm:$0xff]
      %v1544 = vld [vmem:[%s286 + $0x40] sm:$0xff]
      %v1545 = vld [vmem:[%s286 + $0x48] sm:$0xff]
      %v1546 = vld [vmem:[%s286 + $0x50] sm:$0xff]
      %v1547 = vld [vmem:[%s286 + $0x58] sm:$0xff]
      %v1548 = vld [vmem:[%s286 + $0x60] sm:$0xff]
      %v1549 = vld [vmem:[%s286 + $0x68] sm:$0xff]
      %v1550 = vld [vmem:[%s286 + $0x70] sm:$0xff]
      %v1551 = vld [vmem:[%s286 + $0x78] sm:$0xff]
      %v1552 = vld [vmem:[%s286 + $0x80] sm:$0xff]
      %v1553 = vld [vmem:[%s286 + $0x88] sm:$0xff]
      %v1554 = vld [vmem:[%s286 + $0x90] sm:$0xff]
      %v1555 = vld [vmem:[%s286 + $0x98] sm:$0xff]
      %v1556 = vld [vmem:[%s286 + $0xa0] sm:$0xff]
      %v1557 = vld [vmem:[%s286 + $0xa8] sm:$0xff]
      %v1558 = vld [vmem:[%s286 + $0xb0] sm:$0xff]
      %v1559 = vld [vmem:[%s286 + $0xb8] sm:$0xff]
      %v1560 = vld [vmem:[%s286 + $0xc0] sm:$0xff]
      %v1561 = vld [vmem:[%s286 + $0xc8] sm:$0xff]
      %v1562 = vld [vmem:[%s286 + $0xd0] sm:$0xff]
      %v1563 = vld [vmem:[%s286 + $0xd8] sm:$0xff]
      %v1564 = vld [vmem:[%s286 + $0xe0] sm:$0xff]
      %v1565 = vld [vmem:[%s286 + $0xe8] sm:$0xff]
      %v1566 = vld [vmem:[%s286 + $0xf0] sm:$0xff]
      %v1567 = vld [vmem:[%s286 + $0xf8] sm:$0xff]
      %v1600 = vunpack.c.l.b16 %v1536
      %v1601 = vunpack.c.h.b16 %v1536
      %v1602 = vunpack.c.l.b16 %v1537
      %v1603 = vunpack.c.h.b16 %v1537
      %v1604 = vunpack.c.l.b16 %v1538
      %v1605 = vunpack.c.h.b16 %v1538
      %v1606 = vunpack.c.l.b16 %v1539
      %v1607 = vunpack.c.h.b16 %v1539
      %v1608 = vunpack.c.l.b16 %v1540
      %v1609 = vunpack.c.h.b16 %v1540
      %v1610 = vunpack.c.l.b16 %v1541
      %v1611 = vunpack.c.h.b16 %v1541
      %v1612 = vunpack.c.l.b16 %v1542
      %v1613 = vunpack.c.h.b16 %v1542
      %v1614 = vunpack.c.l.b16 %v1543
      %v1615 = vunpack.c.h.b16 %v1543
      %v1616 = vunpack.c.l.b16 %v1544
      %v1617 = vunpack.c.h.b16 %v1544
      %v1618 = vunpack.c.l.b16 %v1545
      %v1619 = vunpack.c.h.b16 %v1545
      %v1620 = vunpack.c.l.b16 %v1546
      %v1621 = vunpack.c.h.b16 %v1546
      %v1622 = vunpack.c.l.b16 %v1547
      %v1623 = vunpack.c.h.b16 %v1547
      %v1624 = vunpack.c.l.b16 %v1548
      %v1625 = vunpack.c.h.b16 %v1548
      %v1626 = vunpack.c.l.b16 %v1549
      %v1627 = vunpack.c.h.b16 %v1549
      %v1628 = vunpack.c.l.b16 %v1550
      %v1629 = vunpack.c.h.b16 %v1550
      %v1630 = vunpack.c.l.b16 %v1551
      %v1631 = vunpack.c.h.b16 %v1551
      %v1632 = vunpack.c.l.b16 %v1552
      %v1633 = vunpack.c.h.b16 %v1552
      %v1634 = vunpack.c.l.b16 %v1553
      %v1635 = vunpack.c.h.b16 %v1553
      %v1636 = vunpack.c.l.b16 %v1554
      %v1637 = vunpack.c.h.b16 %v1554
      %v1638 = vunpack.c.l.b16 %v1555
      %v1639 = vunpack.c.h.b16 %v1555
      %v1640 = vunpack.c.l.b16 %v1556
      %v1641 = vunpack.c.h.b16 %v1556
      %v1642 = vunpack.c.l.b16 %v1557
      %v1643 = vunpack.c.h.b16 %v1557
      %v1644 = vunpack.c.l.b16 %v1558
      %v1645 = vunpack.c.h.b16 %v1558
      %v1646 = vunpack.c.l.b16 %v1559
      %v1647 = vunpack.c.h.b16 %v1559
      %v1648 = vunpack.c.l.b16 %v1560
      %v1649 = vunpack.c.h.b16 %v1560
      %v1650 = vunpack.c.l.b16 %v1561
      %v1651 = vunpack.c.h.b16 %v1561
      %v1652 = vunpack.c.l.b16 %v1562
      %v1653 = vunpack.c.h.b16 %v1562
      %v1654 = vunpack.c.l.b16 %v1563
      %v1655 = vunpack.c.h.b16 %v1563
      %v1656 = vunpack.c.l.b16 %v1564
      %v1657 = vunpack.c.h.b16 %v1564
      %v1658 = vunpack.c.l.b16 %v1565
      %v1659 = vunpack.c.h.b16 %v1565
      %v1660 = vunpack.c.l.b16 %v1566
      %v1661 = vunpack.c.h.b16 %v1566
      %v1662 = vunpack.c.l.b16 %v1567
      %v1663 = vunpack.c.h.b16 %v1567
      %v1664 = vpack.c.b16 %v1602, %v1600
      %v1665 = vpack.c.b16 %v1603, %v1601
      %v1666 = vpack.c.b16 %v1606, %v1604
      %v1667 = vpack.c.b16 %v1607, %v1605
      %v1668 = vpack.c.b16 %v1610, %v1608
      %v1669 = vpack.c.b16 %v1611, %v1609
      %v1670 = vpack.c.b16 %v1614, %v1612
      %v1671 = vpack.c.b16 %v1615, %v1613
      %v1672 = vpack.c.b16 %v1618, %v1616
      %v1673 = vpack.c.b16 %v1619, %v1617
      %v1674 = vpack.c.b16 %v1622, %v1620
      %v1675 = vpack.c.b16 %v1623, %v1621
      %v1676 = vpack.c.b16 %v1626, %v1624
      %v1677 = vpack.c.b16 %v1627, %v1625
      %v1678 = vpack.c.b16 %v1630, %v1628
      %v1679 = vpack.c.b16 %v1631, %v1629
      %v1680 = vpack.c.b16 %v1634, %v1632
      %v1681 = vpack.c.b16 %v1635, %v1633
      %v1682 = vpack.c.b16 %v1638, %v1636
      %v1683 = vpack.c.b16 %v1639, %v1637
      %v1684 = vpack.c.b16 %v1642, %v1640
      %v1685 = vpack.c.b16 %v1643, %v1641
      %v1686 = vpack.c.b16 %v1646, %v1644
      %v1687 = vpack.c.b16 %v1647, %v1645
      %v1688 = vpack.c.b16 %v1650, %v1648
      %v1689 = vpack.c.b16 %v1651, %v1649
      %v1690 = vpack.c.b16 %v1654, %v1652
      %v1691 = vpack.c.b16 %v1655, %v1653
      %v1692 = vpack.c.b16 %v1658, %v1656
      %v1693 = vpack.c.b16 %v1659, %v1657
      %v1694 = vpack.c.b16 %v1662, %v1660
      %v1695 = vpack.c.b16 %v1663, %v1661
      %vm1696 = vsmask.f32 6400
      %v1698 = vshrl.u32 %v1664, 16
      %v1700 = vrot.slane %v1698, 1
      %v1701 = vshll.u32 %v1664, 16
      %v1703 = vrot.slane %v1701, 2
      %v1704 = vor.u32 %v1700, %v1703
      %v1706 = vshrl.u32 %v1666, 16
      %v1708 = vrot.slane %v1706, 1
      %v1709 = vshll.u32 %v1666, 16
      %v1711 = vrot.slane %v1709, 2
      %v1712 = vor.u32 %v1708, %v1711
      %v1713 = vsel %vm1696, %v1704, %v1712
      %v1715 = vshrl.u32 %v1665, 16
      %v1717 = vrot.slane %v1715, 1
      %v1718 = vshll.u32 %v1665, 16
      %v1720 = vrot.slane %v1718, 2
      %v1721 = vor.u32 %v1717, %v1720
      %v1723 = vshrl.u32 %v1667, 16
      %v1725 = vrot.slane %v1723, 1
      %v1726 = vshll.u32 %v1667, 16
      %v1728 = vrot.slane %v1726, 2
      %v1729 = vor.u32 %v1725, %v1728
      %v1730 = vsel %vm1696, %v1721, %v1729
      %v1732 = vshrl.u32 %v1668, 16
      %v1734 = vrot.slane %v1732, 1
      %v1735 = vshll.u32 %v1668, 16
      %v1737 = vrot.slane %v1735, 2
      %v1738 = vor.u32 %v1734, %v1737
      %v1739 = vsel %vm1696, %v1712, %v1738
      %v1741 = vshrl.u32 %v1669, 16
      %v1743 = vrot.slane %v1741, 1
      %v1744 = vshll.u32 %v1669, 16
      %v1746 = vrot.slane %v1744, 2
      %v1747 = vor.u32 %v1743, %v1746
      %v1748 = vsel %vm1696, %v1729, %v1747
      %v1750 = vshrl.u32 %v1670, 16
      %v1752 = vrot.slane %v1750, 1
      %v1753 = vshll.u32 %v1670, 16
      %v1755 = vrot.slane %v1753, 2
      %v1756 = vor.u32 %v1752, %v1755
      %v1757 = vsel %vm1696, %v1738, %v1756
      %v1759 = vshrl.u32 %v1671, 16
      %v1761 = vrot.slane %v1759, 1
      %v1762 = vshll.u32 %v1671, 16
      %v1764 = vrot.slane %v1762, 2
      %v1765 = vor.u32 %v1761, %v1764
      %v1766 = vsel %vm1696, %v1747, %v1765
      %v1768 = vshrl.u32 %v1672, 16
      %v1770 = vrot.slane %v1768, 1
      %v1771 = vshll.u32 %v1672, 16
      %v1773 = vrot.slane %v1771, 2
      %v1774 = vor.u32 %v1770, %v1773
      %v1775 = vsel %vm1696, %v1756, %v1774
      %v1777 = vshrl.u32 %v1673, 16
      %v1779 = vrot.slane %v1777, 1
      %v1780 = vshll.u32 %v1673, 16
      %v1782 = vrot.slane %v1780, 2
      %v1783 = vor.u32 %v1779, %v1782
      %v1784 = vsel %vm1696, %v1765, %v1783
      %v1786 = vshrl.u32 %v1674, 16
      %v1788 = vrot.slane %v1786, 1
      %v1789 = vshll.u32 %v1674, 16
      %v1791 = vrot.slane %v1789, 2
      %v1792 = vor.u32 %v1788, %v1791
      %v1793 = vsel %vm1696, %v1774, %v1792
      %v1795 = vshrl.u32 %v1675, 16
      %v1797 = vrot.slane %v1795, 1
      %v1798 = vshll.u32 %v1675, 16
      %v1800 = vrot.slane %v1798, 2
      %v1801 = vor.u32 %v1797, %v1800
      %v1802 = vsel %vm1696, %v1783, %v1801
      %v1804 = vshrl.u32 %v1676, 16
      %v1806 = vrot.slane %v1804, 1
      %v1807 = vshll.u32 %v1676, 16
      %v1809 = vrot.slane %v1807, 2
      %v1810 = vor.u32 %v1806, %v1809
      %v1811 = vsel %vm1696, %v1792, %v1810
      %v1813 = vshrl.u32 %v1677, 16
      %v1815 = vrot.slane %v1813, 1
      %v1816 = vshll.u32 %v1677, 16
      %v1818 = vrot.slane %v1816, 2
      %v1819 = vor.u32 %v1815, %v1818
      %v1820 = vsel %vm1696, %v1801, %v1819
      %v1822 = vshrl.u32 %v1678, 16
      %v1824 = vrot.slane %v1822, 1
      %v1825 = vshll.u32 %v1678, 16
      %v1827 = vrot.slane %v1825, 2
      %v1828 = vor.u32 %v1824, %v1827
      %v1829 = vsel %vm1696, %v1810, %v1828
      %v1831 = vshrl.u32 %v1679, 16
      %v1833 = vrot.slane %v1831, 1
      %v1834 = vshll.u32 %v1679, 16
      %v1836 = vrot.slane %v1834, 2
      %v1837 = vor.u32 %v1833, %v1836
      %v1838 = vsel %vm1696, %v1819, %v1837
      %v1840 = vshrl.u32 %v1680, 16
      %v1842 = vrot.slane %v1840, 1
      %v1843 = vshll.u32 %v1680, 16
      %v1845 = vrot.slane %v1843, 2
      %v1846 = vor.u32 %v1842, %v1845
      %v1847 = vsel %vm1696, %v1828, %v1846
      %v1849 = vshrl.u32 %v1681, 16
      %v1851 = vrot.slane %v1849, 1
      %v1852 = vshll.u32 %v1681, 16
      %v1854 = vrot.slane %v1852, 2
      %v1855 = vor.u32 %v1851, %v1854
      %v1856 = vsel %vm1696, %v1837, %v1855
      %v1858 = vshrl.u32 %v1682, 16
      %v1860 = vrot.slane %v1858, 1
      %v1861 = vshll.u32 %v1682, 16
      %v1863 = vrot.slane %v1861, 2
      %v1864 = vor.u32 %v1860, %v1863
      %v1865 = vsel %vm1696, %v1846, %v1864
      %v1867 = vshrl.u32 %v1683, 16
      %v1869 = vrot.slane %v1867, 1
      %v1870 = vshll.u32 %v1683, 16
      %v1872 = vrot.slane %v1870, 2
      %v1873 = vor.u32 %v1869, %v1872
      %v1874 = vsel %vm1696, %v1855, %v1873
      %v1876 = vshrl.u32 %v1684, 16
      %v1878 = vrot.slane %v1876, 1
      %v1879 = vshll.u32 %v1684, 16
      %v1881 = vrot.slane %v1879, 2
      %v1882 = vor.u32 %v1878, %v1881
      %v1883 = vsel %vm1696, %v1864, %v1882
      %v1885 = vshrl.u32 %v1685, 16
      %v1887 = vrot.slane %v1885, 1
      %v1888 = vshll.u32 %v1685, 16
      %v1890 = vrot.slane %v1888, 2
      %v1891 = vor.u32 %v1887, %v1890
      %v1892 = vsel %vm1696, %v1873, %v1891
      %v1894 = vshrl.u32 %v1686, 16
      %v1896 = vrot.slane %v1894, 1
      %v1897 = vshll.u32 %v1686, 16
      %v1899 = vrot.slane %v1897, 2
      %v1900 = vor.u32 %v1896, %v1899
      %v1901 = vsel %vm1696, %v1882, %v1900
      %v1903 = vshrl.u32 %v1687, 16
      %v1905 = vrot.slane %v1903, 1
      %v1906 = vshll.u32 %v1687, 16
      %v1908 = vrot.slane %v1906, 2
      %v1909 = vor.u32 %v1905, %v1908
      %v1910 = vsel %vm1696, %v1891, %v1909
      %v1912 = vshrl.u32 %v1688, 16
      %v1914 = vrot.slane %v1912, 1
      %v1915 = vshll.u32 %v1688, 16
      %v1917 = vrot.slane %v1915, 2
      %v1918 = vor.u32 %v1914, %v1917
      %v1919 = vsel %vm1696, %v1900, %v1918
      %v1921 = vshrl.u32 %v1689, 16
      %v1923 = vrot.slane %v1921, 1
      %v1924 = vshll.u32 %v1689, 16
      %v1926 = vrot.slane %v1924, 2
      %v1927 = vor.u32 %v1923, %v1926
      %v1928 = vsel %vm1696, %v1909, %v1927
      %v1930 = vshrl.u32 %v1690, 16
      %v1932 = vrot.slane %v1930, 1
      %v1933 = vshll.u32 %v1690, 16
      %v1935 = vrot.slane %v1933, 2
      %v1936 = vor.u32 %v1932, %v1935
      %v1937 = vsel %vm1696, %v1918, %v1936
      %v1939 = vshrl.u32 %v1691, 16
      %v1941 = vrot.slane %v1939, 1
      %v1942 = vshll.u32 %v1691, 16
      %v1944 = vrot.slane %v1942, 2
      %v1945 = vor.u32 %v1941, %v1944
      %v1946 = vsel %vm1696, %v1927, %v1945
      %v1948 = vshrl.u32 %v1692, 16
      %v1950 = vrot.slane %v1948, 1
      %v1951 = vshll.u32 %v1692, 16
      %v1953 = vrot.slane %v1951, 2
      %v1954 = vor.u32 %v1950, %v1953
      %v1955 = vsel %vm1696, %v1936, %v1954
      %v1957 = vshrl.u32 %v1693, 16
      %v1959 = vrot.slane %v1957, 1
      %v1960 = vshll.u32 %v1693, 16
      %v1962 = vrot.slane %v1960, 2
      %v1963 = vor.u32 %v1959, %v1962
      %v1964 = vsel %vm1696, %v1945, %v1963
      %v1966 = vshrl.u32 %v1694, 16
      %v1968 = vrot.slane %v1966, 1
      %v1969 = vshll.u32 %v1694, 16
      %v1971 = vrot.slane %v1969, 2
      %v1972 = vor.u32 %v1968, %v1971
      %v1973 = vsel %vm1696, %v1954, %v1972
      %v1975 = vshrl.u32 %v1695, 16
      %v1977 = vrot.slane %v1975, 1
      %v1978 = vshll.u32 %v1695, 16
      %v1980 = vrot.slane %v1978, 2
      %v1981 = vor.u32 %v1977, %v1980
      %v1982 = vsel %vm1696, %v1963, %v1981
      %1983 = vrot.lane.b32.xlu0 %v1713, 96
      %v1984 = vpop.permute.xlu0 %1983
      %1985 = vrot.lane.b32.xlu0 %v1730, 96
      %v1986 = vpop.permute.xlu0 %1985
      %1987 = vrot.lane.b32.xlu0 %v1739, 96
      %v1988 = vpop.permute.xlu0 %1987
      %1989 = vrot.lane.b32.xlu0 %v1748, 96
      %v1990 = vpop.permute.xlu0 %1989
      %1991 = vrot.lane.b32.xlu0 %v1757, 96
      %v1992 = vpop.permute.xlu0 %1991
      %1993 = vrot.lane.b32.xlu0 %v1766, 96
      %v1994 = vpop.permute.xlu0 %1993
      %1995 = vrot.lane.b32.xlu0 %v1775, 96
      %v1996 = vpop.permute.xlu0 %1995
      %1997 = vrot.lane.b32.xlu0 %v1784, 96
      %v1998 = vpop.permute.xlu0 %1997
      %1999 = vrot.lane.b32.xlu0 %v1793, 96
      %v2000 = vpop.permute.xlu0 %1999
      %2001 = vrot.lane.b32.xlu0 %v1802, 96
      %v2002 = vpop.permute.xlu0 %2001
      %2003 = vrot.lane.b32.xlu0 %v1811, 96
      %v2004 = vpop.permute.xlu0 %2003
      %2005 = vrot.lane.b32.xlu0 %v1820, 96
      %v2006 = vpop.permute.xlu0 %2005
      %2007 = vrot.lane.b32.xlu0 %v1829, 96
      %v2008 = vpop.permute.xlu0 %2007
      %2009 = vrot.lane.b32.xlu0 %v1838, 96
      %v2010 = vpop.permute.xlu0 %2009
      %2011 = vrot.lane.b32.xlu0 %v1847, 96
      %v2012 = vpop.permute.xlu0 %2011
      %2013 = vrot.lane.b32.xlu0 %v1856, 96
      %v2014 = vpop.permute.xlu0 %2013
      %2015 = vrot.lane.b32.xlu0 %v1865, 96
      %v2016 = vpop.permute.xlu0 %2015
      %2017 = vrot.lane.b32.xlu0 %v1874, 96
      %v2018 = vpop.permute.xlu0 %2017
      %2019 = vrot.lane.b32.xlu0 %v1883, 96
      %v2020 = vpop.permute.xlu0 %2019
      %2021 = vrot.lane.b32.xlu0 %v1892, 96
      %v2022 = vpop.permute.xlu0 %2021
      %2023 = vrot.lane.b32.xlu0 %v1901, 96
      %v2024 = vpop.permute.xlu0 %2023
      %2025 = vrot.lane.b32.xlu0 %v1910, 96
      %v2026 = vpop.permute.xlu0 %2025
      %2027 = vrot.lane.b32.xlu0 %v1919, 96
      %v2028 = vpop.permute.xlu0 %2027
      %2029 = vrot.lane.b32.xlu0 %v1928, 96
      %v2030 = vpop.permute.xlu0 %2029
      %2031 = vrot.lane.b32.xlu0 %v1937, 96
      %v2032 = vpop.permute.xlu0 %2031
      %2033 = vrot.lane.b32.xlu0 %v1946, 96
      %v2034 = vpop.permute.xlu0 %2033
      %2035 = vrot.lane.b32.xlu0 %v1955, 96
      %v2036 = vpop.permute.xlu0 %2035
      %2037 = vrot.lane.b32.xlu0 %v1964, 96
      %v2038 = vpop.permute.xlu0 %2037
      %2039 = vrot.lane.b32.xlu0 %v1973, 96
      %v2040 = vpop.permute.xlu0 %2039
      %2041 = vrot.lane.b32.xlu0 %v1982, 96
      %v2042 = vpop.permute.xlu0 %2041
      %2043 = vrot.lane.b32.xlu0 %v1972, 96
      %v2044 = vpop.permute.xlu0 %2043
      %2045 = vrot.lane.b32.xlu0 %v1981, 96
      %v2046 = vpop.permute.xlu0 %2045
      %vm2047 = vcmask 785408
      %v2048 = vsel %vm2047, %v1984, %v1986
      %v2049 = vsel %vm2047, %v1988, %v1990
      %v2050 = vsel %vm2047, %v1992, %v1994
      %v2051 = vsel %vm2047, %v1996, %v1998
      %v2052 = vsel %vm2047, %v2000, %v2002
      %v2053 = vsel %vm2047, %v2004, %v2006
      %v2054 = vsel %vm2047, %v2008, %v2010
      %v2055 = vsel %vm2047, %v2012, %v2014
      %v2056 = vsel %vm2047, %v2016, %v2018
      %v2057 = vsel %vm2047, %v2020, %v2022
      %v2058 = vsel %vm2047, %v2024, %v2026
      %v2059 = vsel %vm2047, %v2028, %v2030
      %v2060 = vsel %vm2047, %v2032, %v2034
      %v2061 = vsel %vm2047, %v2036, %v2038
      %v2062 = vsel %vm2047, %v2040, %v2042
      %v2063 = vsel %vm2047, %v2044, %v2046
      %vm2096 = vcmask 1048320
      %2097 = vst.msk [vmem:[#allocation2 + $0x18] sm:$0xff] %vm2096, %v1984
      %2098 = vst [vmem:[#allocation2 + $0x20] sm:$0xff] %v2048
      %2099 = vst.msk [vmem:[#allocation2 + $0x40] sm:$0xff] %vm2096, %v1988
      %2100 = vst [vmem:[#allocation2 + $0x48] sm:$0xff] %v2049
      %2101 = vst.msk [vmem:[#allocation2 + $0x68] sm:$0xff] %vm2096, %v1992
      %2102 = vst [vmem:[#allocation2 + $0x70] sm:$0xff] %v2050
      %2103 = vst.msk [vmem:[#allocation2 + $0x90] sm:$0xff] %vm2096, %v1996
      %2104 = vst [vmem:[#allocation2 + $0x98] sm:$0xff] %v2051
      %2105 = vst.msk [vmem:[#allocation2 + $0xb8] sm:$0xff] %vm2096, %v2000
      %2106 = vst [vmem:[#allocation2 + $0xc0] sm:$0xff] %v2052
      %2107 = vst.msk [vmem:[#allocation2 + $0xe0] sm:$0xff] %vm2096, %v2004
      %2108 = vst [vmem:[#allocation2 + $0xe8] sm:$0xff] %v2053
      %2109 = vst.msk [vmem:[#allocation2 + $0x108] sm:$0xff] %vm2096, %v2008
      %2110 = vst [vmem:[#allocation2 + $0x110] sm:$0xff] %v2054
      %2111 = vst.msk [vmem:[#allocation2 + $0x130] sm:$0xff] %vm2096, %v2012
      %2112 = vst [vmem:[#allocation2 + $0x138] sm:$0xff] %v2055
      %2113 = vst.msk [vmem:[#allocation2 + $0x158] sm:$0xff] %vm2096, %v2016
      %2114 = vst [vmem:[#allocation2 + $0x160] sm:$0xff] %v2056
      %2115 = vst.msk [vmem:[#allocation2 + $0x180] sm:$0xff] %vm2096, %v2020
      %2116 = vst [vmem:[#allocation2 + $0x188] sm:$0xff] %v2057
      %2117 = vst.msk [vmem:[#allocation2 + $0x1a8] sm:$0xff] %vm2096, %v2024
      %2118 = vst [vmem:[#allocation2 + $0x1b0] sm:$0xff] %v2058
      %2119 = vst.msk [vmem:[#allocation2 + $0x1d0] sm:$0xff] %vm2096, %v2028
      %2120 = vst [vmem:[#allocation2 + $0x1d8] sm:$0xff] %v2059
      %2121 = vst.msk [vmem:[#allocation2 + $0x1f8] sm:$0xff] %vm2096, %v2032
      %2122 = vst [vmem:[#allocation2 + $0x200] sm:$0xff] %v2060
      %2123 = vst.msk [vmem:[#allocation2 + $0x220] sm:$0xff] %vm2096, %v2036
      %2124 = vst [vmem:[#allocation2 + $0x228] sm:$0xff] %v2061
      %2125 = vst.msk [vmem:[#allocation2 + $0x248] sm:$0xff] %vm2096, %v2040
      %2126 = vst [vmem:[#allocation2 + $0x250] sm:$0xff] %v2062
      %vm2127 = vcmask 1047296
      %vm2128 = vmand %vm2127, %vm1696
      %v2129 = vld [vmem:[#allocation2 + $0x270] sm:$0x7f]
      %v2130 = vsel %vm2128, %v2044, %v2129
      %2131 = vst [vmem:[#allocation2 + $0x270] sm:$0x7f] %v2130
      %vm2132 = vmand %vm1306, %vm1696
      %v2133 = vld [vmem:[#allocation2 + $0x278] sm:$0x7f]
      %v2134 = vsel %vm2132, %v2063, %v2133
      %2135 = vst [vmem:[#allocation2 + $0x278] sm:$0x7f] %v2134
      %v2136 = vld [vmem:[%s304] sm:$0x33]
      %v2138 = vunpack.c.l.b16 %v2136
      %v2139 = vunpack.c.h.b16 %v2136
      %v2140 = vpack.c.b16 %v2138, %v2138
      %v2141 = vpack.c.b16 %v2139, %v2139
      %v2143 = vshrl.u32 %v2140, 16
      %v2145 = vrot.slane %v2143, 1
      %v2146 = vshll.u32 %v2140, 16
      %v2148 = vrot.slane %v2146, 2
      %v2149 = vor.u32 %v2145, %v2148
      %v2151 = vshrl.u32 %v2141, 16
      %v2153 = vrot.slane %v2151, 1
      %v2154 = vshll.u32 %v2141, 16
      %v2156 = vrot.slane %v2154, 2
      %v2157 = vor.u32 %v2153, %v2156
      %2158 = vrot.lane.b32.xlu0 %v2149, 96
      %v2159 = vpop.permute.xlu0 %2158
      %2160 = vrot.lane.b32.xlu0 %v2157, 96
      %v2161 = vpop.permute.xlu0 %2160
      %v2162 = vsel %vm2047, %v2159, %v2161
      %vm2165 = vcmask 1048326
      %vm2166 = vsmask.f32 7962
      %vm2167 = vmand %vm2165, %vm2166
      %v2168 = vld [vmem:[#allocation2 + $0x270] sm:$0xc0]
      %v2169 = vsel %vm2167, %v2159, %v2168
      %2170 = vst [vmem:[#allocation2 + $0x270] sm:$0xc0] %v2169
      %vm2171 = vcmask 1047558
      %vm2172 = vmand %vm2171, %vm2166
      %v2173 = vld [vmem:[#allocation2 + $0x278] sm:$0xc0]
      %v2174 = vsel %vm2172, %v2162, %v2173
      %2175 = vst [vmem:[#allocation2 + $0x278] sm:$0xc0] %v2174
      %v2176 = vld [vmem:[#allocation2] sm:$0xff]
      %v2177 = vld [vmem:[#allocation2 + $0x8] sm:$0xff]
      %v2178 = vld [vmem:[#allocation2 + $0x10] sm:$0xff]
      %v2179 = vld [vmem:[#allocation2 + $0x18] sm:$0xff]
      %v2180 = vld [vmem:[#allocation2 + $0x20] sm:$0xff]
      %v2181 = vld [vmem:[#allocation2 + $0x28] sm:$0xff]
      %v2182 = vld [vmem:[#allocation2 + $0x30] sm:$0xff]
      %v2183 = vld [vmem:[#allocation2 + $0x38] sm:$0xff]
      %v2184 = vld [vmem:[#allocation2 + $0x40] sm:$0xff]
      %v2185 = vld [vmem:[#allocation2 + $0x48] sm:$0xff]
      %v2186 = vld [vmem:[#allocation2 + $0x50] sm:$0xff]
      %v2187 = vld [vmem:[#allocation2 + $0x58] sm:$0xff]
      %v2188 = vld [vmem:[#allocation2 + $0x60] sm:$0xff]
      %v2189 = vld [vmem:[#allocation2 + $0x68] sm:$0xff]
      %v2190 = vld [vmem:[#allocation2 + $0x70] sm:$0xff]
      %v2191 = vld [vmem:[#allocation2 + $0x78] sm:$0xff]
      %v2192 = vld [vmem:[#allocation2 + $0x80] sm:$0xff]
      %v2193 = vld [vmem:[#allocation2 + $0x88] sm:$0xff]
      %v2194 = vld [vmem:[#allocation2 + $0x90] sm:$0xff]
      %v2195 = vld [vmem:[#allocation2 + $0x98] sm:$0xff]
      %v2196 = vld [vmem:[#allocation2 + $0xa0] sm:$0xff]
      %v2197 = vld [vmem:[#allocation2 + $0xa8] sm:$0xff]
      %v2198 = vld [vmem:[#allocation2 + $0xb0] sm:$0xff]
      %v2199 = vld [vmem:[#allocation2 + $0xb8] sm:$0xff]
      %v2200 = vld [vmem:[#allocation2 + $0xc0] sm:$0xff]
      %v2201 = vld [vmem:[#allocation2 + $0xc8] sm:$0xff]
      %v2202 = vld [vmem:[#allocation2 + $0xd0] sm:$0xff]
      %v2203 = vld [vmem:[#allocation2 + $0xd8] sm:$0xff]
      %v2204 = vld [vmem:[#allocation2 + $0xe0] sm:$0xff]
      %v2205 = vld [vmem:[#allocation2 + $0xe8] sm:$0xff]
      %v2206 = vld [vmem:[#allocation2 + $0xf0] sm:$0xff]
      %v2207 = vld [vmem:[#allocation2 + $0xf8] sm:$0xff]
      %v2208 = vld [vmem:[#allocation2 + $0x100] sm:$0xff]
      %v2209 = vld [vmem:[#allocation2 + $0x108] sm:$0xff]
      %v2210 = vld [vmem:[#allocation2 + $0x110] sm:$0xff]
      %v2211 = vld [vmem:[#allocation2 + $0x118] sm:$0xff]
      %v2212 = vld [vmem:[#allocation2 + $0x120] sm:$0xff]
      %v2213 = vld [vmem:[#allocation2 + $0x128] sm:$0xff]
      %v2214 = vld [vmem:[#allocation2 + $0x130] sm:$0xff]
      %v2215 = vld [vmem:[#allocation2 + $0x138] sm:$0xff]
      %v2216 = vld [vmem:[#allocation2 + $0x140] sm:$0xff]
      %v2217 = vld [vmem:[#allocation2 + $0x148] sm:$0xff]
      %v2218 = vld [vmem:[#allocation2 + $0x150] sm:$0xff]
      %v2219 = vld [vmem:[#allocation2 + $0x158] sm:$0xff]
      %v2220 = vld [vmem:[#allocation2 + $0x160] sm:$0xff]
      %v2221 = vld [vmem:[#allocation2 + $0x168] sm:$0xff]
      %v2222 = vld [vmem:[#allocation2 + $0x170] sm:$0xff]
      %v2223 = vld [vmem:[#allocation2 + $0x178] sm:$0xff]
      %v2224 = vld [vmem:[#allocation2 + $0x180] sm:$0xff]
      %v2225 = vld [vmem:[#allocation2 + $0x188] sm:$0xff]
      %v2226 = vld [vmem:[#allocation2 + $0x190] sm:$0xff]
      %v2227 = vld [vmem:[#allocation2 + $0x198] sm:$0xff]
      %v2228 = vld [vmem:[#allocation2 + $0x1a0] sm:$0xff]
      %v2229 = vld [vmem:[#allocation2 + $0x1a8] sm:$0xff]
      %v2230 = vld [vmem:[#allocation2 + $0x1b0] sm:$0xff]
      %v2231 = vld [vmem:[#allocation2 + $0x1b8] sm:$0xff]
      %v2232 = vld [vmem:[#allocation2 + $0x1c0] sm:$0xff]
      %v2233 = vld [vmem:[#allocation2 + $0x1c8] sm:$0xff]
      %v2234 = vld [vmem:[#allocation2 + $0x1d0] sm:$0xff]
      %v2235 = vld [vmem:[#allocation2 + $0x1d8] sm:$0xff]
      %v2236 = vld [vmem:[#allocation2 + $0x1e0] sm:$0xff]
      %v2237 = vld [vmem:[#allocation2 + $0x1e8] sm:$0xff]
      %v2238 = vld [vmem:[#allocation2 + $0x1f0] sm:$0xff]
      %v2239 = vld [vmem:[#allocation2 + $0x1f8] sm:$0xff]
      %v2240 = vld [vmem:[#allocation2 + $0x200] sm:$0xff]
      %v2241 = vld [vmem:[#allocation2 + $0x208] sm:$0xff]
      %v2242 = vld [vmem:[#allocation2 + $0x210] sm:$0xff]
      %v2243 = vld [vmem:[#allocation2 + $0x218] sm:$0xff]
      %v2244 = vld [vmem:[#allocation2 + $0x220] sm:$0xff]
      %v2245 = vld [vmem:[#allocation2 + $0x228] sm:$0xff]
      %v2246 = vld [vmem:[#allocation2 + $0x230] sm:$0xff]
      %v2247 = vld [vmem:[#allocation2 + $0x238] sm:$0xff]
      %v2248 = vld [vmem:[#allocation2 + $0x240] sm:$0xff]
      %v2249 = vld [vmem:[#allocation2 + $0x248] sm:$0xff]
      %v2250 = vld [vmem:[#allocation2 + $0x250] sm:$0xff]
      %v2251 = vld [vmem:[#allocation2 + $0x258] sm:$0xff]
      %v2252 = vld [vmem:[#allocation2 + $0x260] sm:$0xff]
      %v2253 = vld [vmem:[#allocation2 + $0x268] sm:$0xff]
      %v2254 = vld [vmem:[#allocation2 + $0x270] sm:$0xff]
      %v2255 = vld [vmem:[#allocation2 + $0x278] sm:$0xff]
      %v2256 = vld [vmem:[%s2] sm:$0xff]
      %v2257 = vld [vmem:[%s2 + $0x8] sm:$0xff]
      %v2258 = vld [vmem:[%s2 + $0x10] sm:$0xff]
      %v2259 = vld [vmem:[%s2 + $0x18] sm:$0xff]
      %v2260 = vld [vmem:[%s2 + $0x20] sm:$0xff]
      %v2261 = vld [vmem:[%s2 + $0x28] sm:$0xff]
      %v2262 = vld [vmem:[%s2 + $0x30] sm:$0xff]
      %v2263 = vld [vmem:[%s2 + $0x38] sm:$0xff]
      %v2264 = vld [vmem:[%s2 + $0x40] sm:$0xff]
      %v2265 = vld [vmem:[%s2 + $0x48] sm:$0xff]
      %v2266 = vld [vmem:[%s2 + $0x50] sm:$0xff]
      %v2267 = vld [vmem:[%s2 + $0x58] sm:$0xff]
      %v2268 = vld [vmem:[%s2 + $0x60] sm:$0xff]
      %v2269 = vld [vmem:[%s2 + $0x68] sm:$0xff]
      %v2270 = vld [vmem:[%s2 + $0x70] sm:$0xff]
      %v2271 = vld [vmem:[%s2 + $0x78] sm:$0xff]
      %v2272 = vld [vmem:[%s2 + $0x80] sm:$0xff]
      %v2273 = vld [vmem:[%s2 + $0x88] sm:$0xff]
      %v2274 = vld [vmem:[%s2 + $0x90] sm:$0xff]
      %v2275 = vld [vmem:[%s2 + $0x98] sm:$0xff]
      %v2276 = vld [vmem:[%s2 + $0xa0] sm:$0xff]
      %v2277 = vld [vmem:[%s2 + $0xa8] sm:$0xff]
      %v2278 = vld [vmem:[%s2 + $0xb0] sm:$0xff]
      %v2279 = vld [vmem:[%s2 + $0xb8] sm:$0xff]
      %v2280 = vld [vmem:[%s2 + $0xc0] sm:$0xff]
      %v2281 = vld [vmem:[%s2 + $0xc8] sm:$0xff]
      %v2282 = vld [vmem:[%s2 + $0xd0] sm:$0xff]
      %v2283 = vld [vmem:[%s2 + $0xd8] sm:$0xff]
      %v2284 = vld [vmem:[%s2 + $0xe0] sm:$0xff]
      %v2285 = vld [vmem:[%s2 + $0xe8] sm:$0xff]
      %v2286 = vld [vmem:[%s2 + $0xf0] sm:$0xff]
      %v2287 = vld [vmem:[%s2 + $0xf8] sm:$0xff]
      %v2288 = vld [vmem:[%s2 + $0x100] sm:$0xff]
      %v2289 = vld [vmem:[%s2 + $0x108] sm:$0xff]
      %v2290 = vld [vmem:[%s2 + $0x110] sm:$0xff]
      %v2291 = vld [vmem:[%s2 + $0x118] sm:$0xff]
      %v2292 = vld [vmem:[%s2 + $0x120] sm:$0xff]
      %v2293 = vld [vmem:[%s2 + $0x128] sm:$0xff]
      %v2294 = vld [vmem:[%s2 + $0x130] sm:$0xff]
      %v2295 = vld [vmem:[%s2 + $0x138] sm:$0xff]
      %v2296 = vld [vmem:[%s2 + $0x140] sm:$0xff]
      %v2297 = vld [vmem:[%s2 + $0x148] sm:$0xff]
      %v2298 = vld [vmem:[%s2 + $0x150] sm:$0xff]
      %v2299 = vld [vmem:[%s2 + $0x158] sm:$0xff]
      %v2300 = vld [vmem:[%s2 + $0x160] sm:$0xff]
      %v2301 = vld [vmem:[%s2 + $0x168] sm:$0xff]
      %v2302 = vld [vmem:[%s2 + $0x170] sm:$0xff]
      %v2303 = vld [vmem:[%s2 + $0x178] sm:$0xff]
      %v2304 = vld [vmem:[%s2 + $0x180] sm:$0xff]
      %v2305 = vld [vmem:[%s2 + $0x188] sm:$0xff]
      %v2306 = vld [vmem:[%s2 + $0x190] sm:$0xff]
      %v2307 = vld [vmem:[%s2 + $0x198] sm:$0xff]
      %v2308 = vld [vmem:[%s2 + $0x1a0] sm:$0xff]
      %v2309 = vld [vmem:[%s2 + $0x1a8] sm:$0xff]
      %v2310 = vld [vmem:[%s2 + $0x1b0] sm:$0xff]
      %v2311 = vld [vmem:[%s2 + $0x1b8] sm:$0xff]
      %v2312 = vld [vmem:[%s2 + $0x1c0] sm:$0xff]
      %v2313 = vld [vmem:[%s2 + $0x1c8] sm:$0xff]
      %v2314 = vld [vmem:[%s2 + $0x1d0] sm:$0xff]
      %v2315 = vld [vmem:[%s2 + $0x1d8] sm:$0xff]
      %v2316 = vld [vmem:[%s2 + $0x1e0] sm:$0xff]
      %v2317 = vld [vmem:[%s2 + $0x1e8] sm:$0xff]
      %v2318 = vld [vmem:[%s2 + $0x1f0] sm:$0xff]
      %v2319 = vld [vmem:[%s2 + $0x1f8] sm:$0xff]
      %v2320 = vld [vmem:[%s2 + $0x200] sm:$0xff]
      %v2321 = vld [vmem:[%s2 + $0x208] sm:$0xff]
      %v2322 = vld [vmem:[%s2 + $0x210] sm:$0xff]
      %v2323 = vld [vmem:[%s2 + $0x218] sm:$0xff]
      %v2324 = vld [vmem:[%s2 + $0x220] sm:$0xff]
      %v2325 = vld [vmem:[%s2 + $0x228] sm:$0xff]
      %v2326 = vld [vmem:[%s2 + $0x230] sm:$0xff]
      %v2327 = vld [vmem:[%s2 + $0x238] sm:$0xff]
      %v2328 = vld [vmem:[%s2 + $0x240] sm:$0xff]
      %v2329 = vld [vmem:[%s2 + $0x248] sm:$0xff]
      %v2330 = vld [vmem:[%s2 + $0x250] sm:$0xff]
      %v2331 = vld [vmem:[%s2 + $0x258] sm:$0xff]
      %v2332 = vld [vmem:[%s2 + $0x260] sm:$0xff]
      %v2333 = vld [vmem:[%s2 + $0x268] sm:$0xff]
      %v2334 = vld [vmem:[%s2 + $0x270] sm:$0xff]
      %v2335 = vld [vmem:[%s2 + $0x278] sm:$0xff]
      %v2336 = vld [vmem:[%s2 + $0x280] sm:$0xff]
      %v2337 = vld [vmem:[%s2 + $0x288] sm:$0xff]
      %v2338 = vld [vmem:[%s2 + $0x290] sm:$0xff]
      %v2339 = vld [vmem:[%s2 + $0x298] sm:$0xff]
      %v2340 = vld [vmem:[%s2 + $0x2a0] sm:$0xff]
      %v2341 = vld [vmem:[%s2 + $0x2a8] sm:$0xff]
      %v2342 = vld [vmem:[%s2 + $0x2b0] sm:$0xff]
      %v2343 = vld [vmem:[%s2 + $0x2b8] sm:$0xff]
      %v2344 = vld [vmem:[%s2 + $0x2c0] sm:$0xff]
      %v2345 = vld [vmem:[%s2 + $0x2c8] sm:$0xff]
      %v2346 = vld [vmem:[%s2 + $0x2d0] sm:$0xff]
      %v2347 = vld [vmem:[%s2 + $0x2d8] sm:$0xff]
      %v2348 = vld [vmem:[%s2 + $0x2e0] sm:$0xff]
      %v2349 = vld [vmem:[%s2 + $0x2e8] sm:$0xff]
      %v2350 = vld [vmem:[%s2 + $0x2f0] sm:$0xff]
      %v2351 = vld [vmem:[%s2 + $0x2f8] sm:$0xff]
      %v2352 = vld [vmem:[%s2 + $0x300] sm:$0xff]
      %v2353 = vld [vmem:[%s2 + $0x308] sm:$0xff]
      %v2354 = vld [vmem:[%s2 + $0x310] sm:$0xff]
      %v2355 = vld [vmem:[%s2 + $0x318] sm:$0xff]
      %v2356 = vld [vmem:[%s2 + $0x320] sm:$0xff]
      %v2357 = vld [vmem:[%s2 + $0x328] sm:$0xff]
      %v2358 = vld [vmem:[%s2 + $0x330] sm:$0xff]
      %v2359 = vld [vmem:[%s2 + $0x338] sm:$0xff]
      %v2360 = vld [vmem:[%s2 + $0x340] sm:$0xff]
      %v2361 = vld [vmem:[%s2 + $0x348] sm:$0xff]
      %v2362 = vld [vmem:[%s2 + $0x350] sm:$0xff]
      %v2363 = vld [vmem:[%s2 + $0x358] sm:$0xff]
      %v2364 = vld [vmem:[%s2 + $0x360] sm:$0xff]
      %v2365 = vld [vmem:[%s2 + $0x368] sm:$0xff]
      %v2366 = vld [vmem:[%s2 + $0x370] sm:$0xff]
      %v2367 = vld [vmem:[%s2 + $0x378] sm:$0xff]
      %v2368 = vld [vmem:[%s2 + $0x380] sm:$0xff]
      %v2369 = vld [vmem:[%s2 + $0x388] sm:$0xff]
      %v2370 = vld [vmem:[%s2 + $0x390] sm:$0xff]
      %v2371 = vld [vmem:[%s2 + $0x398] sm:$0xff]
      %v2372 = vld [vmem:[%s2 + $0x3a0] sm:$0xff]
      %v2373 = vld [vmem:[%s2 + $0x3a8] sm:$0xff]
      %v2374 = vld [vmem:[%s2 + $0x3b0] sm:$0xff]
      %v2375 = vld [vmem:[%s2 + $0x3b8] sm:$0xff]
      %v2376 = vld [vmem:[%s2 + $0x3c0] sm:$0xff]
      %v2377 = vld [vmem:[%s2 + $0x3c8] sm:$0xff]
      %v2378 = vld [vmem:[%s2 + $0x3d0] sm:$0xff]
      %v2379 = vld [vmem:[%s2 + $0x3d8] sm:$0xff]
      %v2380 = vld [vmem:[%s2 + $0x3e0] sm:$0xff]
      %v2381 = vld [vmem:[%s2 + $0x3e8] sm:$0xff]
      %v2382 = vld [vmem:[%s2 + $0x3f0] sm:$0xff]
      %v2383 = vld [vmem:[%s2 + $0x3f8] sm:$0xff]
      %v2384 = vld [vmem:[%s2 + $0x400] sm:$0xff]
      %v2385 = vld [vmem:[%s2 + $0x408] sm:$0xff]
      %v2386 = vld [vmem:[%s2 + $0x410] sm:$0xff]
      %v2387 = vld [vmem:[%s2 + $0x418] sm:$0xff]
      %v2388 = vld [vmem:[%s2 + $0x420] sm:$0xff]
      %v2389 = vld [vmem:[%s2 + $0x428] sm:$0xff]
      %v2390 = vld [vmem:[%s2 + $0x430] sm:$0xff]
      %v2391 = vld [vmem:[%s2 + $0x438] sm:$0xff]
      %v2392 = vld [vmem:[%s2 + $0x440] sm:$0xff]
      %v2393 = vld [vmem:[%s2 + $0x448] sm:$0xff]
      %v2394 = vld [vmem:[%s2 + $0x450] sm:$0xff]
      %v2395 = vld [vmem:[%s2 + $0x458] sm:$0xff]
      %v2396 = vld [vmem:[%s2 + $0x460] sm:$0xff]
      %v2397 = vld [vmem:[%s2 + $0x468] sm:$0xff]
      %v2398 = vld [vmem:[%s2 + $0x470] sm:$0xff]
      %v2399 = vld [vmem:[%s2 + $0x478] sm:$0xff]
      %v2400 = vld [vmem:[%s2 + $0x480] sm:$0xff]
      %v2401 = vld [vmem:[%s2 + $0x488] sm:$0xff]
      %v2402 = vld [vmem:[%s2 + $0x490] sm:$0xff]
      %v2403 = vld [vmem:[%s2 + $0x498] sm:$0xff]
      %v2404 = vld [vmem:[%s2 + $0x4a0] sm:$0xff]
      %v2405 = vld [vmem:[%s2 + $0x4a8] sm:$0xff]
      %v2406 = vld [vmem:[%s2 + $0x4b0] sm:$0xff]
      %v2407 = vld [vmem:[%s2 + $0x4b8] sm:$0xff]
      %v2408 = vld [vmem:[%s2 + $0x4c0] sm:$0xff]
      %v2409 = vld [vmem:[%s2 + $0x4c8] sm:$0xff]
      %v2410 = vld [vmem:[%s2 + $0x4d0] sm:$0xff]
      %v2411 = vld [vmem:[%s2 + $0x4d8] sm:$0xff]
      %v2412 = vld [vmem:[%s2 + $0x4e0] sm:$0xff]
      %v2413 = vld [vmem:[%s2 + $0x4e8] sm:$0xff]
      %v2414 = vld [vmem:[%s2 + $0x4f0] sm:$0xff]
      %v2415 = vld [vmem:[%s2 + $0x4f8] sm:$0xff]
      %v2416 = vld [vmem:[%s2 + $0x500] sm:$0xff]
      %v2417 = vld [vmem:[%s2 + $0x508] sm:$0xff]
      %v2418 = vld [vmem:[%s2 + $0x510] sm:$0xff]
      %v2419 = vld [vmem:[%s2 + $0x518] sm:$0xff]
      %v2420 = vld [vmem:[%s2 + $0x520] sm:$0xff]
      %v2421 = vld [vmem:[%s2 + $0x528] sm:$0xff]
      %v2422 = vld [vmem:[%s2 + $0x530] sm:$0xff]
      %v2423 = vld [vmem:[%s2 + $0x538] sm:$0xff]
      %v2424 = vld [vmem:[%s2 + $0x540] sm:$0xff]
      %v2425 = vld [vmem:[%s2 + $0x548] sm:$0xff]
      %v2426 = vld [vmem:[%s2 + $0x550] sm:$0xff]
      %v2427 = vld [vmem:[%s2 + $0x558] sm:$0xff]
      %v2428 = vld [vmem:[%s2 + $0x560] sm:$0xff]
      %v2429 = vld [vmem:[%s2 + $0x568] sm:$0xff]
      %v2430 = vld [vmem:[%s2 + $0x570] sm:$0xff]
      %v2431 = vld [vmem:[%s2 + $0x578] sm:$0xff]
      %v2432 = vld [vmem:[%s2 + $0x580] sm:$0xff]
      %v2433 = vld [vmem:[%s2 + $0x588] sm:$0xff]
      %v2434 = vld [vmem:[%s2 + $0x590] sm:$0xff]
      %v2435 = vld [vmem:[%s2 + $0x598] sm:$0xff]
      %v2436 = vld [vmem:[%s2 + $0x5a0] sm:$0xff]
      %v2437 = vld [vmem:[%s2 + $0x5a8] sm:$0xff]
      %v2438 = vld [vmem:[%s2 + $0x5b0] sm:$0xff]
      %v2439 = vld [vmem:[%s2 + $0x5b8] sm:$0xff]
      %v2440 = vld [vmem:[%s2 + $0x5c0] sm:$0xff]
      %v2441 = vld [vmem:[%s2 + $0x5c8] sm:$0xff]
      %v2442 = vld [vmem:[%s2 + $0x5d0] sm:$0xff]
      %v2443 = vld [vmem:[%s2 + $0x5d8] sm:$0xff]
      %v2444 = vld [vmem:[%s2 + $0x5e0] sm:$0xff]
      %v2445 = vld [vmem:[%s2 + $0x5e8] sm:$0xff]
      %v2446 = vld [vmem:[%s2 + $0x5f0] sm:$0xff]
      %v2447 = vld [vmem:[%s2 + $0x5f8] sm:$0xff]
      %v2448 = vld [vmem:[%s2 + $0x600] sm:$0xff]
      %v2449 = vld [vmem:[%s2 + $0x608] sm:$0xff]
      %v2450 = vld [vmem:[%s2 + $0x610] sm:$0xff]
      %v2451 = vld [vmem:[%s2 + $0x618] sm:$0xff]
      %v2452 = vld [vmem:[%s2 + $0x620] sm:$0xff]
      %v2453 = vld [vmem:[%s2 + $0x628] sm:$0xff]
      %v2454 = vld [vmem:[%s2 + $0x630] sm:$0xff]
      %v2455 = vld [vmem:[%s2 + $0x638] sm:$0xff]
      %v2456 = vld [vmem:[%s2 + $0x640] sm:$0xff]
      %v2457 = vld [vmem:[%s2 + $0x648] sm:$0xff]
      %v2458 = vld [vmem:[%s2 + $0x650] sm:$0xff]
      %v2459 = vld [vmem:[%s2 + $0x658] sm:$0xff]
      %v2460 = vld [vmem:[%s2 + $0x660] sm:$0xff]
      %v2461 = vld [vmem:[%s2 + $0x668] sm:$0xff]
      %v2462 = vld [vmem:[%s2 + $0x670] sm:$0xff]
      %v2463 = vld [vmem:[%s2 + $0x678] sm:$0xff]
      %v2464 = vld [vmem:[%s2 + $0x680] sm:$0xff]
      %v2465 = vld [vmem:[%s2 + $0x688] sm:$0xff]
      %v2466 = vld [vmem:[%s2 + $0x690] sm:$0xff]
      %v2467 = vld [vmem:[%s2 + $0x698] sm:$0xff]
      %v2468 = vld [vmem:[%s2 + $0x6a0] sm:$0xff]
      %v2469 = vld [vmem:[%s2 + $0x6a8] sm:$0xff]
      %v2470 = vld [vmem:[%s2 + $0x6b0] sm:$0xff]
      %v2471 = vld [vmem:[%s2 + $0x6b8] sm:$0xff]
      %v2472 = vld [vmem:[%s2 + $0x6c0] sm:$0xff]
      %v2473 = vld [vmem:[%s2 + $0x6c8] sm:$0xff]
      %v2474 = vld [vmem:[%s2 + $0x6d0] sm:$0xff]
      %v2475 = vld [vmem:[%s2 + $0x6d8] sm:$0xff]
      %v2476 = vld [vmem:[%s2 + $0x6e0] sm:$0xff]
      %v2477 = vld [vmem:[%s2 + $0x6e8] sm:$0xff]
      %v2478 = vld [vmem:[%s2 + $0x6f0] sm:$0xff]
      %v2479 = vld [vmem:[%s2 + $0x6f8] sm:$0xff]
      %v2480 = vld [vmem:[%s2 + $0x700] sm:$0xff]
      %v2481 = vld [vmem:[%s2 + $0x708] sm:$0xff]
      %v2482 = vld [vmem:[%s2 + $0x710] sm:$0xff]
      %v2483 = vld [vmem:[%s2 + $0x718] sm:$0xff]
      %v2484 = vld [vmem:[%s2 + $0x720] sm:$0xff]
      %v2485 = vld [vmem:[%s2 + $0x728] sm:$0xff]
      %v2486 = vld [vmem:[%s2 + $0x730] sm:$0xff]
      %v2487 = vld [vmem:[%s2 + $0x738] sm:$0xff]
      %v2488 = vld [vmem:[%s2 + $0x740] sm:$0xff]
      %v2489 = vld [vmem:[%s2 + $0x748] sm:$0xff]
      %v2490 = vld [vmem:[%s2 + $0x750] sm:$0xff]
      %v2491 = vld [vmem:[%s2 + $0x758] sm:$0xff]
      %v2492 = vld [vmem:[%s2 + $0x760] sm:$0xff]
      %v2493 = vld [vmem:[%s2 + $0x768] sm:$0xff]
      %v2494 = vld [vmem:[%s2 + $0x770] sm:$0xff]
      %v2495 = vld [vmem:[%s2 + $0x778] sm:$0xff]
      %v2736 = vunpack.c.l.b16 %v2256
      %v2737 = vunpack.c.h.b16 %v2256
      %v2738 = vunpack.c.l.b16 %v2257
      %v2739 = vunpack.c.h.b16 %v2257
      %v2740 = vunpack.c.l.b16 %v2258
      %v2741 = vunpack.c.h.b16 %v2258
      %v2742 = vunpack.c.l.b16 %v2259
      %v2743 = vunpack.c.h.b16 %v2259
      %v2744 = vunpack.c.l.b16 %v2260
      %v2745 = vunpack.c.h.b16 %v2260
      %v2746 = vunpack.c.l.b16 %v2261
      %v2747 = vunpack.c.h.b16 %v2261
      %v2748 = vunpack.c.l.b16 %v2262
      %v2749 = vunpack.c.h.b16 %v2262
      %v2750 = vunpack.c.l.b16 %v2263
      %v2751 = vunpack.c.h.b16 %v2263
      %v2752 = vunpack.c.l.b16 %v2264
      %v2753 = vunpack.c.h.b16 %v2264
      %v2754 = vunpack.c.l.b16 %v2265
      %v2755 = vunpack.c.h.b16 %v2265
      %v2756 = vunpack.c.l.b16 %v2266
      %v2757 = vunpack.c.h.b16 %v2266
      %v2758 = vunpack.c.l.b16 %v2267
      %v2759 = vunpack.c.h.b16 %v2267
      %v2760 = vunpack.c.l.b16 %v2268
      %v2761 = vunpack.c.h.b16 %v2268
      %v2762 = vunpack.c.l.b16 %v2269
      %v2763 = vunpack.c.h.b16 %v2269
      %v2764 = vunpack.c.l.b16 %v2270
      %v2765 = vunpack.c.h.b16 %v2270
      %v2766 = vunpack.c.l.b16 %v2271
      %v2767 = vunpack.c.h.b16 %v2271
      %v2768 = vunpack.c.l.b16 %v2272
      %v2769 = vunpack.c.h.b16 %v2272
      %v2770 = vunpack.c.l.b16 %v2273
      %v2771 = vunpack.c.h.b16 %v2273
      %v2772 = vunpack.c.l.b16 %v2274
      %v2773 = vunpack.c.h.b16 %v2274
      %v2774 = vunpack.c.l.b16 %v2275
      %v2775 = vunpack.c.h.b16 %v2275
      %v2776 = vunpack.c.l.b16 %v2276
      %v2777 = vunpack.c.h.b16 %v2276
      %v2778 = vunpack.c.l.b16 %v2277
      %v2779 = vunpack.c.h.b16 %v2277
      %v2780 = vunpack.c.l.b16 %v2278
      %v2781 = vunpack.c.h.b16 %v2278
      %v2782 = vunpack.c.l.b16 %v2279
      %v2783 = vunpack.c.h.b16 %v2279
      %v2784 = vunpack.c.l.b16 %v2280
      %v2785 = vunpack.c.h.b16 %v2280
      %v2786 = vunpack.c.l.b16 %v2281
      %v2787 = vunpack.c.h.b16 %v2281
      %v2788 = vunpack.c.l.b16 %v2282
      %v2789 = vunpack.c.h.b16 %v2282
      %v2790 = vunpack.c.l.b16 %v2283
      %v2791 = vunpack.c.h.b16 %v2283
      %v2792 = vunpack.c.l.b16 %v2284
      %v2793 = vunpack.c.h.b16 %v2284
      %v2794 = vunpack.c.l.b16 %v2285
      %v2795 = vunpack.c.h.b16 %v2285
      %v2796 = vunpack.c.l.b16 %v2286
      %v2797 = vunpack.c.h.b16 %v2286
      %v2798 = vunpack.c.l.b16 %v2287
      %v2799 = vunpack.c.h.b16 %v2287
      %v2800 = vunpack.c.l.b16 %v2288
      %v2801 = vunpack.c.h.b16 %v2288
      %v2802 = vunpack.c.l.b16 %v2289
      %v2803 = vunpack.c.h.b16 %v2289
      %v2804 = vunpack.c.l.b16 %v2290
      %v2805 = vunpack.c.h.b16 %v2290
      %v2806 = vunpack.c.l.b16 %v2291
      %v2807 = vunpack.c.h.b16 %v2291
      %v2808 = vunpack.c.l.b16 %v2292
      %v2809 = vunpack.c.h.b16 %v2292
      %v2810 = vunpack.c.l.b16 %v2293
      %v2811 = vunpack.c.h.b16 %v2293
      %v2812 = vunpack.c.l.b16 %v2294
      %v2813 = vunpack.c.h.b16 %v2294
      %v2814 = vunpack.c.l.b16 %v2295
      %v2815 = vunpack.c.h.b16 %v2295
      %v2816 = vunpack.c.l.b16 %v2296
      %v2817 = vunpack.c.h.b16 %v2296
      %v2818 = vunpack.c.l.b16 %v2297
      %v2819 = vunpack.c.h.b16 %v2297
      %v2820 = vunpack.c.l.b16 %v2298
      %v2821 = vunpack.c.h.b16 %v2298
      %v2822 = vunpack.c.l.b16 %v2299
      %v2823 = vunpack.c.h.b16 %v2299
      %v2824 = vunpack.c.l.b16 %v2300
      %v2825 = vunpack.c.h.b16 %v2300
      %v2826 = vunpack.c.l.b16 %v2301
      %v2827 = vunpack.c.h.b16 %v2301
      %v2828 = vunpack.c.l.b16 %v2302
      %v2829 = vunpack.c.h.b16 %v2302
      %v2830 = vunpack.c.l.b16 %v2303
      %v2831 = vunpack.c.h.b16 %v2303
      %v2832 = vunpack.c.l.b16 %v2304
      %v2833 = vunpack.c.h.b16 %v2304
      %v2834 = vunpack.c.l.b16 %v2305
      %v2835 = vunpack.c.h.b16 %v2305
      %v2836 = vunpack.c.l.b16 %v2306
      %v2837 = vunpack.c.h.b16 %v2306
      %v2838 = vunpack.c.l.b16 %v2307
      %v2839 = vunpack.c.h.b16 %v2307
      %v2840 = vunpack.c.l.b16 %v2308
      %v2841 = vunpack.c.h.b16 %v2308
      %v2842 = vunpack.c.l.b16 %v2309
      %v2843 = vunpack.c.h.b16 %v2309
      %v2844 = vunpack.c.l.b16 %v2310
      %v2845 = vunpack.c.h.b16 %v2310
      %v2846 = vunpack.c.l.b16 %v2311
      %v2847 = vunpack.c.h.b16 %v2311
      %v2848 = vunpack.c.l.b16 %v2312
      %v2849 = vunpack.c.h.b16 %v2312
      %v2850 = vunpack.c.l.b16 %v2313
      %v2851 = vunpack.c.h.b16 %v2313
      %v2852 = vunpack.c.l.b16 %v2314
      %v2853 = vunpack.c.h.b16 %v2314
      %v2854 = vunpack.c.l.b16 %v2315
      %v2855 = vunpack.c.h.b16 %v2315
      %v2856 = vunpack.c.l.b16 %v2316
      %v2857 = vunpack.c.h.b16 %v2316
      %v2858 = vunpack.c.l.b16 %v2317
      %v2859 = vunpack.c.h.b16 %v2317
      %v2860 = vunpack.c.l.b16 %v2318
      %v2861 = vunpack.c.h.b16 %v2318
      %v2862 = vunpack.c.l.b16 %v2319
      %v2863 = vunpack.c.h.b16 %v2319
      %v2864 = vunpack.c.l.b16 %v2320
      %v2865 = vunpack.c.h.b16 %v2320
      %v2866 = vunpack.c.l.b16 %v2321
      %v2867 = vunpack.c.h.b16 %v2321
      %v2868 = vunpack.c.l.b16 %v2322
      %v2869 = vunpack.c.h.b16 %v2322
      %v2870 = vunpack.c.l.b16 %v2323
      %v2871 = vunpack.c.h.b16 %v2323
      %v2872 = vunpack.c.l.b16 %v2324
      %v2873 = vunpack.c.h.b16 %v2324
      %v2874 = vunpack.c.l.b16 %v2325
      %v2875 = vunpack.c.h.b16 %v2325
      %v2876 = vunpack.c.l.b16 %v2326
      %v2877 = vunpack.c.h.b16 %v2326
      %v2878 = vunpack.c.l.b16 %v2327
      %v2879 = vunpack.c.h.b16 %v2327
      %v2880 = vunpack.c.l.b16 %v2328
      %v2881 = vunpack.c.h.b16 %v2328
      %v2882 = vunpack.c.l.b16 %v2329
      %v2883 = vunpack.c.h.b16 %v2329
      %v2884 = vunpack.c.l.b16 %v2330
      %v2885 = vunpack.c.h.b16 %v2330
      %v2886 = vunpack.c.l.b16 %v2331
      %v2887 = vunpack.c.h.b16 %v2331
      %v2888 = vunpack.c.l.b16 %v2332
      %v2889 = vunpack.c.h.b16 %v2332
      %v2890 = vunpack.c.l.b16 %v2333
      %v2891 = vunpack.c.h.b16 %v2333
      %v2892 = vunpack.c.l.b16 %v2334
      %v2893 = vunpack.c.h.b16 %v2334
      %v2894 = vunpack.c.l.b16 %v2335
      %v2895 = vunpack.c.h.b16 %v2335
      %v2896 = vunpack.c.l.b16 %v2336
      %v2897 = vunpack.c.h.b16 %v2336
      %v2898 = vunpack.c.l.b16 %v2337
      %v2899 = vunpack.c.h.b16 %v2337
      %v2900 = vunpack.c.l.b16 %v2338
      %v2901 = vunpack.c.h.b16 %v2338
      %v2902 = vunpack.c.l.b16 %v2339
      %v2903 = vunpack.c.h.b16 %v2339
      %v2904 = vunpack.c.l.b16 %v2340
      %v2905 = vunpack.c.h.b16 %v2340
      %v2906 = vunpack.c.l.b16 %v2341
      %v2907 = vunpack.c.h.b16 %v2341
      %v2908 = vunpack.c.l.b16 %v2342
      %v2909 = vunpack.c.h.b16 %v2342
      %v2910 = vunpack.c.l.b16 %v2343
      %v2911 = vunpack.c.h.b16 %v2343
      %v2912 = vunpack.c.l.b16 %v2344
      %v2913 = vunpack.c.h.b16 %v2344
      %v2914 = vunpack.c.l.b16 %v2345
      %v2915 = vunpack.c.h.b16 %v2345
      %v2916 = vunpack.c.l.b16 %v2346
      %v2917 = vunpack.c.h.b16 %v2346
      %v2918 = vunpack.c.l.b16 %v2347
      %v2919 = vunpack.c.h.b16 %v2347
      %v2920 = vunpack.c.l.b16 %v2348
      %v2921 = vunpack.c.h.b16 %v2348
      %v2922 = vunpack.c.l.b16 %v2349
      %v2923 = vunpack.c.h.b16 %v2349
      %v2924 = vunpack.c.l.b16 %v2350
      %v2925 = vunpack.c.h.b16 %v2350
      %v2926 = vunpack.c.l.b16 %v2351
      %v2927 = vunpack.c.h.b16 %v2351
      %v2928 = vunpack.c.l.b16 %v2352
      %v2929 = vunpack.c.h.b16 %v2352
      %v2930 = vunpack.c.l.b16 %v2353
      %v2931 = vunpack.c.h.b16 %v2353
      %v2932 = vunpack.c.l.b16 %v2354
      %v2933 = vunpack.c.h.b16 %v2354
      %v2934 = vunpack.c.l.b16 %v2355
      %v2935 = vunpack.c.h.b16 %v2355
      %v2936 = vunpack.c.l.b16 %v2356
      %v2937 = vunpack.c.h.b16 %v2356
      %v2938 = vunpack.c.l.b16 %v2357
      %v2939 = vunpack.c.h.b16 %v2357
      %v2940 = vunpack.c.l.b16 %v2358
      %v2941 = vunpack.c.h.b16 %v2358
      %v2942 = vunpack.c.l.b16 %v2359
      %v2943 = vunpack.c.h.b16 %v2359
      %v2944 = vunpack.c.l.b16 %v2360
      %v2945 = vunpack.c.h.b16 %v2360
      %v2946 = vunpack.c.l.b16 %v2361
      %v2947 = vunpack.c.h.b16 %v2361
      %v2948 = vunpack.c.l.b16 %v2362
      %v2949 = vunpack.c.h.b16 %v2362
      %v2950 = vunpack.c.l.b16 %v2363
      %v2951 = vunpack.c.h.b16 %v2363
      %v2952 = vunpack.c.l.b16 %v2364
      %v2953 = vunpack.c.h.b16 %v2364
      %v2954 = vunpack.c.l.b16 %v2365
      %v2955 = vunpack.c.h.b16 %v2365
      %v2956 = vunpack.c.l.b16 %v2366
      %v2957 = vunpack.c.h.b16 %v2366
      %v2958 = vunpack.c.l.b16 %v2367
      %v2959 = vunpack.c.h.b16 %v2367
      %v2960 = vunpack.c.l.b16 %v2368
      %v2961 = vunpack.c.h.b16 %v2368
      %v2962 = vunpack.c.l.b16 %v2369
      %v2963 = vunpack.c.h.b16 %v2369
      %v2964 = vunpack.c.l.b16 %v2370
      %v2965 = vunpack.c.h.b16 %v2370
      %v2966 = vunpack.c.l.b16 %v2371
      %v2967 = vunpack.c.h.b16 %v2371
      %v2968 = vunpack.c.l.b16 %v2372
      %v2969 = vunpack.c.h.b16 %v2372
      %v2970 = vunpack.c.l.b16 %v2373
      %v2971 = vunpack.c.h.b16 %v2373
      %v2972 = vunpack.c.l.b16 %v2374
      %v2973 = vunpack.c.h.b16 %v2374
      %v2974 = vunpack.c.l.b16 %v2375
      %v2975 = vunpack.c.h.b16 %v2375
      %v2976 = vunpack.c.l.b16 %v2376
      %v2977 = vunpack.c.h.b16 %v2376
      %v2978 = vunpack.c.l.b16 %v2377
      %v2979 = vunpack.c.h.b16 %v2377
      %v2980 = vunpack.c.l.b16 %v2378
      %v2981 = vunpack.c.h.b16 %v2378
      %v2982 = vunpack.c.l.b16 %v2379
      %v2983 = vunpack.c.h.b16 %v2379
      %v2984 = vunpack.c.l.b16 %v2380
      %v2985 = vunpack.c.h.b16 %v2380
      %v2986 = vunpack.c.l.b16 %v2381
      %v2987 = vunpack.c.h.b16 %v2381
      %v2988 = vunpack.c.l.b16 %v2382
      %v2989 = vunpack.c.h.b16 %v2382
      %v2990 = vunpack.c.l.b16 %v2383
      %v2991 = vunpack.c.h.b16 %v2383
      %v2992 = vunpack.c.l.b16 %v2384
      %v2993 = vunpack.c.h.b16 %v2384
      %v2994 = vunpack.c.l.b16 %v2385
      %v2995 = vunpack.c.h.b16 %v2385
      %v2996 = vunpack.c.l.b16 %v2386
      %v2997 = vunpack.c.h.b16 %v2386
      %v2998 = vunpack.c.l.b16 %v2387
      %v2999 = vunpack.c.h.b16 %v2387
      %v3000 = vunpack.c.l.b16 %v2388
      %v3001 = vunpack.c.h.b16 %v2388
      %v3002 = vunpack.c.l.b16 %v2389
      %v3003 = vunpack.c.h.b16 %v2389
      %v3004 = vunpack.c.l.b16 %v2390
      %v3005 = vunpack.c.h.b16 %v2390
      %v3006 = vunpack.c.l.b16 %v2391
      %v3007 = vunpack.c.h.b16 %v2391
      %v3008 = vunpack.c.l.b16 %v2392
      %v3009 = vunpack.c.h.b16 %v2392
      %v3010 = vunpack.c.l.b16 %v2393
      %v3011 = vunpack.c.h.b16 %v2393
      %v3012 = vunpack.c.l.b16 %v2394
      %v3013 = vunpack.c.h.b16 %v2394
      %v3014 = vunpack.c.l.b16 %v2395
      %v3015 = vunpack.c.h.b16 %v2395
      %v3016 = vunpack.c.l.b16 %v2396
      %v3017 = vunpack.c.h.b16 %v2396
      %v3018 = vunpack.c.l.b16 %v2397
      %v3019 = vunpack.c.h.b16 %v2397
      %v3020 = vunpack.c.l.b16 %v2398
      %v3021 = vunpack.c.h.b16 %v2398
      %v3022 = vunpack.c.l.b16 %v2399
      %v3023 = vunpack.c.h.b16 %v2399
      %v3024 = vunpack.c.l.b16 %v2400
      %v3025 = vunpack.c.h.b16 %v2400
      %v3026 = vunpack.c.l.b16 %v2401
      %v3027 = vunpack.c.h.b16 %v2401
      %v3028 = vunpack.c.l.b16 %v2402
      %v3029 = vunpack.c.h.b16 %v2402
      %v3030 = vunpack.c.l.b16 %v2403
      %v3031 = vunpack.c.h.b16 %v2403
      %v3032 = vunpack.c.l.b16 %v2404
      %v3033 = vunpack.c.h.b16 %v2404
      %v3034 = vunpack.c.l.b16 %v2405
      %v3035 = vunpack.c.h.b16 %v2405
      %v3036 = vunpack.c.l.b16 %v2406
      %v3037 = vunpack.c.h.b16 %v2406
      %v3038 = vunpack.c.l.b16 %v2407
      %v3039 = vunpack.c.h.b16 %v2407
      %v3040 = vunpack.c.l.b16 %v2408
      %v3041 = vunpack.c.h.b16 %v2408
      %v3042 = vunpack.c.l.b16 %v2409
      %v3043 = vunpack.c.h.b16 %v2409
      %v3044 = vunpack.c.l.b16 %v2410
      %v3045 = vunpack.c.h.b16 %v2410
      %v3046 = vunpack.c.l.b16 %v2411
      %v3047 = vunpack.c.h.b16 %v2411
      %v3048 = vunpack.c.l.b16 %v2412
      %v3049 = vunpack.c.h.b16 %v2412
      %v3050 = vunpack.c.l.b16 %v2413
      %v3051 = vunpack.c.h.b16 %v2413
      %v3052 = vunpack.c.l.b16 %v2414
      %v3053 = vunpack.c.h.b16 %v2414
      %v3054 = vunpack.c.l.b16 %v2415
      %v3055 = vunpack.c.h.b16 %v2415
      %v3056 = vunpack.c.l.b16 %v2416
      %v3057 = vunpack.c.h.b16 %v2416
      %v3058 = vunpack.c.l.b16 %v2417
      %v3059 = vunpack.c.h.b16 %v2417
      %v3060 = vunpack.c.l.b16 %v2418
      %v3061 = vunpack.c.h.b16 %v2418
      %v3062 = vunpack.c.l.b16 %v2419
      %v3063 = vunpack.c.h.b16 %v2419
      %v3064 = vunpack.c.l.b16 %v2420
      %v3065 = vunpack.c.h.b16 %v2420
      %v3066 = vunpack.c.l.b16 %v2421
      %v3067 = vunpack.c.h.b16 %v2421
      %v3068 = vunpack.c.l.b16 %v2422
      %v3069 = vunpack.c.h.b16 %v2422
      %v3070 = vunpack.c.l.b16 %v2423
      %v3071 = vunpack.c.h.b16 %v2423
      %v3072 = vunpack.c.l.b16 %v2424
      %v3073 = vunpack.c.h.b16 %v2424
      %v3074 = vunpack.c.l.b16 %v2425
      %v3075 = vunpack.c.h.b16 %v2425
      %v3076 = vunpack.c.l.b16 %v2426
      %v3077 = vunpack.c.h.b16 %v2426
      %v3078 = vunpack.c.l.b16 %v2427
      %v3079 = vunpack.c.h.b16 %v2427
      %v3080 = vunpack.c.l.b16 %v2428
      %v3081 = vunpack.c.h.b16 %v2428
      %v3082 = vunpack.c.l.b16 %v2429
      %v3083 = vunpack.c.h.b16 %v2429
      %v3084 = vunpack.c.l.b16 %v2430
      %v3085 = vunpack.c.h.b16 %v2430
      %v3086 = vunpack.c.l.b16 %v2431
      %v3087 = vunpack.c.h.b16 %v2431
      %v3088 = vunpack.c.l.b16 %v2432
      %v3089 = vunpack.c.h.b16 %v2432
      %v3090 = vunpack.c.l.b16 %v2433
      %v3091 = vunpack.c.h.b16 %v2433
      %v3092 = vunpack.c.l.b16 %v2434
      %v3093 = vunpack.c.h.b16 %v2434
      %v3094 = vunpack.c.l.b16 %v2435
      %v3095 = vunpack.c.h.b16 %v2435
      %v3096 = vunpack.c.l.b16 %v2436
      %v3097 = vunpack.c.h.b16 %v2436
      %v3098 = vunpack.c.l.b16 %v2437
      %v3099 = vunpack.c.h.b16 %v2437
      %v3100 = vunpack.c.l.b16 %v2438
      %v3101 = vunpack.c.h.b16 %v2438
      %v3102 = vunpack.c.l.b16 %v2439
      %v3103 = vunpack.c.h.b16 %v2439
      %v3104 = vunpack.c.l.b16 %v2440
      %v3105 = vunpack.c.h.b16 %v2440
      %v3106 = vunpack.c.l.b16 %v2441
      %v3107 = vunpack.c.h.b16 %v2441
      %v3108 = vunpack.c.l.b16 %v2442
      %v3109 = vunpack.c.h.b16 %v2442
      %v3110 = vunpack.c.l.b16 %v2443
      %v3111 = vunpack.c.h.b16 %v2443
      %v3112 = vunpack.c.l.b16 %v2444
      %v3113 = vunpack.c.h.b16 %v2444
      %v3114 = vunpack.c.l.b16 %v2445
      %v3115 = vunpack.c.h.b16 %v2445
      %v3116 = vunpack.c.l.b16 %v2446
      %v3117 = vunpack.c.h.b16 %v2446
      %v3118 = vunpack.c.l.b16 %v2447
      %v3119 = vunpack.c.h.b16 %v2447
      %v3120 = vunpack.c.l.b16 %v2448
      %v3121 = vunpack.c.h.b16 %v2448
      %v3122 = vunpack.c.l.b16 %v2449
      %v3123 = vunpack.c.h.b16 %v2449
      %v3124 = vunpack.c.l.b16 %v2450
      %v3125 = vunpack.c.h.b16 %v2450
      %v3126 = vunpack.c.l.b16 %v2451
      %v3127 = vunpack.c.h.b16 %v2451
      %v3128 = vunpack.c.l.b16 %v2452
      %v3129 = vunpack.c.h.b16 %v2452
      %v3130 = vunpack.c.l.b16 %v2453
      %v3131 = vunpack.c.h.b16 %v2453
      %v3132 = vunpack.c.l.b16 %v2454
      %v3133 = vunpack.c.h.b16 %v2454
      %v3134 = vunpack.c.l.b16 %v2455
      %v3135 = vunpack.c.h.b16 %v2455
      %v3136 = vunpack.c.l.b16 %v2456
      %v3137 = vunpack.c.h.b16 %v2456
      %v3138 = vunpack.c.l.b16 %v2457
      %v3139 = vunpack.c.h.b16 %v2457
      %v3140 = vunpack.c.l.b16 %v2458
      %v3141 = vunpack.c.h.b16 %v2458
      %v3142 = vunpack.c.l.b16 %v2459
      %v3143 = vunpack.c.h.b16 %v2459
      %v3144 = vunpack.c.l.b16 %v2460
      %v3145 = vunpack.c.h.b16 %v2460
      %v3146 = vunpack.c.l.b16 %v2461
      %v3147 = vunpack.c.h.b16 %v2461
      %v3148 = vunpack.c.l.b16 %v2462
      %v3149 = vunpack.c.h.b16 %v2462
      %v3150 = vunpack.c.l.b16 %v2463
      %v3151 = vunpack.c.h.b16 %v2463
      %v3152 = vunpack.c.l.b16 %v2464
      %v3153 = vunpack.c.h.b16 %v2464
      %v3154 = vunpack.c.l.b16 %v2465
      %v3155 = vunpack.c.h.b16 %v2465
      %v3156 = vunpack.c.l.b16 %v2466
      %v3157 = vunpack.c.h.b16 %v2466
      %v3158 = vunpack.c.l.b16 %v2467
      %v3159 = vunpack.c.h.b16 %v2467
      %v3160 = vunpack.c.l.b16 %v2468
      %v3161 = vunpack.c.h.b16 %v2468
      %v3162 = vunpack.c.l.b16 %v2469
      %v3163 = vunpack.c.h.b16 %v2469
      %v3164 = vunpack.c.l.b16 %v2470
      %v3165 = vunpack.c.h.b16 %v2470
      %v3166 = vunpack.c.l.b16 %v2471
      %v3167 = vunpack.c.h.b16 %v2471
      %v3168 = vunpack.c.l.b16 %v2472
      %v3169 = vunpack.c.h.b16 %v2472
      %v3170 = vunpack.c.l.b16 %v2473
      %v3171 = vunpack.c.h.b16 %v2473
      %v3172 = vunpack.c.l.b16 %v2474
      %v3173 = vunpack.c.h.b16 %v2474
      %v3174 = vunpack.c.l.b16 %v2475
      %v3175 = vunpack.c.h.b16 %v2475
      %v3176 = vunpack.c.l.b16 %v2476
      %v3177 = vunpack.c.h.b16 %v2476
      %v3178 = vunpack.c.l.b16 %v2477
      %v3179 = vunpack.c.h.b16 %v2477
      %v3180 = vunpack.c.l.b16 %v2478
      %v3181 = vunpack.c.h.b16 %v2478
      %v3182 = vunpack.c.l.b16 %v2479
      %v3183 = vunpack.c.h.b16 %v2479
      %v3184 = vunpack.c.l.b16 %v2480
      %v3185 = vunpack.c.h.b16 %v2480
      %v3186 = vunpack.c.l.b16 %v2481
      %v3187 = vunpack.c.h.b16 %v2481
      %v3188 = vunpack.c.l.b16 %v2482
      %v3189 = vunpack.c.h.b16 %v2482
      %v3190 = vunpack.c.l.b16 %v2483
      %v3191 = vunpack.c.h.b16 %v2483
      %v3192 = vunpack.c.l.b16 %v2484
      %v3193 = vunpack.c.h.b16 %v2484
      %v3194 = vunpack.c.l.b16 %v2485
      %v3195 = vunpack.c.h.b16 %v2485
      %v3196 = vunpack.c.l.b16 %v2486
      %v3197 = vunpack.c.h.b16 %v2486
      %v3198 = vunpack.c.l.b16 %v2487
      %v3199 = vunpack.c.h.b16 %v2487
      %v3200 = vunpack.c.l.b16 %v2488
      %v3201 = vunpack.c.h.b16 %v2488
      %v3202 = vunpack.c.l.b16 %v2489
      %v3203 = vunpack.c.h.b16 %v2489
      %v3204 = vunpack.c.l.b16 %v2490
      %v3205 = vunpack.c.h.b16 %v2490
      %v3206 = vunpack.c.l.b16 %v2491
      %v3207 = vunpack.c.h.b16 %v2491
      %v3208 = vunpack.c.l.b16 %v2492
      %v3209 = vunpack.c.h.b16 %v2492
      %v3210 = vunpack.c.l.b16 %v2493
      %v3211 = vunpack.c.h.b16 %v2493
      %v3212 = vunpack.c.l.b16 %v2494
      %v3213 = vunpack.c.h.b16 %v2494
      %v3214 = vunpack.c.l.b16 %v2495
      %v3215 = vunpack.c.h.b16 %v2495
      %v3216 = vpack.c.b16 %v2742, %v2736
      %v3217 = vpack.c.b16 %v2743, %v2737
      %v3218 = vpack.c.b16 %v2744, %v2738
      %v3219 = vpack.c.b16 %v2745, %v2739
      %v3220 = vpack.c.b16 %v2746, %v2740
      %v3221 = vpack.c.b16 %v2747, %v2741
      %v3222 = vpack.c.b16 %v2754, %v2748
      %v3223 = vpack.c.b16 %v2755, %v2749
      %v3224 = vpack.c.b16 %v2756, %v2750
      %v3225 = vpack.c.b16 %v2757, %v2751
      %v3226 = vpack.c.b16 %v2758, %v2752
      %v3227 = vpack.c.b16 %v2759, %v2753
      %v3228 = vpack.c.b16 %v2766, %v2760
      %v3229 = vpack.c.b16 %v2767, %v2761
      %v3230 = vpack.c.b16 %v2768, %v2762
      %v3231 = vpack.c.b16 %v2769, %v2763
      %v3232 = vpack.c.b16 %v2770, %v2764
      %v3233 = vpack.c.b16 %v2771, %v2765
      %v3234 = vpack.c.b16 %v2778, %v2772
      %v3235 = vpack.c.b16 %v2779, %v2773
      %v3236 = vpack.c.b16 %v2780, %v2774
      %v3237 = vpack.c.b16 %v2781, %v2775
      %v3238 = vpack.c.b16 %v2782, %v2776
      %v3239 = vpack.c.b16 %v2783, %v2777
      %v3240 = vpack.c.b16 %v2790, %v2784
      %v3241 = vpack.c.b16 %v2791, %v2785
      %v3242 = vpack.c.b16 %v2792, %v2786
      %v3243 = vpack.c.b16 %v2793, %v2787
      %v3244 = vpack.c.b16 %v2794, %v2788
      %v3245 = vpack.c.b16 %v2795, %v2789
      %v3246 = vpack.c.b16 %v2802, %v2796
      %v3247 = vpack.c.b16 %v2803, %v2797
      %v3248 = vpack.c.b16 %v2804, %v2798
      %v3249 = vpack.c.b16 %v2805, %v2799
      %v3250 = vpack.c.b16 %v2806, %v2800
      %v3251 = vpack.c.b16 %v2807, %v2801
      %v3252 = vpack.c.b16 %v2814, %v2808
      %v3253 = vpack.c.b16 %v2815, %v2809
      %v3254 = vpack.c.b16 %v2816, %v2810
      %v3255 = vpack.c.b16 %v2817, %v2811
      %v3256 = vpack.c.b16 %v2818, %v2812
      %v3257 = vpack.c.b16 %v2819, %v2813
      %v3258 = vpack.c.b16 %v2826, %v2820
      %v3259 = vpack.c.b16 %v2827, %v2821
      %v3260 = vpack.c.b16 %v2828, %v2822
      %v3261 = vpack.c.b16 %v2829, %v2823
      %v3262 = vpack.c.b16 %v2830, %v2824
      %v3263 = vpack.c.b16 %v2831, %v2825
      %v3264 = vpack.c.b16 %v2838, %v2832
      %v3265 = vpack.c.b16 %v2839, %v2833
      %v3266 = vpack.c.b16 %v2840, %v2834
      %v3267 = vpack.c.b16 %v2841, %v2835
      %v3268 = vpack.c.b16 %v2842, %v2836
      %v3269 = vpack.c.b16 %v2843, %v2837
      %v3270 = vpack.c.b16 %v2850, %v2844
      %v3271 = vpack.c.b16 %v2851, %v2845
      %v3272 = vpack.c.b16 %v2852, %v2846
      %v3273 = vpack.c.b16 %v2853, %v2847
      %v3274 = vpack.c.b16 %v2854, %v2848
      %v3275 = vpack.c.b16 %v2855, %v2849
      %v3276 = vpack.c.b16 %v2862, %v2856
      %v3277 = vpack.c.b16 %v2863, %v2857
      %v3278 = vpack.c.b16 %v2864, %v2858
      %v3279 = vpack.c.b16 %v2865, %v2859
      %v3280 = vpack.c.b16 %v2866, %v2860
      %v3281 = vpack.c.b16 %v2867, %v2861
      %v3282 = vpack.c.b16 %v2874, %v2868
      %v3283 = vpack.c.b16 %v2875, %v2869
      %v3284 = vpack.c.b16 %v2876, %v2870
      %v3285 = vpack.c.b16 %v2877, %v2871
      %v3286 = vpack.c.b16 %v2878, %v2872
      %v3287 = vpack.c.b16 %v2879, %v2873
      %v3288 = vpack.c.b16 %v2886, %v2880
      %v3289 = vpack.c.b16 %v2887, %v2881
      %v3290 = vpack.c.b16 %v2888, %v2882
      %v3291 = vpack.c.b16 %v2889, %v2883
      %v3292 = vpack.c.b16 %v2890, %v2884
      %v3293 = vpack.c.b16 %v2891, %v2885
      %v3294 = vpack.c.b16 %v2898, %v2892
      %v3295 = vpack.c.b16 %v2899, %v2893
      %v3296 = vpack.c.b16 %v2900, %v2894
      %v3297 = vpack.c.b16 %v2901, %v2895
      %v3298 = vpack.c.b16 %v2902, %v2896
      %v3299 = vpack.c.b16 %v2903, %v2897
      %v3300 = vpack.c.b16 %v2910, %v2904
      %v3301 = vpack.c.b16 %v2911, %v2905
      %v3302 = vpack.c.b16 %v2912, %v2906
      %v3303 = vpack.c.b16 %v2913, %v2907
      %v3304 = vpack.c.b16 %v2914, %v2908
      %v3305 = vpack.c.b16 %v2915, %v2909
      %v3306 = vpack.c.b16 %v2922, %v2916
      %v3307 = vpack.c.b16 %v2923, %v2917
      %v3308 = vpack.c.b16 %v2924, %v2918
      %v3309 = vpack.c.b16 %v2925, %v2919
      %v3310 = vpack.c.b16 %v2926, %v2920
      %v3311 = vpack.c.b16 %v2927, %v2921
      %v3312 = vpack.c.b16 %v2934, %v2928
      %v3313 = vpack.c.b16 %v2935, %v2929
      %v3314 = vpack.c.b16 %v2936, %v2930
      %v3315 = vpack.c.b16 %v2937, %v2931
      %v3316 = vpack.c.b16 %v2938, %v2932
      %v3317 = vpack.c.b16 %v2939, %v2933
      %v3318 = vpack.c.b16 %v2946, %v2940
      %v3319 = vpack.c.b16 %v2947, %v2941
      %v3320 = vpack.c.b16 %v2948, %v2942
      %v3321 = vpack.c.b16 %v2949, %v2943
      %v3322 = vpack.c.b16 %v2950, %v2944
      %v3323 = vpack.c.b16 %v2951, %v2945
      %v3324 = vpack.c.b16 %v2958, %v2952
      %v3325 = vpack.c.b16 %v2959, %v2953
      %v3326 = vpack.c.b16 %v2960, %v2954
      %v3327 = vpack.c.b16 %v2961, %v2955
      %v3328 = vpack.c.b16 %v2962, %v2956
      %v3329 = vpack.c.b16 %v2963, %v2957
      %v3330 = vpack.c.b16 %v2970, %v2964
      %v3331 = vpack.c.b16 %v2971, %v2965
      %v3332 = vpack.c.b16 %v2972, %v2966
      %v3333 = vpack.c.b16 %v2973, %v2967
      %v3334 = vpack.c.b16 %v2974, %v2968
      %v3335 = vpack.c.b16 %v2975, %v2969
      %v3336 = vpack.c.b16 %v2982, %v2976
      %v3337 = vpack.c.b16 %v2983, %v2977
      %v3338 = vpack.c.b16 %v2984, %v2978
      %v3339 = vpack.c.b16 %v2985, %v2979
      %v3340 = vpack.c.b16 %v2986, %v2980
      %v3341 = vpack.c.b16 %v2987, %v2981
      %v3342 = vpack.c.b16 %v2994, %v2988
      %v3343 = vpack.c.b16 %v2995, %v2989
      %v3344 = vpack.c.b16 %v2996, %v2990
      %v3345 = vpack.c.b16 %v2997, %v2991
      %v3346 = vpack.c.b16 %v2998, %v2992
      %v3347 = vpack.c.b16 %v2999, %v2993
      %v3348 = vpack.c.b16 %v3006, %v3000
      %v3349 = vpack.c.b16 %v3007, %v3001
      %v3350 = vpack.c.b16 %v3008, %v3002
      %v3351 = vpack.c.b16 %v3009, %v3003
      %v3352 = vpack.c.b16 %v3010, %v3004
      %v3353 = vpack.c.b16 %v3011, %v3005
      %v3354 = vpack.c.b16 %v3018, %v3012
      %v3355 = vpack.c.b16 %v3019, %v3013
      %v3356 = vpack.c.b16 %v3020, %v3014
      %v3357 = vpack.c.b16 %v3021, %v3015
      %v3358 = vpack.c.b16 %v3022, %v3016
      %v3359 = vpack.c.b16 %v3023, %v3017
      %v3360 = vpack.c.b16 %v3030, %v3024
      %v3361 = vpack.c.b16 %v3031, %v3025
      %v3362 = vpack.c.b16 %v3032, %v3026
      %v3363 = vpack.c.b16 %v3033, %v3027
      %v3364 = vpack.c.b16 %v3034, %v3028
      %v3365 = vpack.c.b16 %v3035, %v3029
      %v3366 = vpack.c.b16 %v3042, %v3036
      %v3367 = vpack.c.b16 %v3043, %v3037
      %v3368 = vpack.c.b16 %v3044, %v3038
      %v3369 = vpack.c.b16 %v3045, %v3039
      %v3370 = vpack.c.b16 %v3046, %v3040
      %v3371 = vpack.c.b16 %v3047, %v3041
      %v3372 = vpack.c.b16 %v3054, %v3048
      %v3373 = vpack.c.b16 %v3055, %v3049
      %v3374 = vpack.c.b16 %v3056, %v3050
      %v3375 = vpack.c.b16 %v3057, %v3051
      %v3376 = vpack.c.b16 %v3058, %v3052
      %v3377 = vpack.c.b16 %v3059, %v3053
      %v3378 = vpack.c.b16 %v3066, %v3060
      %v3379 = vpack.c.b16 %v3067, %v3061
      %v3380 = vpack.c.b16 %v3068, %v3062
      %v3381 = vpack.c.b16 %v3069, %v3063
      %v3382 = vpack.c.b16 %v3070, %v3064
      %v3383 = vpack.c.b16 %v3071, %v3065
      %v3384 = vpack.c.b16 %v3078, %v3072
      %v3385 = vpack.c.b16 %v3079, %v3073
      %v3386 = vpack.c.b16 %v3080, %v3074
      %v3387 = vpack.c.b16 %v3081, %v3075
      %v3388 = vpack.c.b16 %v3082, %v3076
      %v3389 = vpack.c.b16 %v3083, %v3077
      %v3390 = vpack.c.b16 %v3090, %v3084
      %v3391 = vpack.c.b16 %v3091, %v3085
      %v3392 = vpack.c.b16 %v3092, %v3086
      %v3393 = vpack.c.b16 %v3093, %v3087
      %v3394 = vpack.c.b16 %v3094, %v3088
      %v3395 = vpack.c.b16 %v3095, %v3089
      %v3396 = vpack.c.b16 %v3102, %v3096
      %v3397 = vpack.c.b16 %v3103, %v3097
      %v3398 = vpack.c.b16 %v3104, %v3098
      %v3399 = vpack.c.b16 %v3105, %v3099
      %v3400 = vpack.c.b16 %v3106, %v3100
      %v3401 = vpack.c.b16 %v3107, %v3101
      %v3402 = vpack.c.b16 %v3114, %v3108
      %v3403 = vpack.c.b16 %v3115, %v3109
      %v3404 = vpack.c.b16 %v3116, %v3110
      %v3405 = vpack.c.b16 %v3117, %v3111
      %v3406 = vpack.c.b16 %v3118, %v3112
      %v3407 = vpack.c.b16 %v3119, %v3113
      %v3408 = vpack.c.b16 %v3126, %v3120
      %v3409 = vpack.c.b16 %v3127, %v3121
      %v3410 = vpack.c.b16 %v3128, %v3122
      %v3411 = vpack.c.b16 %v3129, %v3123
      %v3412 = vpack.c.b16 %v3130, %v3124
      %v3413 = vpack.c.b16 %v3131, %v3125
      %v3414 = vpack.c.b16 %v3138, %v3132
      %v3415 = vpack.c.b16 %v3139, %v3133
      %v3416 = vpack.c.b16 %v3140, %v3134
      %v3417 = vpack.c.b16 %v3141, %v3135
      %v3418 = vpack.c.b16 %v3142, %v3136
      %v3419 = vpack.c.b16 %v3143, %v3137
      %v3420 = vpack.c.b16 %v3150, %v3144
      %v3421 = vpack.c.b16 %v3151, %v3145
      %v3422 = vpack.c.b16 %v3152, %v3146
      %v3423 = vpack.c.b16 %v3153, %v3147
      %v3424 = vpack.c.b16 %v3154, %v3148
      %v3425 = vpack.c.b16 %v3155, %v3149
      %v3426 = vpack.c.b16 %v3162, %v3156
      %v3427 = vpack.c.b16 %v3163, %v3157
      %v3428 = vpack.c.b16 %v3164, %v3158
      %v3429 = vpack.c.b16 %v3165, %v3159
      %v3430 = vpack.c.b16 %v3166, %v3160
      %v3431 = vpack.c.b16 %v3167, %v3161
      %v3432 = vpack.c.b16 %v3174, %v3168
      %v3433 = vpack.c.b16 %v3175, %v3169
      %v3434 = vpack.c.b16 %v3176, %v3170
      %v3435 = vpack.c.b16 %v3177, %v3171
      %v3436 = vpack.c.b16 %v3178, %v3172
      %v3437 = vpack.c.b16 %v3179, %v3173
      %v3438 = vpack.c.b16 %v3186, %v3180
      %v3439 = vpack.c.b16 %v3187, %v3181
      %v3440 = vpack.c.b16 %v3188, %v3182
      %v3441 = vpack.c.b16 %v3189, %v3183
      %v3442 = vpack.c.b16 %v3190, %v3184
      %v3443 = vpack.c.b16 %v3191, %v3185
      %v3444 = vpack.c.b16 %v3198, %v3192
      %v3445 = vpack.c.b16 %v3199, %v3193
      %v3446 = vpack.c.b16 %v3200, %v3194
      %v3447 = vpack.c.b16 %v3201, %v3195
      %v3448 = vpack.c.b16 %v3202, %v3196
      %v3449 = vpack.c.b16 %v3203, %v3197
      %v3450 = vpack.c.b16 %v3210, %v3204
      %v3451 = vpack.c.b16 %v3211, %v3205
      %v3452 = vpack.c.b16 %v3212, %v3206
      %v3453 = vpack.c.b16 %v3213, %v3207
      %v3454 = vpack.c.b16 %v3214, %v3208
      %v3455 = vpack.c.b16 %v3215, %v3209
      %3696 = vmatprep.subr.bf16.mxu0 %v3217
      %3697 = vmatpush1.bf16.msra.mxu0 %v3216
      %3698 = vmatprep.subr.bf16.mxu0 %v3223
      %3699 = vmatpush1.bf16.msra.mxu0 %v3222
      %3700 = vmatprep.subr.bf16.mxu0 %v3229
      %3701 = vmatpush1.bf16.msra.mxu0 %v3228
      %3702 = vmatprep.subr.bf16.mxu0 %v3235
      %3703 = vmatpush1.bf16.msra.mxu0 %v3234
      %3704 = vmatprep.subr.bf16.mxu0 %v3241
      %3705 = vmatpush1.bf16.msra.mxu0 %v3240
      %3706 = vmatprep.subr.bf16.mxu0 %v3247
      %3707 = vmatpush1.bf16.msra.mxu0 %v3246
      %3708 = vmatprep.subr.bf16.mxu0 %v3253
      %3709 = vmatpush1.bf16.msra.mxu0 %v3252
      %3710 = vmatprep.subr.bf16.mxu0 %v3259
      %3711 = vmatpush1.bf16.msra.mxu0 %v3258
      %3712 = vmatprep.subr.bf16.mxu0 %v3265
      %3713 = vmatpush1.bf16.msra.mxu0 %v3264
      %3714 = vmatprep.subr.bf16.mxu0 %v3271
      %3715 = vmatpush1.bf16.msra.mxu0 %v3270
      %3716 = vmatprep.subr.bf16.mxu0 %v3277
      %3717 = vmatpush1.bf16.msra.mxu0 %v3276
      %3718 = vmatprep.subr.bf16.mxu0 %v3283
      %3719 = vmatpush1.bf16.msra.mxu0 %v3282
      %3720 = vmatprep.subr.bf16.mxu0 %v3289
      %3721 = vmatpush1.bf16.msra.mxu0 %v3288
      %3722 = vmatprep.subr.bf16.mxu0 %v3295
      %3723 = vmatpush1.bf16.msra.mxu0 %v3294
      %3724 = vmatprep.subr.bf16.mxu0 %v3301
      %3725 = vmatpush1.bf16.msra.mxu0 %v3300
      %3726 = vmatprep.subr.bf16.mxu0 %v3307
      %3727 = vmatpush1.bf16.msra.mxu0 %v3306
      %3728 = vmatprep.mubr.bf16.mxu0 %v2177
      %3729 = vmatmul.mubr.bf16.gmra.mrb[0].mxu0 %v2176
      %v3730 = vpop.f32.mrb[0].mxu0
      %v3731 = vadd.f32 0.0, %v3730
      %v3732 = vpop.f32.mrb[0].mxu0
      %v3733 = vadd.f32 0.0, %v3732
      %v3734 = vpop.f32.mrb[0].mxu0
      %v3735 = vadd.f32 0.0, %v3734
      %v3736 = vpop.f32.mrb[0].mxu0
      %v3737 = vadd.f32 0.0, %v3736
      %3738 = vmatprep.mubr.bf16.mxu0 %v2182
      %3739 = vmatmul.mubr.bf16.gmra.mrb[0].mxu0 %v2181
      %v3740 = vpop.f32.mrb[0].mxu0
      %v3741 = vadd.f32 0.0, %v3740
      %v3742 = vpop.f32.mrb[0].mxu0
      %v3743 = vadd.f32 0.0, %v3742
      %v3744 = vpop.f32.mrb[0].mxu0
      %v3745 = vadd.f32 0.0, %v3744
      %v3746 = vpop.f32.mrb[0].mxu0
      %v3747 = vadd.f32 0.0, %v3746
      %3748 = vmatprep.mubr.bf16.mxu0 %v2187
      %3749 = vmatmul.mubr.bf16.gmra.mrb[0].mxu0 %v2186
      %v3750 = vpop.f32.mrb[0].mxu0
      %v3751 = vadd.f32 0.0, %v3750
      %v3752 = vpop.f32.mrb[0].mxu0
      %v3753 = vadd.f32 0.0, %v3752
      %v3754 = vpop.f32.mrb[0].mxu0
      %v3755 = vadd.f32 0.0, %v3754
      %v3756 = vpop.f32.mrb[0].mxu0
      %v3757 = vadd.f32 0.0, %v3756
      %3758 = vmatprep.mubr.bf16.mxu0 %v2192
      %3759 = vmatmul.mubr.bf16.gmra.mrb[0].mxu0 %v2191
      %v3760 = vpop.f32.mrb[0].mxu0
      %v3761 = vadd.f32 0.0, %v3760
      %v3762 = vpop.f32.mrb[0].mxu0
      %v3763 = vadd.f32 0.0, %v3762
      %v3764 = vpop.f32.mrb[0].mxu0
      %v3765 = vadd.f32 0.0, %v3764
      %v3766 = vpop.f32.mrb[0].mxu0
      %v3767 = vadd.f32 0.0, %v3766
      %3768 = vmatprep.mubr.bf16.mxu0 %v2197
      %3769 = vmatmul.mubr.bf16.gmra.mrb[0].mxu0 %v2196
      %v3770 = vpop.f32.mrb[0].mxu0
      %v3771 = vadd.f32 0.0, %v3770
      %v3772 = vpop.f32.mrb[0].mxu0
      %v3773 = vadd.f32 0.0, %v3772
      %v3774 = vpop.f32.mrb[0].mxu0
      %v3775 = vadd.f32 0.0, %v3774
      %v3776 = vpop.f32.mrb[0].mxu0
      %v3777 = vadd.f32 0.0, %v3776
      %3778 = vmatprep.mubr.bf16.mxu0 %v2202
      %3779 = vmatmul.mubr.bf16.gmra.mrb[0].mxu0 %v2201
      %v3780 = vpop.f32.mrb[0].mxu0
      %v3781 = vadd.f32 0.0, %v3780
      %v3782 = vpop.f32.mrb[0].mxu0
      %v3783 = vadd.f32 0.0, %v3782
      %v3784 = vpop.f32.mrb[0].mxu0
      %v3785 = vadd.f32 0.0, %v3784
      %v3786 = vpop.f32.mrb[0].mxu0
      %v3787 = vadd.f32 0.0, %v3786
      %3788 = vmatprep.mubr.bf16.mxu0 %v2207
      %3789 = vmatmul.mubr.bf16.gmra.mrb[0].mxu0 %v2206
      %v3790 = vpop.f32.mrb[0].mxu0
      %v3791 = vadd.f32 0.0, %v3790
      %v3792 = vpop.f32.mrb[0].mxu0
      %v3793 = vadd.f32 0.0, %v3792
      %v3794 = vpop.f32.mrb[0].mxu0
      %v3795 = vadd.f32 0.0, %v3794
      %v3796 = vpop.f32.mrb[0].mxu0
      %v3797 = vadd.f32 0.0, %v3796
      %3798 = vmatprep.mubr.bf16.mxu0 %v2212
      %3799 = vmatmul.mubr.bf16.gmra.mrb[0].mxu0 %v2211
      %v3800 = vpop.f32.mrb[0].mxu0
      %v3801 = vadd.f32 0.0, %v3800
      %v3802 = vpop.f32.mrb[0].mxu0
      %v3803 = vadd.f32 0.0, %v3802
      %v3804 = vpop.f32.mrb[0].mxu0
      %v3805 = vadd.f32 0.0, %v3804
      %v3806 = vpop.f32.mrb[0].mxu0
      %v3807 = vadd.f32 0.0, %v3806
      %3808 = vmatprep.mubr.bf16.mxu0 %v2217
      %3809 = vmatmul.mubr.bf16.gmra.mrb[0].mxu0 %v2216
      %v3810 = vpop.f32.mrb[0].mxu0
      %v3811 = vadd.f32 0.0, %v3810
      %v3812 = vpop.f32.mrb[0].mxu0
      %v3813 = vadd.f32 0.0, %v3812
      %v3814 = vpop.f32.mrb[0].mxu0
      %v3815 = vadd.f32 0.0, %v3814
      %v3816 = vpop.f32.mrb[0].mxu0
      %v3817 = vadd.f32 0.0, %v3816
      %3818 = vmatprep.mubr.bf16.mxu0 %v2222
      %3819 = vmatmul.mubr.bf16.gmra.mrb[0].mxu0 %v2221
      %v3820 = vpop.f32.mrb[0].mxu0
      %v3821 = vadd.f32 0.0, %v3820
      %v3822 = vpop.f32.mrb[0].mxu0
      %v3823 = vadd.f32 0.0, %v3822
      %v3824 = vpop.f32.mrb[0].mxu0
      %v3825 = vadd.f32 0.0, %v3824
      %v3826 = vpop.f32.mrb[0].mxu0
      %v3827 = vadd.f32 0.0, %v3826
      %3828 = vmatprep.mubr.bf16.mxu0 %v2227
      %3829 = vmatmul.mubr.bf16.gmra.mrb[0].mxu0 %v2226
      %v3830 = vpop.f32.mrb[0].mxu0
      %v3831 = vadd.f32 0.0, %v3830
      %v3832 = vpop.f32.mrb[0].mxu0
      %v3833 = vadd.f32 0.0, %v3832
      %v3834 = vpop.f32.mrb[0].mxu0
      %v3835 = vadd.f32 0.0, %v3834
      %v3836 = vpop.f32.mrb[0].mxu0
      %v3837 = vadd.f32 0.0, %v3836
      %3838 = vmatprep.mubr.bf16.mxu0 %v2232
      %3839 = vmatmul.mubr.bf16.gmra.mrb[0].mxu0 %v2231
      %v3840 = vpop.f32.mrb[0].mxu0
      %v3841 = vadd.f32 0.0, %v3840
      %v3842 = vpop.f32.mrb[0].mxu0
      %v3843 = vadd.f32 0.0, %v3842
      %v3844 = vpop.f32.mrb[0].mxu0
      %v3845 = vadd.f32 0.0, %v3844
      %v3846 = vpop.f32.mrb[0].mxu0
      %v3847 = vadd.f32 0.0, %v3846
      %3848 = vmatprep.mubr.bf16.mxu0 %v2237
      %3849 = vmatmul.mubr.bf16.gmra.mrb[0].mxu0 %v2236
      %v3850 = vpop.f32.mrb[0].mxu0
      %v3851 = vadd.f32 0.0, %v3850
      %v3852 = vpop.f32.mrb[0].mxu0
      %v3853 = vadd.f32 0.0, %v3852
      %v3854 = vpop.f32.mrb[0].mxu0
      %v3855 = vadd.f32 0.0, %v3854
      %v3856 = vpop.f32.mrb[0].mxu0
      %v3857 = vadd.f32 0.0, %v3856
      %3858 = vmatprep.mubr.bf16.mxu0 %v2242
      %3859 = vmatmul.mubr.bf16.gmra.mrb[0].mxu0 %v2241
      %v3860 = vpop.f32.mrb[0].mxu0
      %v3861 = vadd.f32 0.0, %v3860
      %v3862 = vpop.f32.mrb[0].mxu0
      %v3863 = vadd.f32 0.0, %v3862
      %v3864 = vpop.f32.mrb[0].mxu0
      %v3865 = vadd.f32 0.0, %v3864
      %v3866 = vpop.f32.mrb[0].mxu0
      %v3867 = vadd.f32 0.0, %v3866
      %3868 = vmatprep.mubr.bf16.mxu0 %v2247
      %3869 = vmatmul.mubr.bf16.gmra.mrb[0].mxu0 %v2246
      %v3870 = vpop.f32.mrb[0].mxu0
      %v3871 = vadd.f32 0.0, %v3870
      %v3872 = vpop.f32.mrb[0].mxu0
      %v3873 = vadd.f32 0.0, %v3872
      %v3874 = vpop.f32.mrb[0].mxu0
      %v3875 = vadd.f32 0.0, %v3874
      %v3876 = vpop.f32.mrb[0].mxu0
      %v3877 = vadd.f32 0.0, %v3876
      %3878 = vmatprep.mubr.bf16.mxu0 %v2252
      %3879 = vmatmul.mubr.bf16.gmra.mrb[0].mxu0 %v2251
      %v3880 = vpop.f32.mrb[0].mxu0
      %v3881 = vadd.f32 0.0, %v3880
      %v3882 = vpop.f32.mrb[0].mxu0
      %v3883 = vadd.f32 0.0, %v3882
      %v3884 = vpop.f32.mrb[0].mxu0
      %v3885 = vadd.f32 0.0, %v3884
      %v3886 = vpop.f32.mrb[0].mxu0
      %v3887 = vadd.f32 0.0, %v3886
      %3888 = vdwg.mxu0
      %3889 = vmatprep.subr.bf16.mxu0 %v3313
      %3890 = vmatpush1.bf16.msra.mxu0 %v3312
      %3891 = vmatprep.subr.bf16.mxu0 %v3319
      %3892 = vmatpush1.bf16.msra.mxu0 %v3318
      %3893 = vmatprep.subr.bf16.mxu0 %v3325
      %3894 = vmatpush1.bf16.msra.mxu0 %v3324
      %3895 = vmatprep.subr.bf16.mxu0 %v3331
      %3896 = vmatpush1.bf16.msra.mxu0 %v3330
      %3897 = vmatprep.subr.bf16.mxu0 %v3337
      %3898 = vmatpush1.bf16.msra.mxu0 %v3336
      %3899 = vmatprep.subr.bf16.mxu0 %v3343
      %3900 = vmatpush1.bf16.msra.mxu0 %v3342
      %3901 = vmatprep.subr.bf16.mxu0 %v3349
      %3902 = vmatpush1.bf16.msra.mxu0 %v3348
      %3903 = vmatprep.subr.bf16.mxu0 %v3355
      %3904 = vmatpush1.bf16.msra.mxu0 %v3354
      %3905 = vmatprep.subr.bf16.mxu0 %v3361
      %3906 = vmatpush1.bf16.msra.mxu0 %v3360
      %3907 = vmatprep.subr.bf16.mxu0 %v3367
      %3908 = vmatpush1.bf16.msra.mxu0 %v3366
      %3909 = vmatprep.subr.bf16.mxu0 %v3373
      %3910 = vmatpush1.bf16.msra.mxu0 %v3372
      %3911 = vmatprep.subr.bf16.mxu0 %v3379
      %3912 = vmatpush1.bf16.msra.mxu0 %v3378
      %3913 = vmatprep.subr.bf16.mxu0 %v3385
      %3914 = vmatpush1.bf16.msra.mxu0 %v3384
      %3915 = vmatprep.subr.bf16.mxu0 %v3391
      %3916 = vmatpush1.bf16.msra.mxu0 %v3390
      %3917 = vmatprep.subr.bf16.mxu0 %v3397
      %3918 = vmatpush1.bf16.msra.mxu0 %v3396
      %3919 = vmatprep.subr.bf16.mxu0 %v3403
      %3920 = vmatpush1.bf16.msra.mxu0 %v3402
      %3921 = vmatprep.mubr.bf16.mxu0 %v2179
      %3922 = vmatmul.mubr.bf16.gmra.mrb[0].mxu0 %v2178
      %v3923 = vpop.f32.mrb[0].mxu0
      %v3924 = vadd.f32 %v3731, %v3923
      %v3925 = vpop.f32.mrb[0].mxu0
      %v3926 = vadd.f32 %v3733, %v3925
      %v3927 = vpop.f32.mrb[0].mxu0
      %v3928 = vadd.f32 %v3735, %v3927
      %v3929 = vpop.f32.mrb[0].mxu0
      %v3930 = vadd.f32 %v3737, %v3929
      %3931 = vmatprep.mubr.bf16.mxu0 %v2184
      %3932 = vmatmul.mubr.bf16.gmra.mrb[0].mxu0 %v2183
      %v3933 = vpop.f32.mrb[0].mxu0
      %v3934 = vadd.f32 %v3741, %v3933
      %v3935 = vpop.f32.mrb[0].mxu0
      %v3936 = vadd.f32 %v3743, %v3935
      %v3937 = vpop.f32.mrb[0].mxu0
      %v3938 = vadd.f32 %v3745, %v3937
      %v3939 = vpop.f32.mrb[0].mxu0
      %v3940 = vadd.f32 %v3747, %v3939
      %3941 = vmatprep.mubr.bf16.mxu0 %v2189
      %3942 = vmatmul.mubr.bf16.gmra.mrb[0].mxu0 %v2188
      %v3943 = vpop.f32.mrb[0].mxu0
      %v3944 = vadd.f32 %v3751, %v3943
      %v3945 = vpop.f32.mrb[0].mxu0
      %v3946 = vadd.f32 %v3753, %v3945
      %v3947 = vpop.f32.mrb[0].mxu0
      %v3948 = vadd.f32 %v3755, %v3947
      %v3949 = vpop.f32.mrb[0].mxu0
      %v3950 = vadd.f32 %v3757, %v3949
      %3951 = vmatprep.mubr.bf16.mxu0 %v2194
      %3952 = vmatmul.mubr.bf16.gmra.mrb[0].mxu0 %v2193
      %v3953 = vpop.f32.mrb[0].mxu0
      %v3954 = vadd.f32 %v3761, %v3953
      %v3955 = vpop.f32.mrb[0].mxu0
      %v3956 = vadd.f32 %v3763, %v3955
      %v3957 = vpop.f32.mrb[0].mxu0
      %v3958 = vadd.f32 %v3765, %v3957
      %v3959 = vpop.f32.mrb[0].mxu0
      %v3960 = vadd.f32 %v3767, %v3959
      %3961 = vmatprep.mubr.bf16.mxu0 %v2199
      %3962 = vmatmul.mubr.bf16.gmra.mrb[0].mxu0 %v2198
      %v3963 = vpop.f32.mrb[0].mxu0
      %v3964 = vadd.f32 %v3771, %v3963
      %v3965 = vpop.f32.mrb[0].mxu0
      %v3966 = vadd.f32 %v3773, %v3965
      %v3967 = vpop.f32.mrb[0].mxu0
      %v3968 = vadd.f32 %v3775, %v3967
      %v3969 = vpop.f32.mrb[0].mxu0
      %v3970 = vadd.f32 %v3777, %v3969
      %3971 = vmatprep.mubr.bf16.mxu0 %v2204
      %3972 = vmatmul.mubr.bf16.gmra.mrb[0].mxu0 %v2203
      %v3973 = vpop.f32.mrb[0].mxu0
      %v3974 = vadd.f32 %v3781, %v3973
      %v3975 = vpop.f32.mrb[0].mxu0
      %v3976 = vadd.f32 %v3783, %v3975
      %v3977 = vpop.f32.mrb[0].mxu0
      %v3978 = vadd.f32 %v3785, %v3977
      %v3979 = vpop.f32.mrb[0].mxu0
      %v3980 = vadd.f32 %v3787, %v3979
      %3981 = vmatprep.mubr.bf16.mxu0 %v2209
      %3982 = vmatmul.mubr.bf16.gmra.mrb[0].mxu0 %v2208
      %v3983 = vpop.f32.mrb[0].mxu0
      %v3984 = vadd.f32 %v3791, %v3983
      %v3985 = vpop.f32.mrb[0].mxu0
      %v3986 = vadd.f32 %v3793, %v3985
      %v3987 = vpop.f32.mrb[0].mxu0
      %v3988 = vadd.f32 %v3795, %v3987
      %v3989 = vpop.f32.mrb[0].mxu0
      %v3990 = vadd.f32 %v3797, %v3989
      %3991 = vmatprep.mubr.bf16.mxu0 %v2214
      %3992 = vmatmul.mubr.bf16.gmra.mrb[0].mxu0 %v2213
      %v3993 = vpop.f32.mrb[0].mxu0
      %v3994 = vadd.f32 %v3801, %v3993
      %v3995 = vpop.f32.mrb[0].mxu0
      %v3996 = vadd.f32 %v3803, %v3995
      %v3997 = vpop.f32.mrb[0].mxu0
      %v3998 = vadd.f32 %v3805, %v3997
      %v3999 = vpop.f32.mrb[0].mxu0
      %v4000 = vadd.f32 %v3807, %v3999
      %4001 = vmatprep.mubr.bf16.mxu0 %v2219
      %4002 = vmatmul.mubr.bf16.gmra.mrb[0].mxu0 %v2218
      %v4003 = vpop.f32.mrb[0].mxu0
      %v4004 = vadd.f32 %v3811, %v4003
      %v4005 = vpop.f32.mrb[0].mxu0
      %v4006 = vadd.f32 %v3813, %v4005
      %v4007 = vpop.f32.mrb[0].mxu0
      %v4008 = vadd.f32 %v3815, %v4007
      %v4009 = vpop.f32.mrb[0].mxu0
      %v4010 = vadd.f32 %v3817, %v4009
      %4011 = vmatprep.mubr.bf16.mxu0 %v2224
      %4012 = vmatmul.mubr.bf16.gmra.mrb[0].mxu0 %v2223
      %v4013 = vpop.f32.mrb[0].mxu0
      %v4014 = vadd.f32 %v3821, %v4013
      %v4015 = vpop.f32.mrb[0].mxu0
      %v4016 = vadd.f32 %v3823, %v4015
      %v4017 = vpop.f32.mrb[0].mxu0
      %v4018 = vadd.f32 %v3825, %v4017
      %v4019 = vpop.f32.mrb[0].mxu0
      %v4020 = vadd.f32 %v3827, %v4019
      %4021 = vmatprep.mubr.bf16.mxu0 %v2229
      %4022 = vmatmul.mubr.bf16.gmra.mrb[0].mxu0 %v2228
      %v4023 = vpop.f32.mrb[0].mxu0
      %v4024 = vadd.f32 %v3831, %v4023
      %v4025 = vpop.f32.mrb[0].mxu0
      %v4026 = vadd.f32 %v3833, %v4025
      %v4027 = vpop.f32.mrb[0].mxu0
      %v4028 = vadd.f32 %v3835, %v4027
      %v4029 = vpop.f32.mrb[0].mxu0
      %v4030 = vadd.f32 %v3837, %v4029
      %4031 = vmatprep.mubr.bf16.mxu0 %v2234
      %4032 = vmatmul.mubr.bf16.gmra.mrb[0].mxu0 %v2233
      %v4033 = vpop.f32.mrb[0].mxu0
      %v4034 = vadd.f32 %v3841, %v4033
      %v4035 = vpop.f32.mrb[0].mxu0
      %v4036 = vadd.f32 %v3843, %v4035
      %v4037 = vpop.f32.mrb[0].mxu0
      %v4038 = vadd.f32 %v3845, %v4037
      %v4039 = vpop.f32.mrb[0].mxu0
      %v4040 = vadd.f32 %v3847, %v4039
      %4041 = vmatprep.mubr.bf16.mxu0 %v2239
      %4042 = vmatmul.mubr.bf16.gmra.mrb[0].mxu0 %v2238
      %v4043 = vpop.f32.mrb[0].mxu0
      %v4044 = vadd.f32 %v3851, %v4043
      %v4045 = vpop.f32.mrb[0].mxu0
      %v4046 = vadd.f32 %v3853, %v4045
      %v4047 = vpop.f32.mrb[0].mxu0
      %v4048 = vadd.f32 %v3855, %v4047
      %v4049 = vpop.f32.mrb[0].mxu0
      %v4050 = vadd.f32 %v3857, %v4049
      %4051 = vmatprep.mubr.bf16.mxu0 %v2244
      %4052 = vmatmul.mubr.bf16.gmra.mrb[0].mxu0 %v2243
      %v4053 = vpop.f32.mrb[0].mxu0
      %v4054 = vadd.f32 %v3861, %v4053
      %v4055 = vpop.f32.mrb[0].mxu0
      %v4056 = vadd.f32 %v3863, %v4055
      %v4057 = vpop.f32.mrb[0].mxu0
      %v4058 = vadd.f32 %v3865, %v4057
      %v4059 = vpop.f32.mrb[0].mxu0
      %v4060 = vadd.f32 %v3867, %v4059
      %4061 = vmatprep.mubr.bf16.mxu0 %v2249
      %4062 = vmatmul.mubr.bf16.gmra.mrb[0].mxu0 %v2248
      %v4063 = vpop.f32.mrb[0].mxu0
      %v4064 = vadd.f32 %v3871, %v4063
      %v4065 = vpop.f32.mrb[0].mxu0
      %v4066 = vadd.f32 %v3873, %v4065
      %v4067 = vpop.f32.mrb[0].mxu0
      %v4068 = vadd.f32 %v3875, %v4067
      %v4069 = vpop.f32.mrb[0].mxu0
      %v4070 = vadd.f32 %v3877, %v4069
      %4071 = vmatprep.mubr.bf16.mxu0 %v2254
      %4072 = vmatmul.mubr.bf16.gmra.mrb[0].mxu0 %v2253
      %v4073 = vpop.f32.mrb[0].mxu0
      %v4074 = vadd.f32 %v3881, %v4073
      %v4075 = vpop.f32.mrb[0].mxu0
      %v4076 = vadd.f32 %v3883, %v4075
      %v4077 = vpop.f32.mrb[0].mxu0
      %v4078 = vadd.f32 %v3885, %v4077
      %v4079 = vpop.f32.mrb[0].mxu0
      %v4080 = vadd.f32 %v3887, %v4079
      %4081 = vdwg.mxu0
      %4082 = vmatprep.subr.bf16.mxu0 %v3409
      %4083 = vmatpush1.bf16.msra.mxu0 %v3408
      %4084 = vmatprep.subr.bf16.mxu0 %v3415
      %4085 = vmatpush1.bf16.msra.mxu0 %v3414
      %4086 = vmatprep.subr.bf16.mxu0 %v3421
      %4087 = vmatpush1.bf16.msra.mxu0 %v3420
      %4088 = vmatprep.subr.bf16.mxu0 %v3427
      %4089 = vmatpush1.bf16.msra.mxu0 %v3426
      %4090 = vmatprep.subr.bf16.mxu0 %v3433
      %4091 = vmatpush1.bf16.msra.mxu0 %v3432
      %4092 = vmatprep.subr.bf16.mxu0 %v3439
      %4093 = vmatpush1.bf16.msra.mxu0 %v3438
      %4094 = vmatprep.subr.bf16.mxu0 %v3445
      %4095 = vmatpush1.bf16.msra.mxu0 %v3444
      %4096 = vmatprep.subr.bf16.mxu0 %v3451
      %4097 = vmatpush1.bf16.msra.mxu0 %v3450
      %4098 = vmatprep.subr.bf16.mxu0 0
      %4099 = vmatpush1.bf16.msra.mxu0 0
      %4100 = vmatprep.subr.bf16.mxu0 0
      %4101 = vmatpush1.bf16.msra.mxu0 0
      %4102 = vmatprep.subr.bf16.mxu0 0
      %4103 = vmatpush1.bf16.msra.mxu0 0
      %4104 = vmatprep.subr.bf16.mxu0 0
      %4105 = vmatpush1.bf16.msra.mxu0 0
      %4106 = vmatprep.subr.bf16.mxu0 0
      %4107 = vmatpush1.bf16.msra.mxu0 0
      %4108 = vmatprep.subr.bf16.mxu0 0
      %4109 = vmatpush1.bf16.msra.mxu0 0
      %4110 = vmatprep.subr.bf16.mxu0 0
      %4111 = vmatpush1.bf16.msra.mxu0 0
      %4112 = vmatprep.subr.bf16.mxu0 0
      %4113 = vmatpush1.bf16.msra.mxu0 0
      %4114 = vmatprep.mubr.bf16.mxu0 0
      %4115 = vmatmul.mubr.bf16.gmra.mrb[0].mxu0 %v2180
      %v4116 = vpop.f32.mrb[0].mxu0
      %v4117 = vadd.f32 %v3924, %v4116
      %v4118 = vpop.f32.mrb[0].mxu0
      %v4119 = vadd.f32 %v3926, %v4118
      %v4120 = vpop.f32.mrb[0].mxu0
      %v4121 = vadd.f32 %v3928, %v4120
      %v4122 = vpop.f32.mrb[0].mxu0
      %v4123 = vadd.f32 %v3930, %v4122
      %4124 = vmatprep.mubr.bf16.mxu0 0
      %4125 = vmatmul.mubr.bf16.gmra.mrb[0].mxu0 %v2185
      %v4126 = vpop.f32.mrb[0].mxu0
      %v4127 = vadd.f32 %v3934, %v4126
      %v4128 = vpop.f32.mrb[0].mxu0
      %v4129 = vadd.f32 %v3936, %v4128
      %v4130 = vpop.f32.mrb[0].mxu0
      %v4131 = vadd.f32 %v3938, %v4130
      %v4132 = vpop.f32.mrb[0].mxu0
      %v4133 = vadd.f32 %v3940, %v4132
      %4134 = vmatprep.mubr.bf16.mxu0 0
      %4135 = vmatmul.mubr.bf16.gmra.mrb[0].mxu0 %v2190
      %v4136 = vpop.f32.mrb[0].mxu0
      %v4137 = vadd.f32 %v3944, %v4136
      %v4138 = vpop.f32.mrb[0].mxu0
      %v4139 = vadd.f32 %v3946, %v4138
      %v4140 = vpop.f32.mrb[0].mxu0
      %v4141 = vadd.f32 %v3948, %v4140
      %v4142 = vpop.f32.mrb[0].mxu0
      %v4143 = vadd.f32 %v3950, %v4142
      %4144 = vmatprep.mubr.bf16.mxu0 0
      %4145 = vmatmul.mubr.bf16.gmra.mrb[0].mxu0 %v2195
      %v4146 = vpop.f32.mrb[0].mxu0
      %v4147 = vadd.f32 %v3954, %v4146
      %v4148 = vpop.f32.mrb[0].mxu0
      %v4149 = vadd.f32 %v3956, %v4148
      %v4150 = vpop.f32.mrb[0].mxu0
      %v4151 = vadd.f32 %v3958, %v4150
      %v4152 = vpop.f32.mrb[0].mxu0
      %v4153 = vadd.f32 %v3960, %v4152
      %4154 = vmatprep.mubr.bf16.mxu0 0
      %4155 = vmatmul.mubr.bf16.gmra.mrb[0].mxu0 %v2200
      %v4156 = vpop.f32.mrb[0].mxu0
      %v4157 = vadd.f32 %v3964, %v4156
      %v4158 = vpop.f32.mrb[0].mxu0
      %v4159 = vadd.f32 %v3966, %v4158
      %v4160 = vpop.f32.mrb[0].mxu0
      %v4161 = vadd.f32 %v3968, %v4160
      %v4162 = vpop.f32.mrb[0].mxu0
      %v4163 = vadd.f32 %v3970, %v4162
      %4164 = vmatprep.mubr.bf16.mxu0 0
      %4165 = vmatmul.mubr.bf16.gmra.mrb[0].mxu0 %v2205
      %v4166 = vpop.f32.mrb[0].mxu0
      %v4167 = vadd.f32 %v3974, %v4166
      %v4168 = vpop.f32.mrb[0].mxu0
      %v4169 = vadd.f32 %v3976, %v4168
      %v4170 = vpop.f32.mrb[0].mxu0
      %v4171 = vadd.f32 %v3978, %v4170
      %v4172 = vpop.f32.mrb[0].mxu0
      %v4173 = vadd.f32 %v3980, %v4172
      %4174 = vmatprep.mubr.bf16.mxu0 0
      %4175 = vmatmul.mubr.bf16.gmra.mrb[0].mxu0 %v2210
      %v4176 = vpop.f32.mrb[0].mxu0
      %v4177 = vadd.f32 %v3984, %v4176
      %v4178 = vpop.f32.mrb[0].mxu0
      %v4179 = vadd.f32 %v3986, %v4178
      %v4180 = vpop.f32.mrb[0].mxu0
      %v4181 = vadd.f32 %v3988, %v4180
      %v4182 = vpop.f32.mrb[0].mxu0
      %v4183 = vadd.f32 %v3990, %v4182
      %4184 = vmatprep.mubr.bf16.mxu0 0
      %4185 = vmatmul.mubr.bf16.gmra.mrb[0].mxu0 %v2215
      %v4186 = vpop.f32.mrb[0].mxu0
      %v4187 = vadd.f32 %v3994, %v4186
      %v4188 = vpop.f32.mrb[0].mxu0
      %v4189 = vadd.f32 %v3996, %v4188
      %v4190 = vpop.f32.mrb[0].mxu0
      %v4191 = vadd.f32 %v3998, %v4190
      %v4192 = vpop.f32.mrb[0].mxu0
      %v4193 = vadd.f32 %v4000, %v4192
      %4194 = vmatprep.mubr.bf16.mxu0 0
      %4195 = vmatmul.mubr.bf16.gmra.mrb[0].mxu0 %v2220
      %v4196 = vpop.f32.mrb[0].mxu0
      %v4197 = vadd.f32 %v4004, %v4196
      %v4198 = vpop.f32.mrb[0].mxu0
      %v4199 = vadd.f32 %v4006, %v4198
      %v4200 = vpop.f32.mrb[0].mxu0
      %v4201 = vadd.f32 %v4008, %v4200
      %v4202 = vpop.f32.mrb[0].mxu0
      %v4203 = vadd.f32 %v4010, %v4202
      %4204 = vmatprep.mubr.bf16.mxu0 0
      %4205 = vmatmul.mubr.bf16.gmra.mrb[0].mxu0 %v2225
      %v4206 = vpop.f32.mrb[0].mxu0
      %v4207 = vadd.f32 %v4014, %v4206
      %v4208 = vpop.f32.mrb[0].mxu0
      %v4209 = vadd.f32 %v4016, %v4208
      %v4210 = vpop.f32.mrb[0].mxu0
      %v4211 = vadd.f32 %v4018, %v4210
      %v4212 = vpop.f32.mrb[0].mxu0
      %v4213 = vadd.f32 %v4020, %v4212
      %4214 = vmatprep.mubr.bf16.mxu0 0
      %4215 = vmatmul.mubr.bf16.gmra.mrb[0].mxu0 %v2230
      %v4216 = vpop.f32.mrb[0].mxu0
      %v4217 = vadd.f32 %v4024, %v4216
      %v4218 = vpop.f32.mrb[0].mxu0
      %v4219 = vadd.f32 %v4026, %v4218
      %v4220 = vpop.f32.mrb[0].mxu0
      %v4221 = vadd.f32 %v4028, %v4220
      %v4222 = vpop.f32.mrb[0].mxu0
      %v4223 = vadd.f32 %v4030, %v4222
      %4224 = vmatprep.mubr.bf16.mxu0 0
      %4225 = vmatmul.mubr.bf16.gmra.mrb[0].mxu0 %v2235
      %v4226 = vpop.f32.mrb[0].mxu0
      %v4227 = vadd.f32 %v4034, %v4226
      %v4228 = vpop.f32.mrb[0].mxu0
      %v4229 = vadd.f32 %v4036, %v4228
      %v4230 = vpop.f32.mrb[0].mxu0
      %v4231 = vadd.f32 %v4038, %v4230
      %v4232 = vpop.f32.mrb[0].mxu0
      %v4233 = vadd.f32 %v4040, %v4232
      %4234 = vmatprep.mubr.bf16.mxu0 0
      %4235 = vmatmul.mubr.bf16.gmra.mrb[0].mxu0 %v2240
      %v4236 = vpop.f32.mrb[0].mxu0
      %v4237 = vadd.f32 %v4044, %v4236
      %v4238 = vpop.f32.mrb[0].mxu0
      %v4239 = vadd.f32 %v4046, %v4238
      %v4240 = vpop.f32.mrb[0].mxu0
      %v4241 = vadd.f32 %v4048, %v4240
      %v4242 = vpop.f32.mrb[0].mxu0
      %v4243 = vadd.f32 %v4050, %v4242
      %4244 = vmatprep.mubr.bf16.mxu0 0
      %4245 = vmatmul.mubr.bf16.gmra.mrb[0].mxu0 %v2245
      %v4246 = vpop.f32.mrb[0].mxu0
      %v4247 = vadd.f32 %v4054, %v4246
      %v4248 = vpop.f32.mrb[0].mxu0
      %v4249 = vadd.f32 %v4056, %v4248
      %v4250 = vpop.f32.mrb[0].mxu0
      %v4251 = vadd.f32 %v4058, %v4250
      %v4252 = vpop.f32.mrb[0].mxu0
      %v4253 = vadd.f32 %v4060, %v4252
      %4254 = vmatprep.mubr.bf16.mxu0 0
      %4255 = vmatmul.mubr.bf16.gmra.mrb[0].mxu0 %v2250
      %v4256 = vpop.f32.mrb[0].mxu0
      %v4257 = vadd.f32 %v4064, %v4256
      %v4258 = vpop.f32.mrb[0].mxu0
      %v4259 = vadd.f32 %v4066, %v4258
      %v4260 = vpop.f32.mrb[0].mxu0
      %v4261 = vadd.f32 %v4068, %v4260
      %v4262 = vpop.f32.mrb[0].mxu0
      %v4263 = vadd.f32 %v4070, %v4262
      %4264 = vmatprep.mubr.bf16.mxu0 0
      %4265 = vmatmul.mubr.bf16.gmra.mrb[0].mxu0 %v2255
      %v4266 = vpop.f32.mrb[0].mxu0
      %v4267 = vadd.f32 %v4074, %v4266
      %v4268 = vpop.f32.mrb[0].mxu0
      %v4269 = vadd.f32 %v4076, %v4268
      %v4270 = vpop.f32.mrb[0].mxu0
      %v4271 = vadd.f32 %v4078, %v4270
      %v4272 = vpop.f32.mrb[0].mxu0
      %v4273 = vadd.f32 %v4080, %v4272
      %4274 = vdwg.mxu0
      %4275 = vmatprep.subr.bf16.mxu0 %v3219
      %4276 = vmatpush1.bf16.msra.mxu0 %v3218
      %4277 = vmatprep.subr.bf16.mxu0 %v3225
      %4278 = vmatpush1.bf16.msra.mxu0 %v3224
      %4279 = vmatprep.subr.bf16.mxu0 %v3231
      %4280 = vmatpush1.bf16.msra.mxu0 %v3230
      %4281 = vmatprep.subr.bf16.mxu0 %v3237
      %4282 = vmatpush1.bf16.msra.mxu0 %v3236
      %4283 = vmatprep.subr.bf16.mxu0 %v3243
      %4284 = vmatpush1.bf16.msra.mxu0 %v3242
      %4285 = vmatprep.subr.bf16.mxu0 %v3249
      %4286 = vmatpush1.bf16.msra.mxu0 %v3248
      %4287 = vmatprep.subr.bf16.mxu0 %v3255
      %4288 = vmatpush1.bf16.msra.mxu0 %v3254
      %4289 = vmatprep.subr.bf16.mxu0 %v3261
      %4290 = vmatpush1.bf16.msra.mxu0 %v3260
      %4291 = vmatprep.subr.bf16.mxu0 %v3267
      %4292 = vmatpush1.bf16.msra.mxu0 %v3266
      %4293 = vmatprep.subr.bf16.mxu0 %v3273
      %4294 = vmatpush1.bf16.msra.mxu0 %v3272
      %4295 = vmatprep.subr.bf16.mxu0 %v3279
      %4296 = vmatpush1.bf16.msra.mxu0 %v3278
      %4297 = vmatprep.subr.bf16.mxu0 %v3285
      %4298 = vmatpush1.bf16.msra.mxu0 %v3284
      %4299 = vmatprep.subr.bf16.mxu0 %v3291
      %4300 = vmatpush1.bf16.msra.mxu0 %v3290
      %4301 = vmatprep.subr.bf16.mxu0 %v3297
      %4302 = vmatpush1.bf16.msra.mxu0 %v3296
      %4303 = vmatprep.subr.bf16.mxu0 %v3303
      %4304 = vmatpush1.bf16.msra.mxu0 %v3302
      %4305 = vmatprep.subr.bf16.mxu0 %v3309
      %4306 = vmatpush1.bf16.msra.mxu0 %v3308
      %4307 = vmatprep.mubr.bf16.mxu0 %v2177
      %4308 = vmatmul.mubr.bf16.gmra.mrb[0].mxu0 %v2176
      %v4309 = vpop.f32.mrb[0].mxu0
      %v4310 = vadd.f32 0.0, %v4309
      %v4311 = vpop.f32.mrb[0].mxu0
      %v4312 = vadd.f32 0.0, %v4311
      %v4313 = vpop.f32.mrb[0].mxu0
      %v4314 = vadd.f32 0.0, %v4313
      %v4315 = vpop.f32.mrb[0].mxu0
      %v4316 = vadd.f32 0.0, %v4315
      %4317 = vmatprep.mubr.bf16.mxu0 %v2182
      %4318 = vmatmul.mubr.bf16.gmra.mrb[0].mxu0 %v2181
      %v4319 = vpop.f32.mrb[0].mxu0
      %v4320 = vadd.f32 0.0, %v4319
      %v4321 = vpop.f32.mrb[0].mxu0
      %v4322 = vadd.f32 0.0, %v4321
      %v4323 = vpop.f32.mrb[0].mxu0
      %v4324 = vadd.f32 0.0, %v4323
      %v4325 = vpop.f32.mrb[0].mxu0
      %v4326 = vadd.f32 0.0, %v4325
      %4327 = vmatprep.mubr.bf16.mxu0 %v2187
      %4328 = vmatmul.mubr.bf16.gmra.mrb[0].mxu0 %v2186
      %v4329 = vpop.f32.mrb[0].mxu0
      %v4330 = vadd.f32 0.0, %v4329
      %v4331 = vpop.f32.mrb[0].mxu0
      %v4332 = vadd.f32 0.0, %v4331
      %v4333 = vpop.f32.mrb[0].mxu0
      %v4334 = vadd.f32 0.0, %v4333
      %v4335 = vpop.f32.mrb[0].mxu0
      %v4336 = vadd.f32 0.0, %v4335
      %4337 = vmatprep.mubr.bf16.mxu0 %v2192
      %4338 = vmatmul.mubr.bf16.gmra.mrb[0].mxu0 %v2191
      %v4339 = vpop.f32.mrb[0].mxu0
      %v4340 = vadd.f32 0.0, %v4339
      %v4341 = vpop.f32.mrb[0].mxu0
      %v4342 = vadd.f32 0.0, %v4341
      %v4343 = vpop.f32.mrb[0].mxu0
      %v4344 = vadd.f32 0.0, %v4343
      %v4345 = vpop.f32.mrb[0].mxu0
      %v4346 = vadd.f32 0.0, %v4345
      %4347 = vmatprep.mubr.bf16.mxu0 %v2197
      %4348 = vmatmul.mubr.bf16.gmra.mrb[0].mxu0 %v2196
      %v4349 = vpop.f32.mrb[0].mxu0
      %v4350 = vadd.f32 0.0, %v4349
      %v4351 = vpop.f32.mrb[0].mxu0
      %v4352 = vadd.f32 0.0, %v4351
      %v4353 = vpop.f32.mrb[0].mxu0
      %v4354 = vadd.f32 0.0, %v4353
      %v4355 = vpop.f32.mrb[0].mxu0
      %v4356 = vadd.f32 0.0, %v4355
      %4357 = vmatprep.mubr.bf16.mxu0 %v2202
      %4358 = vmatmul.mubr.bf16.gmra.mrb[0].mxu0 %v2201
      %v4359 = vpop.f32.mrb[0].mxu0
      %v4360 = vadd.f32 0.0, %v4359
      %v4361 = vpop.f32.mrb[0].mxu0
      %v4362 = vadd.f32 0.0, %v4361
      %v4363 = vpop.f32.mrb[0].mxu0
      %v4364 = vadd.f32 0.0, %v4363
      %v4365 = vpop.f32.mrb[0].mxu0
      %v4366 = vadd.f32 0.0, %v4365
      %4367 = vmatprep.mubr.bf16.mxu0 %v2207
      %4368 = vmatmul.mubr.bf16.gmra.mrb[0].mxu0 %v2206
      %v4369 = vpop.f32.mrb[0].mxu0
      %v4370 = vadd.f32 0.0, %v4369
      %v4371 = vpop.f32.mrb[0].mxu0
      %v4372 = vadd.f32 0.0, %v4371
      %v4373 = vpop.f32.mrb[0].mxu0
      %v4374 = vadd.f32 0.0, %v4373
      %v4375 = vpop.f32.mrb[0].mxu0
      %v4376 = vadd.f32 0.0, %v4375
      %4377 = vmatprep.mubr.bf16.mxu0 %v2212
      %4378 = vmatmul.mubr.bf16.gmra.mrb[0].mxu0 %v2211
      %v4379 = vpop.f32.mrb[0].mxu0
      %v4380 = vadd.f32 0.0, %v4379
      %v4381 = vpop.f32.mrb[0].mxu0
      %v4382 = vadd.f32 0.0, %v4381
      %v4383 = vpop.f32.mrb[0].mxu0
      %v4384 = vadd.f32 0.0, %v4383
      %v4385 = vpop.f32.mrb[0].mxu0
      %v4386 = vadd.f32 0.0, %v4385
      %4387 = vmatprep.mubr.bf16.mxu0 %v2217
      %4388 = vmatmul.mubr.bf16.gmra.mrb[0].mxu0 %v2216
      %v4389 = vpop.f32.mrb[0].mxu0
      %v4390 = vadd.f32 0.0, %v4389
      %v4391 = vpop.f32.mrb[0].mxu0
      %v4392 = vadd.f32 0.0, %v4391
      %v4393 = vpop.f32.mrb[0].mxu0
      %v4394 = vadd.f32 0.0, %v4393
      %v4395 = vpop.f32.mrb[0].mxu0
      %v4396 = vadd.f32 0.0, %v4395
      %4397 = vmatprep.mubr.bf16.mxu0 %v2222
      %4398 = vmatmul.mubr.bf16.gmra.mrb[0].mxu0 %v2221
      %v4399 = vpop.f32.mrb[0].mxu0
      %v4400 = vadd.f32 0.0, %v4399
      %v4401 = vpop.f32.mrb[0].mxu0
      %v4402 = vadd.f32 0.0, %v4401
      %v4403 = vpop.f32.mrb[0].mxu0
      %v4404 = vadd.f32 0.0, %v4403
      %v4405 = vpop.f32.mrb[0].mxu0
      %v4406 = vadd.f32 0.0, %v4405
      %4407 = vmatprep.mubr.bf16.mxu0 %v2227
      %4408 = vmatmul.mubr.bf16.gmra.mrb[0].mxu0 %v2226
      %v4409 = vpop.f32.mrb[0].mxu0
      %v4410 = vadd.f32 0.0, %v4409
      %v4411 = vpop.f32.mrb[0].mxu0
      %v4412 = vadd.f32 0.0, %v4411
      %v4413 = vpop.f32.mrb[0].mxu0
      %v4414 = vadd.f32 0.0, %v4413
      %v4415 = vpop.f32.mrb[0].mxu0
      %v4416 = vadd.f32 0.0, %v4415
      %4417 = vmatprep.mubr.bf16.mxu0 %v2232
      %4418 = vmatmul.mubr.bf16.gmra.mrb[0].mxu0 %v2231
      %v4419 = vpop.f32.mrb[0].mxu0
      %v4420 = vadd.f32 0.0, %v4419
      %v4421 = vpop.f32.mrb[0].mxu0
      %v4422 = vadd.f32 0.0, %v4421
      %v4423 = vpop.f32.mrb[0].mxu0
      %v4424 = vadd.f32 0.0, %v4423
      %v4425 = vpop.f32.mrb[0].mxu0
      %v4426 = vadd.f32 0.0, %v4425
      %4427 = vmatprep.mubr.bf16.mxu0 %v2237
      %4428 = vmatmul.mubr.bf16.gmra.mrb[0].mxu0 %v2236
      %v4429 = vpop.f32.mrb[0].mxu0
      %v4430 = vadd.f32 0.0, %v4429
      %v4431 = vpop.f32.mrb[0].mxu0
      %v4432 = vadd.f32 0.0, %v4431
      %v4433 = vpop.f32.mrb[0].mxu0
      %v4434 = vadd.f32 0.0, %v4433
      %v4435 = vpop.f32.mrb[0].mxu0
      %v4436 = vadd.f32 0.0, %v4435
      %4437 = vmatprep.mubr.bf16.mxu0 %v2242
      %4438 = vmatmul.mubr.bf16.gmra.mrb[0].mxu0 %v2241
      %v4439 = vpop.f32.mrb[0].mxu0
      %v4440 = vadd.f32 0.0, %v4439
      %v4441 = vpop.f32.mrb[0].mxu0
      %v4442 = vadd.f32 0.0, %v4441
      %v4443 = vpop.f32.mrb[0].mxu0
      %v4444 = vadd.f32 0.0, %v4443
      %v4445 = vpop.f32.mrb[0].mxu0
      %v4446 = vadd.f32 0.0, %v4445
      %4447 = vmatprep.mubr.bf16.mxu0 %v2247
      %4448 = vmatmul.mubr.bf16.gmra.mrb[0].mxu0 %v2246
      %v4449 = vpop.f32.mrb[0].mxu0
      %v4450 = vadd.f32 0.0, %v4449
      %v4451 = vpop.f32.mrb[0].mxu0
      %v4452 = vadd.f32 0.0, %v4451
      %v4453 = vpop.f32.mrb[0].mxu0
      %v4454 = vadd.f32 0.0, %v4453
      %v4455 = vpop.f32.mrb[0].mxu0
      %v4456 = vadd.f32 0.0, %v4455
      %4457 = vmatprep.mubr.bf16.mxu0 %v2252
      %4458 = vmatmul.mubr.bf16.gmra.mrb[0].mxu0 %v2251
      %v4459 = vpop.f32.mrb[0].mxu0
      %v4460 = vadd.f32 0.0, %v4459
      %v4461 = vpop.f32.mrb[0].mxu0
      %v4462 = vadd.f32 0.0, %v4461
      %v4463 = vpop.f32.mrb[0].mxu0
      %v4464 = vadd.f32 0.0, %v4463
      %v4465 = vpop.f32.mrb[0].mxu0
      %v4466 = vadd.f32 0.0, %v4465
      %4467 = vdwg.mxu0
      %4468 = vmatprep.subr.bf16.mxu0 %v3315
      %4469 = vmatpush1.bf16.msra.mxu0 %v3314
      %4470 = vmatprep.subr.bf16.mxu0 %v3321
      %4471 = vmatpush1.bf16.msra.mxu0 %v3320
      %4472 = vmatprep.subr.bf16.mxu0 %v3327
      %4473 = vmatpush1.bf16.msra.mxu0 %v3326
      %4474 = vmatprep.subr.bf16.mxu0 %v3333
      %4475 = vmatpush1.bf16.msra.mxu0 %v3332
      %4476 = vmatprep.subr.bf16.mxu0 %v3339
      %4477 = vmatpush1.bf16.msra.mxu0 %v3338
      %4478 = vmatprep.subr.bf16.mxu0 %v3345
      %4479 = vmatpush1.bf16.msra.mxu0 %v3344
      %4480 = vmatprep.subr.bf16.mxu0 %v3351
      %4481 = vmatpush1.bf16.msra.mxu0 %v3350
      %4482 = vmatprep.subr.bf16.mxu0 %v3357
      %4483 = vmatpush1.bf16.msra.mxu0 %v3356
      %4484 = vmatprep.subr.bf16.mxu0 %v3363
      %4485 = vmatpush1.bf16.msra.mxu0 %v3362
      %4486 = vmatprep.subr.bf16.mxu0 %v3369
      %4487 = vmatpush1.bf16.msra.mxu0 %v3368
      %4488 = vmatprep.subr.bf16.mxu0 %v3375
      %4489 = vmatpush1.bf16.msra.mxu0 %v3374
      %4490 = vmatprep.subr.bf16.mxu0 %v3381
      %4491 = vmatpush1.bf16.msra.mxu0 %v3380
      %4492 = vmatprep.subr.bf16.mxu0 %v3387
      %4493 = vmatpush1.bf16.msra.mxu0 %v3386
      %4494 = vmatprep.subr.bf16.mxu0 %v3393
      %4495 = vmatpush1.bf16.msra.mxu0 %v3392
      %4496 = vmatprep.subr.bf16.mxu0 %v3399
      %4497 = vmatpush1.bf16.msra.mxu0 %v3398
      %4498 = vmatprep.subr.bf16.mxu0 %v3405
      %4499 = vmatpush1.bf16.msra.mxu0 %v3404
      %4500 = vmatprep.mubr.bf16.mxu0 %v2179
      %4501 = vmatmul.mubr.bf16.gmra.mrb[0].mxu0 %v2178
      %v4502 = vpop.f32.mrb[0].mxu0
      %v4503 = vadd.f32 %v4310, %v4502
      %v4504 = vpop.f32.mrb[0].mxu0
      %v4505 = vadd.f32 %v4312, %v4504
      %v4506 = vpop.f32.mrb[0].mxu0
      %v4507 = vadd.f32 %v4314, %v4506
      %v4508 = vpop.f32.mrb[0].mxu0
      %v4509 = vadd.f32 %v4316, %v4508
      %4510 = vmatprep.mubr.bf16.mxu0 %v2184
      %4511 = vmatmul.mubr.bf16.gmra.mrb[0].mxu0 %v2183
      %v4512 = vpop.f32.mrb[0].mxu0
      %v4513 = vadd.f32 %v4320, %v4512
      %v4514 = vpop.f32.mrb[0].mxu0
      %v4515 = vadd.f32 %v4322, %v4514
      %v4516 = vpop.f32.mrb[0].mxu0
      %v4517 = vadd.f32 %v4324, %v4516
      %v4518 = vpop.f32.mrb[0].mxu0
      %v4519 = vadd.f32 %v4326, %v4518
      %4520 = vmatprep.mubr.bf16.mxu0 %v2189
      %4521 = vmatmul.mubr.bf16.gmra.mrb[0].mxu0 %v2188
      %v4522 = vpop.f32.mrb[0].mxu0
      %v4523 = vadd.f32 %v4330, %v4522
      %v4524 = vpop.f32.mrb[0].mxu0
      %v4525 = vadd.f32 %v4332, %v4524
      %v4526 = vpop.f32.mrb[0].mxu0
      %v4527 = vadd.f32 %v4334, %v4526
      %v4528 = vpop.f32.mrb[0].mxu0
      %v4529 = vadd.f32 %v4336, %v4528
      %4530 = vmatprep.mubr.bf16.mxu0 %v2194
      %4531 = vmatmul.mubr.bf16.gmra.mrb[0].mxu0 %v2193
      %v4532 = vpop.f32.mrb[0].mxu0
      %v4533 = vadd.f32 %v4340, %v4532
      %v4534 = vpop.f32.mrb[0].mxu0
      %v4535 = vadd.f32 %v4342, %v4534
      %v4536 = vpop.f32.mrb[0].mxu0
      %v4537 = vadd.f32 %v4344, %v4536
      %v4538 = vpop.f32.mrb[0].mxu0
      %v4539 = vadd.f32 %v4346, %v4538
      %4540 = vmatprep.mubr.bf16.mxu0 %v2199
      %4541 = vmatmul.mubr.bf16.gmra.mrb[0].mxu0 %v2198
      %v4542 = vpop.f32.mrb[0].mxu0
      %v4543 = vadd.f32 %v4350, %v4542
      %v4544 = vpop.f32.mrb[0].mxu0
      %v4545 = vadd.f32 %v4352, %v4544
      %v4546 = vpop.f32.mrb[0].mxu0
      %v4547 = vadd.f32 %v4354, %v4546
      %v4548 = vpop.f32.mrb[0].mxu0
      %v4549 = vadd.f32 %v4356, %v4548
      %4550 = vmatprep.mubr.bf16.mxu0 %v2204
      %4551 = vmatmul.mubr.bf16.gmra.mrb[0].mxu0 %v2203
      %v4552 = vpop.f32.mrb[0].mxu0
      %v4553 = vadd.f32 %v4360, %v4552
      %v4554 = vpop.f32.mrb[0].mxu0
      %v4555 = vadd.f32 %v4362, %v4554
      %v4556 = vpop.f32.mrb[0].mxu0
      %v4557 = vadd.f32 %v4364, %v4556
      %v4558 = vpop.f32.mrb[0].mxu0
      %v4559 = vadd.f32 %v4366, %v4558
      %4560 = vmatprep.mubr.bf16.mxu0 %v2209
      %4561 = vmatmul.mubr.bf16.gmra.mrb[0].mxu0 %v2208
      %v4562 = vpop.f32.mrb[0].mxu0
      %v4563 = vadd.f32 %v4370, %v4562
      %v4564 = vpop.f32.mrb[0].mxu0
      %v4565 = vadd.f32 %v4372, %v4564
      %v4566 = vpop.f32.mrb[0].mxu0
      %v4567 = vadd.f32 %v4374, %v4566
      %v4568 = vpop.f32.mrb[0].mxu0
      %v4569 = vadd.f32 %v4376, %v4568
      %4570 = vmatprep.mubr.bf16.mxu0 %v2214
      %4571 = vmatmul.mubr.bf16.gmra.mrb[0].mxu0 %v2213
      %v4572 = vpop.f32.mrb[0].mxu0
      %v4573 = vadd.f32 %v4380, %v4572
      %v4574 = vpop.f32.mrb[0].mxu0
      %v4575 = vadd.f32 %v4382, %v4574
      %v4576 = vpop.f32.mrb[0].mxu0
      %v4577 = vadd.f32 %v4384, %v4576
      %v4578 = vpop.f32.mrb[0].mxu0
      %v4579 = vadd.f32 %v4386, %v4578
      %4580 = vmatprep.mubr.bf16.mxu0 %v2219
      %4581 = vmatmul.mubr.bf16.gmra.mrb[0].mxu0 %v2218
      %v4582 = vpop.f32.mrb[0].mxu0
      %v4583 = vadd.f32 %v4390, %v4582
      %v4584 = vpop.f32.mrb[0].mxu0
      %v4585 = vadd.f32 %v4392, %v4584
      %v4586 = vpop.f32.mrb[0].mxu0
      %v4587 = vadd.f32 %v4394, %v4586
      %v4588 = vpop.f32.mrb[0].mxu0
      %v4589 = vadd.f32 %v4396, %v4588
      %4590 = vmatprep.mubr.bf16.mxu0 %v2224
      %4591 = vmatmul.mubr.bf16.gmra.mrb[0].mxu0 %v2223
      %v4592 = vpop.f32.mrb[0].mxu0
      %v4593 = vadd.f32 %v4400, %v4592
      %v4594 = vpop.f32.mrb[0].mxu0
      %v4595 = vadd.f32 %v4402, %v4594
      %v4596 = vpop.f32.mrb[0].mxu0
      %v4597 = vadd.f32 %v4404, %v4596
      %v4598 = vpop.f32.mrb[0].mxu0
      %v4599 = vadd.f32 %v4406, %v4598
      %4600 = vmatprep.mubr.bf16.mxu0 %v2229
      %4601 = vmatmul.mubr.bf16.gmra.mrb[0].mxu0 %v2228
      %v4602 = vpop.f32.mrb[0].mxu0
      %v4603 = vadd.f32 %v4410, %v4602
      %v4604 = vpop.f32.mrb[0].mxu0
      %v4605 = vadd.f32 %v4412, %v4604
      %v4606 = vpop.f32.mrb[0].mxu0
      %v4607 = vadd.f32 %v4414, %v4606
      %v4608 = vpop.f32.mrb[0].mxu0
      %v4609 = vadd.f32 %v4416, %v4608
      %4610 = vmatprep.mubr.bf16.mxu0 %v2234
      %4611 = vmatmul.mubr.bf16.gmra.mrb[0].mxu0 %v2233
      %v4612 = vpop.f32.mrb[0].mxu0
      %v4613 = vadd.f32 %v4420, %v4612
      %v4614 = vpop.f32.mrb[0].mxu0
      %v4615 = vadd.f32 %v4422, %v4614
      %v4616 = vpop.f32.mrb[0].mxu0
      %v4617 = vadd.f32 %v4424, %v4616
      %v4618 = vpop.f32.mrb[0].mxu0
      %v4619 = vadd.f32 %v4426, %v4618
      %4620 = vmatprep.mubr.bf16.mxu0 %v2239
      %4621 = vmatmul.mubr.bf16.gmra.mrb[0].mxu0 %v2238
      %v4622 = vpop.f32.mrb[0].mxu0
      %v4623 = vadd.f32 %v4430, %v4622
      %v4624 = vpop.f32.mrb[0].mxu0
      %v4625 = vadd.f32 %v4432, %v4624
      %v4626 = vpop.f32.mrb[0].mxu0
      %v4627 = vadd.f32 %v4434, %v4626
      %v4628 = vpop.f32.mrb[0].mxu0
      %v4629 = vadd.f32 %v4436, %v4628
      %4630 = vmatprep.mubr.bf16.mxu0 %v2244
      %4631 = vmatmul.mubr.bf16.gmra.mrb[0].mxu0 %v2243
      %v4632 = vpop.f32.mrb[0].mxu0
      %v4633 = vadd.f32 %v4440, %v4632
      %v4634 = vpop.f32.mrb[0].mxu0
      %v4635 = vadd.f32 %v4442, %v4634
      %v4636 = vpop.f32.mrb[0].mxu0
      %v4637 = vadd.f32 %v4444, %v4636
      %v4638 = vpop.f32.mrb[0].mxu0
      %v4639 = vadd.f32 %v4446, %v4638
      %4640 = vmatprep.mubr.bf16.mxu0 %v2249
      %4641 = vmatmul.mubr.bf16.gmra.mrb[0].mxu0 %v2248
      %v4642 = vpop.f32.mrb[0].mxu0
      %v4643 = vadd.f32 %v4450, %v4642
      %v4644 = vpop.f32.mrb[0].mxu0
      %v4645 = vadd.f32 %v4452, %v4644
      %v4646 = vpop.f32.mrb[0].mxu0
      %v4647 = vadd.f32 %v4454, %v4646
      %v4648 = vpop.f32.mrb[0].mxu0
      %v4649 = vadd.f32 %v4456, %v4648
      %4650 = vmatprep.mubr.bf16.mxu0 %v2254
      %4651 = vmatmul.mubr.bf16.gmra.mrb[0].mxu0 %v2253
      %v4652 = vpop.f32.mrb[0].mxu0
      %v4653 = vadd.f32 %v4460, %v4652
      %v4654 = vpop.f32.mrb[0].mxu0
      %v4655 = vadd.f32 %v4462, %v4654
      %v4656 = vpop.f32.mrb[0].mxu0
      %v4657 = vadd.f32 %v4464, %v4656
      %v4658 = vpop.f32.mrb[0].mxu0
      %v4659 = vadd.f32 %v4466, %v4658
      %4660 = vdwg.mxu0
      %4661 = vmatprep.subr.bf16.mxu0 %v3411
      %4662 = vmatpush1.bf16.msra.mxu0 %v3410
      %4663 = vmatprep.subr.bf16.mxu0 %v3417
      %4664 = vmatpush1.bf16.msra.mxu0 %v3416
      %4665 = vmatprep.subr.bf16.mxu0 %v3423
      %4666 = vmatpush1.bf16.msra.mxu0 %v3422
      %4667 = vmatprep.subr.bf16.mxu0 %v3429
      %4668 = vmatpush1.bf16.msra.mxu0 %v3428
      %4669 = vmatprep.subr.bf16.mxu0 %v3435
      %4670 = vmatpush1.bf16.msra.mxu0 %v3434
      %4671 = vmatprep.subr.bf16.mxu0 %v3441
      %4672 = vmatpush1.bf16.msra.mxu0 %v3440
      %4673 = vmatprep.subr.bf16.mxu0 %v3447
      %4674 = vmatpush1.bf16.msra.mxu0 %v3446
      %4675 = vmatprep.subr.bf16.mxu0 %v3453
      %4676 = vmatpush1.bf16.msra.mxu0 %v3452
      %4677 = vmatprep.subr.bf16.mxu0 0
      %4678 = vmatpush1.bf16.msra.mxu0 0
      %4679 = vmatprep.subr.bf16.mxu0 0
      %4680 = vmatpush1.bf16.msra.mxu0 0
      %4681 = vmatprep.subr.bf16.mxu0 0
      %4682 = vmatpush1.bf16.msra.mxu0 0
      %4683 = vmatprep.subr.bf16.mxu0 0
      %4684 = vmatpush1.bf16.msra.mxu0 0
      %4685 = vmatprep.subr.bf16.mxu0 0
      %4686 = vmatpush1.bf16.msra.mxu0 0
      %4687 = vmatprep.subr.bf16.mxu0 0
      %4688 = vmatpush1.bf16.msra.mxu0 0
      %4689 = vmatprep.subr.bf16.mxu0 0
      %4690 = vmatpush1.bf16.msra.mxu0 0
      %4691 = vmatprep.subr.bf16.mxu0 0
      %4692 = vmatpush1.bf16.msra.mxu0 0
      %4693 = vmatprep.mubr.bf16.mxu0 0
      %4694 = vmatmul.mubr.bf16.gmra.mrb[0].mxu0 %v2180
      %v4695 = vpop.f32.mrb[0].mxu0
      %v4696 = vadd.f32 %v4503, %v4695
      %v4697 = vpop.f32.mrb[0].mxu0
      %v4698 = vadd.f32 %v4505, %v4697
      %v4699 = vpop.f32.mrb[0].mxu0
      %v4700 = vadd.f32 %v4507, %v4699
      %v4701 = vpop.f32.mrb[0].mxu0
      %v4702 = vadd.f32 %v4509, %v4701
      %4703 = vmatprep.mubr.bf16.mxu0 0
      %4704 = vmatmul.mubr.bf16.gmra.mrb[0].mxu0 %v2185
      %v4705 = vpop.f32.mrb[0].mxu0
      %v4706 = vadd.f32 %v4513, %v4705
      %v4707 = vpop.f32.mrb[0].mxu0
      %v4708 = vadd.f32 %v4515, %v4707
      %v4709 = vpop.f32.mrb[0].mxu0
      %v4710 = vadd.f32 %v4517, %v4709
      %v4711 = vpop.f32.mrb[0].mxu0
      %v4712 = vadd.f32 %v4519, %v4711
      %4713 = vmatprep.mubr.bf16.mxu0 0
      %4714 = vmatmul.mubr.bf16.gmra.mrb[0].mxu0 %v2190
      %v4715 = vpop.f32.mrb[0].mxu0
      %v4716 = vadd.f32 %v4523, %v4715
      %v4717 = vpop.f32.mrb[0].mxu0
      %v4718 = vadd.f32 %v4525, %v4717
      %v4719 = vpop.f32.mrb[0].mxu0
      %v4720 = vadd.f32 %v4527, %v4719
      %v4721 = vpop.f32.mrb[0].mxu0
      %v4722 = vadd.f32 %v4529, %v4721
      %4723 = vmatprep.mubr.bf16.mxu0 0
      %4724 = vmatmul.mubr.bf16.gmra.mrb[0].mxu0 %v2195
      %v4725 = vpop.f32.mrb[0].mxu0
      %v4726 = vadd.f32 %v4533, %v4725
      %v4727 = vpop.f32.mrb[0].mxu0
      %v4728 = vadd.f32 %v4535, %v4727
      %v4729 = vpop.f32.mrb[0].mxu0
      %v4730 = vadd.f32 %v4537, %v4729
      %v4731 = vpop.f32.mrb[0].mxu0
      %v4732 = vadd.f32 %v4539, %v4731
      %4733 = vmatprep.mubr.bf16.mxu0 0
      %4734 = vmatmul.mubr.bf16.gmra.mrb[0].mxu0 %v2200
      %v4735 = vpop.f32.mrb[0].mxu0
      %v4736 = vadd.f32 %v4543, %v4735
      %v4737 = vpop.f32.mrb[0].mxu0
      %v4738 = vadd.f32 %v4545, %v4737
      %v4739 = vpop.f32.mrb[0].mxu0
      %v4740 = vadd.f32 %v4547, %v4739
      %v4741 = vpop.f32.mrb[0].mxu0
      %v4742 = vadd.f32 %v4549, %v4741
      %4743 = vmatprep.mubr.bf16.mxu0 0
      %4744 = vmatmul.mubr.bf16.gmra.mrb[0].mxu0 %v2205
      %v4745 = vpop.f32.mrb[0].mxu0
      %v4746 = vadd.f32 %v4553, %v4745
      %v4747 = vpop.f32.mrb[0].mxu0
      %v4748 = vadd.f32 %v4555, %v4747
      %v4749 = vpop.f32.mrb[0].mxu0
      %v4750 = vadd.f32 %v4557, %v4749
      %v4751 = vpop.f32.mrb[0].mxu0
      %v4752 = vadd.f32 %v4559, %v4751
      %4753 = vmatprep.mubr.bf16.mxu0 0
      %4754 = vmatmul.mubr.bf16.gmra.mrb[0].mxu0 %v2210
      %v4755 = vpop.f32.mrb[0].mxu0
      %v4756 = vadd.f32 %v4563, %v4755
      %v4757 = vpop.f32.mrb[0].mxu0
      %v4758 = vadd.f32 %v4565, %v4757
      %v4759 = vpop.f32.mrb[0].mxu0
      %v4760 = vadd.f32 %v4567, %v4759
      %v4761 = vpop.f32.mrb[0].mxu0
      %v4762 = vadd.f32 %v4569, %v4761
      %4763 = vmatprep.mubr.bf16.mxu0 0
      %4764 = vmatmul.mubr.bf16.gmra.mrb[0].mxu0 %v2215
      %v4765 = vpop.f32.mrb[0].mxu0
      %v4766 = vadd.f32 %v4573, %v4765
      %v4767 = vpop.f32.mrb[0].mxu0
      %v4768 = vadd.f32 %v4575, %v4767
      %v4769 = vpop.f32.mrb[0].mxu0
      %v4770 = vadd.f32 %v4577, %v4769
      %v4771 = vpop.f32.mrb[0].mxu0
      %v4772 = vadd.f32 %v4579, %v4771
      %4773 = vmatprep.mubr.bf16.mxu0 0
      %4774 = vmatmul.mubr.bf16.gmra.mrb[0].mxu0 %v2220
      %v4775 = vpop.f32.mrb[0].mxu0
      %v4776 = vadd.f32 %v4583, %v4775
      %v4777 = vpop.f32.mrb[0].mxu0
      %v4778 = vadd.f32 %v4585, %v4777
      %v4779 = vpop.f32.mrb[0].mxu0
      %v4780 = vadd.f32 %v4587, %v4779
      %v4781 = vpop.f32.mrb[0].mxu0
      %v4782 = vadd.f32 %v4589, %v4781
      %4783 = vmatprep.mubr.bf16.mxu0 0
      %4784 = vmatmul.mubr.bf16.gmra.mrb[0].mxu0 %v2225
      %v4785 = vpop.f32.mrb[0].mxu0
      %v4786 = vadd.f32 %v4593, %v4785
      %v4787 = vpop.f32.mrb[0].mxu0
      %v4788 = vadd.f32 %v4595, %v4787
      %v4789 = vpop.f32.mrb[0].mxu0
      %v4790 = vadd.f32 %v4597, %v4789
      %v4791 = vpop.f32.mrb[0].mxu0
      %v4792 = vadd.f32 %v4599, %v4791
      %4793 = vmatprep.mubr.bf16.mxu0 0
      %4794 = vmatmul.mubr.bf16.gmra.mrb[0].mxu0 %v2230
      %v4795 = vpop.f32.mrb[0].mxu0
      %v4796 = vadd.f32 %v4603, %v4795
      %v4797 = vpop.f32.mrb[0].mxu0
      %v4798 = vadd.f32 %v4605, %v4797
      %v4799 = vpop.f32.mrb[0].mxu0
      %v4800 = vadd.f32 %v4607, %v4799
      %v4801 = vpop.f32.mrb[0].mxu0
      %v4802 = vadd.f32 %v4609, %v4801
      %4803 = vmatprep.mubr.bf16.mxu0 0
      %4804 = vmatmul.mubr.bf16.gmra.mrb[0].mxu0 %v2235
      %v4805 = vpop.f32.mrb[0].mxu0
      %v4806 = vadd.f32 %v4613, %v4805
      %v4807 = vpop.f32.mrb[0].mxu0
      %v4808 = vadd.f32 %v4615, %v4807
      %v4809 = vpop.f32.mrb[0].mxu0
      %v4810 = vadd.f32 %v4617, %v4809
      %v4811 = vpop.f32.mrb[0].mxu0
      %v4812 = vadd.f32 %v4619, %v4811
      %4813 = vmatprep.mubr.bf16.mxu0 0
      %4814 = vmatmul.mubr.bf16.gmra.mrb[0].mxu0 %v2240
      %v4815 = vpop.f32.mrb[0].mxu0
      %v4816 = vadd.f32 %v4623, %v4815
      %v4817 = vpop.f32.mrb[0].mxu0
      %v4818 = vadd.f32 %v4625, %v4817
      %v4819 = vpop.f32.mrb[0].mxu0
      %v4820 = vadd.f32 %v4627, %v4819
      %v4821 = vpop.f32.mrb[0].mxu0
      %v4822 = vadd.f32 %v4629, %v4821
      %4823 = vmatprep.mubr.bf16.mxu0 0
      %4824 = vmatmul.mubr.bf16.gmra.mrb[0].mxu0 %v2245
      %v4825 = vpop.f32.mrb[0].mxu0
      %v4826 = vadd.f32 %v4633, %v4825
      %v4827 = vpop.f32.mrb[0].mxu0
      %v4828 = vadd.f32 %v4635, %v4827
      %v4829 = vpop.f32.mrb[0].mxu0
      %v4830 = vadd.f32 %v4637, %v4829
      %v4831 = vpop.f32.mrb[0].mxu0
      %v4832 = vadd.f32 %v4639, %v4831
      %4833 = vmatprep.mubr.bf16.mxu0 0
      %4834 = vmatmul.mubr.bf16.gmra.mrb[0].mxu0 %v2250
      %v4835 = vpop.f32.mrb[0].mxu0
      %v4836 = vadd.f32 %v4643, %v4835
      %v4837 = vpop.f32.mrb[0].mxu0
      %v4838 = vadd.f32 %v4645, %v4837
      %v4839 = vpop.f32.mrb[0].mxu0
      %v4840 = vadd.f32 %v4647, %v4839
      %v4841 = vpop.f32.mrb[0].mxu0
      %v4842 = vadd.f32 %v4649, %v4841
      %4843 = vmatprep.mubr.bf16.mxu0 0
      %4844 = vmatmul.mubr.bf16.gmra.mrb[0].mxu0 %v2255
      %v4845 = vpop.f32.mrb[0].mxu0
      %v4846 = vadd.f32 %v4653, %v4845
      %v4847 = vpop.f32.mrb[0].mxu0
      %v4848 = vadd.f32 %v4655, %v4847
      %v4849 = vpop.f32.mrb[0].mxu0
      %v4850 = vadd.f32 %v4657, %v4849
      %v4851 = vpop.f32.mrb[0].mxu0
      %v4852 = vadd.f32 %v4659, %v4851
      %4853 = vdwg.mxu0
      %4854 = vmatprep.subr.bf16.mxu0 %v3221
      %4855 = vmatpush1.bf16.msra.mxu0 %v3220
      %4856 = vmatprep.subr.bf16.mxu0 %v3227
      %4857 = vmatpush1.bf16.msra.mxu0 %v3226
      %4858 = vmatprep.subr.bf16.mxu0 %v3233
      %4859 = vmatpush1.bf16.msra.mxu0 %v3232
      %4860 = vmatprep.subr.bf16.mxu0 %v3239
      %4861 = vmatpush1.bf16.msra.mxu0 %v3238
      %4862 = vmatprep.subr.bf16.mxu0 %v3245
      %4863 = vmatpush1.bf16.msra.mxu0 %v3244
      %4864 = vmatprep.subr.bf16.mxu0 %v3251
      %4865 = vmatpush1.bf16.msra.mxu0 %v3250
      %4866 = vmatprep.subr.bf16.mxu0 %v3257
      %4867 = vmatpush1.bf16.msra.mxu0 %v3256
      %4868 = vmatprep.subr.bf16.mxu0 %v3263
      %4869 = vmatpush1.bf16.msra.mxu0 %v3262
      %4870 = vmatprep.subr.bf16.mxu0 %v3269
      %4871 = vmatpush1.bf16.msra.mxu0 %v3268
      %4872 = vmatprep.subr.bf16.mxu0 %v3275
      %4873 = vmatpush1.bf16.msra.mxu0 %v3274
      %4874 = vmatprep.subr.bf16.mxu0 %v3281
      %4875 = vmatpush1.bf16.msra.mxu0 %v3280
      %4876 = vmatprep.subr.bf16.mxu0 %v3287
      %4877 = vmatpush1.bf16.msra.mxu0 %v3286
      %4878 = vmatprep.subr.bf16.mxu0 %v3293
      %4879 = vmatpush1.bf16.msra.mxu0 %v3292
      %4880 = vmatprep.subr.bf16.mxu0 %v3299
      %4881 = vmatpush1.bf16.msra.mxu0 %v3298
      %4882 = vmatprep.subr.bf16.mxu0 %v3305
      %4883 = vmatpush1.bf16.msra.mxu0 %v3304
      %4884 = vmatprep.subr.bf16.mxu0 %v3311
      %4885 = vmatpush1.bf16.msra.mxu0 %v3310
      %4886 = vmatprep.mubr.bf16.mxu0 %v2177
      %4887 = vmatmul.mubr.bf16.gmra.mrb[0].mxu0 %v2176
      %v4888 = vpop.f32.mrb[0].mxu0
      %v4889 = vadd.f32 0.0, %v4888
      %v4890 = vpop.f32.mrb[0].mxu0
      %v4891 = vadd.f32 0.0, %v4890
      %v4892 = vpop.f32.mrb[0].mxu0
      %v4893 = vadd.f32 0.0, %v4892
      %v4894 = vpop.f32.mrb[0].mxu0
      %v4895 = vadd.f32 0.0, %v4894
      %4896 = vmatprep.mubr.bf16.mxu0 %v2182
      %4897 = vmatmul.mubr.bf16.gmra.mrb[0].mxu0 %v2181
      %v4898 = vpop.f32.mrb[0].mxu0
      %v4899 = vadd.f32 0.0, %v4898
      %v4900 = vpop.f32.mrb[0].mxu0
      %v4901 = vadd.f32 0.0, %v4900
      %v4902 = vpop.f32.mrb[0].mxu0
      %v4903 = vadd.f32 0.0, %v4902
      %v4904 = vpop.f32.mrb[0].mxu0
      %v4905 = vadd.f32 0.0, %v4904
      %4906 = vmatprep.mubr.bf16.mxu0 %v2187
      %4907 = vmatmul.mubr.bf16.gmra.mrb[0].mxu0 %v2186
      %v4908 = vpop.f32.mrb[0].mxu0
      %v4909 = vadd.f32 0.0, %v4908
      %v4910 = vpop.f32.mrb[0].mxu0
      %v4911 = vadd.f32 0.0, %v4910
      %v4912 = vpop.f32.mrb[0].mxu0
      %v4913 = vadd.f32 0.0, %v4912
      %v4914 = vpop.f32.mrb[0].mxu0
      %v4915 = vadd.f32 0.0, %v4914
      %4916 = vmatprep.mubr.bf16.mxu0 %v2192
      %4917 = vmatmul.mubr.bf16.gmra.mrb[0].mxu0 %v2191
      %v4918 = vpop.f32.mrb[0].mxu0
      %v4919 = vadd.f32 0.0, %v4918
      %v4920 = vpop.f32.mrb[0].mxu0
      %v4921 = vadd.f32 0.0, %v4920
      %v4922 = vpop.f32.mrb[0].mxu0
      %v4923 = vadd.f32 0.0, %v4922
      %v4924 = vpop.f32.mrb[0].mxu0
      %v4925 = vadd.f32 0.0, %v4924
      %4926 = vmatprep.mubr.bf16.mxu0 %v2197
      %4927 = vmatmul.mubr.bf16.gmra.mrb[0].mxu0 %v2196
      %v4928 = vpop.f32.mrb[0].mxu0
      %v4929 = vadd.f32 0.0, %v4928
      %v4930 = vpop.f32.mrb[0].mxu0
      %v4931 = vadd.f32 0.0, %v4930
      %v4932 = vpop.f32.mrb[0].mxu0
      %v4933 = vadd.f32 0.0, %v4932
      %v4934 = vpop.f32.mrb[0].mxu0
      %v4935 = vadd.f32 0.0, %v4934
      %4936 = vmatprep.mubr.bf16.mxu0 %v2202
      %4937 = vmatmul.mubr.bf16.gmra.mrb[0].mxu0 %v2201
      %v4938 = vpop.f32.mrb[0].mxu0
      %v4939 = vadd.f32 0.0, %v4938
      %v4940 = vpop.f32.mrb[0].mxu0
      %v4941 = vadd.f32 0.0, %v4940
      %v4942 = vpop.f32.mrb[0].mxu0
      %v4943 = vadd.f32 0.0, %v4942
      %v4944 = vpop.f32.mrb[0].mxu0
      %v4945 = vadd.f32 0.0, %v4944
      %4946 = vmatprep.mubr.bf16.mxu0 %v2207
      %4947 = vmatmul.mubr.bf16.gmra.mrb[0].mxu0 %v2206
      %v4948 = vpop.f32.mrb[0].mxu0
      %v4949 = vadd.f32 0.0, %v4948
      %v4950 = vpop.f32.mrb[0].mxu0
      %v4951 = vadd.f32 0.0, %v4950
      %v4952 = vpop.f32.mrb[0].mxu0
      %v4953 = vadd.f32 0.0, %v4952
      %v4954 = vpop.f32.mrb[0].mxu0
      %v4955 = vadd.f32 0.0, %v4954
      %4956 = vmatprep.mubr.bf16.mxu0 %v2212
      %4957 = vmatmul.mubr.bf16.gmra.mrb[0].mxu0 %v2211
      %v4958 = vpop.f32.mrb[0].mxu0
      %v4959 = vadd.f32 0.0, %v4958
      %v4960 = vpop.f32.mrb[0].mxu0
      %v4961 = vadd.f32 0.0, %v4960
      %v4962 = vpop.f32.mrb[0].mxu0
      %v4963 = vadd.f32 0.0, %v4962
      %v4964 = vpop.f32.mrb[0].mxu0
      %v4965 = vadd.f32 0.0, %v4964
      %4966 = vmatprep.mubr.bf16.mxu0 %v2217
      %4967 = vmatmul.mubr.bf16.gmra.mrb[0].mxu0 %v2216
      %v4968 = vpop.f32.mrb[0].mxu0
      %v4969 = vadd.f32 0.0, %v4968
      %v4970 = vpop.f32.mrb[0].mxu0
      %v4971 = vadd.f32 0.0, %v4970
      %v4972 = vpop.f32.mrb[0].mxu0
      %v4973 = vadd.f32 0.0, %v4972
      %v4974 = vpop.f32.mrb[0].mxu0
      %v4975 = vadd.f32 0.0, %v4974
      %4976 = vmatprep.mubr.bf16.mxu0 %v2222
      %4977 = vmatmul.mubr.bf16.gmra.mrb[0].mxu0 %v2221
      %v4978 = vpop.f32.mrb[0].mxu0
      %v4979 = vadd.f32 0.0, %v4978
      %v4980 = vpop.f32.mrb[0].mxu0
      %v4981 = vadd.f32 0.0, %v4980
      %v4982 = vpop.f32.mrb[0].mxu0
      %v4983 = vadd.f32 0.0, %v4982
      %v4984 = vpop.f32.mrb[0].mxu0
      %v4985 = vadd.f32 0.0, %v4984
      %4986 = vmatprep.mubr.bf16.mxu0 %v2227
      %4987 = vmatmul.mubr.bf16.gmra.mrb[0].mxu0 %v2226
      %v4988 = vpop.f32.mrb[0].mxu0
      %v4989 = vadd.f32 0.0, %v4988
      %v4990 = vpop.f32.mrb[0].mxu0
      %v4991 = vadd.f32 0.0, %v4990
      %v4992 = vpop.f32.mrb[0].mxu0
      %v4993 = vadd.f32 0.0, %v4992
      %v4994 = vpop.f32.mrb[0].mxu0
      %v4995 = vadd.f32 0.0, %v4994
      %4996 = vmatprep.mubr.bf16.mxu0 %v2232
      %4997 = vmatmul.mubr.bf16.gmra.mrb[0].mxu0 %v2231
      %v4998 = vpop.f32.mrb[0].mxu0
      %v4999 = vadd.f32 0.0, %v4998
      %v5000 = vpop.f32.mrb[0].mxu0
      %v5001 = vadd.f32 0.0, %v5000
      %v5002 = vpop.f32.mrb[0].mxu0
      %v5003 = vadd.f32 0.0, %v5002
      %v5004 = vpop.f32.mrb[0].mxu0
      %v5005 = vadd.f32 0.0, %v5004
      %5006 = vmatprep.mubr.bf16.mxu0 %v2237
      %5007 = vmatmul.mubr.bf16.gmra.mrb[0].mxu0 %v2236
      %v5008 = vpop.f32.mrb[0].mxu0
      %v5009 = vadd.f32 0.0, %v5008
      %v5010 = vpop.f32.mrb[0].mxu0
      %v5011 = vadd.f32 0.0, %v5010
      %v5012 = vpop.f32.mrb[0].mxu0
      %v5013 = vadd.f32 0.0, %v5012
      %v5014 = vpop.f32.mrb[0].mxu0
      %v5015 = vadd.f32 0.0, %v5014
      %5016 = vmatprep.mubr.bf16.mxu0 %v2242
      %5017 = vmatmul.mubr.bf16.gmra.mrb[0].mxu0 %v2241
      %v5018 = vpop.f32.mrb[0].mxu0
      %v5019 = vadd.f32 0.0, %v5018
      %v5020 = vpop.f32.mrb[0].mxu0
      %v5021 = vadd.f32 0.0, %v5020
      %v5022 = vpop.f32.mrb[0].mxu0
      %v5023 = vadd.f32 0.0, %v5022
      %v5024 = vpop.f32.mrb[0].mxu0
      %v5025 = vadd.f32 0.0, %v5024
      %5026 = vmatprep.mubr.bf16.mxu0 %v2247
      %5027 = vmatmul.mubr.bf16.gmra.mrb[0].mxu0 %v2246
      %v5028 = vpop.f32.mrb[0].mxu0
      %v5029 = vadd.f32 0.0, %v5028
      %v5030 = vpop.f32.mrb[0].mxu0
      %v5031 = vadd.f32 0.0, %v5030
      %v5032 = vpop.f32.mrb[0].mxu0
      %v5033 = vadd.f32 0.0, %v5032
      %v5034 = vpop.f32.mrb[0].mxu0
      %v5035 = vadd.f32 0.0, %v5034
      %5036 = vmatprep.mubr.bf16.mxu0 %v2252
      %5037 = vmatmul.mubr.bf16.gmra.mrb[0].mxu0 %v2251
      %v5038 = vpop.f32.mrb[0].mxu0
      %v5039 = vadd.f32 0.0, %v5038
      %v5040 = vpop.f32.mrb[0].mxu0
      %v5041 = vadd.f32 0.0, %v5040
      %v5042 = vpop.f32.mrb[0].mxu0
      %v5043 = vadd.f32 0.0, %v5042
      %v5044 = vpop.f32.mrb[0].mxu0
      %v5045 = vadd.f32 0.0, %v5044
      %5046 = vdwg.mxu0
      %5047 = vmatprep.subr.bf16.mxu0 %v3317
      %5048 = vmatpush1.bf16.msra.mxu0 %v3316
      %5049 = vmatprep.subr.bf16.mxu0 %v3323
      %5050 = vmatpush1.bf16.msra.mxu0 %v3322
      %5051 = vmatprep.subr.bf16.mxu0 %v3329
      %5052 = vmatpush1.bf16.msra.mxu0 %v3328
      %5053 = vmatprep.subr.bf16.mxu0 %v3335
      %5054 = vmatpush1.bf16.msra.mxu0 %v3334
      %5055 = vmatprep.subr.bf16.mxu0 %v3341
      %5056 = vmatpush1.bf16.msra.mxu0 %v3340
      %5057 = vmatprep.subr.bf16.mxu0 %v3347
      %5058 = vmatpush1.bf16.msra.mxu0 %v3346
      %5059 = vmatprep.subr.bf16.mxu0 %v3353
      %5060 = vmatpush1.bf16.msra.mxu0 %v3352
      %5061 = vmatprep.subr.bf16.mxu0 %v3359
      %5062 = vmatpush1.bf16.msra.mxu0 %v3358
      %5063 = vmatprep.subr.bf16.mxu0 %v3365
      %5064 = vmatpush1.bf16.msra.mxu0 %v3364
      %5065 = vmatprep.subr.bf16.mxu0 %v3371
      %5066 = vmatpush1.bf16.msra.mxu0 %v3370
      %5067 = vmatprep.subr.bf16.mxu0 %v3377
      %5068 = vmatpush1.bf16.msra.mxu0 %v3376
      %5069 = vmatprep.subr.bf16.mxu0 %v3383
      %5070 = vmatpush1.bf16.msra.mxu0 %v3382
      %5071 = vmatprep.subr.bf16.mxu0 %v3389
      %5072 = vmatpush1.bf16.msra.mxu0 %v3388
      %5073 = vmatprep.subr.bf16.mxu0 %v3395
      %5074 = vmatpush1.bf16.msra.mxu0 %v3394
      %5075 = vmatprep.subr.bf16.mxu0 %v3401
      %5076 = vmatpush1.bf16.msra.mxu0 %v3400
      %5077 = vmatprep.subr.bf16.mxu0 %v3407
      %5078 = vmatpush1.bf16.msra.mxu0 %v3406
      %5079 = vmatprep.mubr.bf16.mxu0 %v2179
      %5080 = vmatmul.mubr.bf16.gmra.mrb[0].mxu0 %v2178
      %v5081 = vpop.f32.mrb[0].mxu0
      %v5082 = vadd.f32 %v4889, %v5081
      %v5083 = vpop.f32.mrb[0].mxu0
      %v5084 = vadd.f32 %v4891, %v5083
      %v5085 = vpop.f32.mrb[0].mxu0
      %v5086 = vadd.f32 %v4893, %v5085
      %v5087 = vpop.f32.mrb[0].mxu0
      %v5088 = vadd.f32 %v4895, %v5087
      %5089 = vmatprep.mubr.bf16.mxu0 %v2184
      %5090 = vmatmul.mubr.bf16.gmra.mrb[0].mxu0 %v2183
      %v5091 = vpop.f32.mrb[0].mxu0
      %v5092 = vadd.f32 %v4899, %v5091
      %v5093 = vpop.f32.mrb[0].mxu0
      %v5094 = vadd.f32 %v4901, %v5093
      %v5095 = vpop.f32.mrb[0].mxu0
      %v5096 = vadd.f32 %v4903, %v5095
      %v5097 = vpop.f32.mrb[0].mxu0
      %v5098 = vadd.f32 %v4905, %v5097
      %5099 = vmatprep.mubr.bf16.mxu0 %v2189
      %5100 = vmatmul.mubr.bf16.gmra.mrb[0].mxu0 %v2188
      %v5101 = vpop.f32.mrb[0].mxu0
      %v5102 = vadd.f32 %v4909, %v5101
      %v5103 = vpop.f32.mrb[0].mxu0
      %v5104 = vadd.f32 %v4911, %v5103
      %v5105 = vpop.f32.mrb[0].mxu0
      %v5106 = vadd.f32 %v4913, %v5105
      %v5107 = vpop.f32.mrb[0].mxu0
      %v5108 = vadd.f32 %v4915, %v5107
      %5109 = vmatprep.mubr.bf16.mxu0 %v2194
      %5110 = vmatmul.mubr.bf16.gmra.mrb[0].mxu0 %v2193
      %v5111 = vpop.f32.mrb[0].mxu0
      %v5112 = vadd.f32 %v4919, %v5111
      %v5113 = vpop.f32.mrb[0].mxu0
      %v5114 = vadd.f32 %v4921, %v5113
      %v5115 = vpop.f32.mrb[0].mxu0
      %v5116 = vadd.f32 %v4923, %v5115
      %v5117 = vpop.f32.mrb[0].mxu0
      %v5118 = vadd.f32 %v4925, %v5117
      %5119 = vmatprep.mubr.bf16.mxu0 %v2199
      %5120 = vmatmul.mubr.bf16.gmra.mrb[0].mxu0 %v2198
      %v5121 = vpop.f32.mrb[0].mxu0
      %v5122 = vadd.f32 %v4929, %v5121
      %v5123 = vpop.f32.mrb[0].mxu0
      %v5124 = vadd.f32 %v4931, %v5123
      %v5125 = vpop.f32.mrb[0].mxu0
      %v5126 = vadd.f32 %v4933, %v5125
      %v5127 = vpop.f32.mrb[0].mxu0
      %v5128 = vadd.f32 %v4935, %v5127
      %5129 = vmatprep.mubr.bf16.mxu0 %v2204
      %5130 = vmatmul.mubr.bf16.gmra.mrb[0].mxu0 %v2203
      %v5131 = vpop.f32.mrb[0].mxu0
      %v5132 = vadd.f32 %v4939, %v5131
      %v5133 = vpop.f32.mrb[0].mxu0
      %v5134 = vadd.f32 %v4941, %v5133
      %v5135 = vpop.f32.mrb[0].mxu0
      %v5136 = vadd.f32 %v4943, %v5135
      %v5137 = vpop.f32.mrb[0].mxu0
      %v5138 = vadd.f32 %v4945, %v5137
      %5139 = vmatprep.mubr.bf16.mxu0 %v2209
      %5140 = vmatmul.mubr.bf16.gmra.mrb[0].mxu0 %v2208
      %v5141 = vpop.f32.mrb[0].mxu0
      %v5142 = vadd.f32 %v4949, %v5141
      %v5143 = vpop.f32.mrb[0].mxu0
      %v5144 = vadd.f32 %v4951, %v5143
      %v5145 = vpop.f32.mrb[0].mxu0
      %v5146 = vadd.f32 %v4953, %v5145
      %v5147 = vpop.f32.mrb[0].mxu0
      %v5148 = vadd.f32 %v4955, %v5147
      %5149 = vmatprep.mubr.bf16.mxu0 %v2214
      %5150 = vmatmul.mubr.bf16.gmra.mrb[0].mxu0 %v2213
      %v5151 = vpop.f32.mrb[0].mxu0
      %v5152 = vadd.f32 %v4959, %v5151
      %v5153 = vpop.f32.mrb[0].mxu0
      %v5154 = vadd.f32 %v4961, %v5153
      %v5155 = vpop.f32.mrb[0].mxu0
      %v5156 = vadd.f32 %v4963, %v5155
      %v5157 = vpop.f32.mrb[0].mxu0
      %v5158 = vadd.f32 %v4965, %v5157
      %5159 = vmatprep.mubr.bf16.mxu0 %v2219
      %5160 = vmatmul.mubr.bf16.gmra.mrb[0].mxu0 %v2218
      %v5161 = vpop.f32.mrb[0].mxu0
      %v5162 = vadd.f32 %v4969, %v5161
      %v5163 = vpop.f32.mrb[0].mxu0
      %v5164 = vadd.f32 %v4971, %v5163
      %v5165 = vpop.f32.mrb[0].mxu0
      %v5166 = vadd.f32 %v4973, %v5165
      %v5167 = vpop.f32.mrb[0].mxu0
      %v5168 = vadd.f32 %v4975, %v5167
      %5169 = vmatprep.mubr.bf16.mxu0 %v2224
      %5170 = vmatmul.mubr.bf16.gmra.mrb[0].mxu0 %v2223
      %v5171 = vpop.f32.mrb[0].mxu0
      %v5172 = vadd.f32 %v4979, %v5171
      %v5173 = vpop.f32.mrb[0].mxu0
      %v5174 = vadd.f32 %v4981, %v5173
      %v5175 = vpop.f32.mrb[0].mxu0
      %v5176 = vadd.f32 %v4983, %v5175
      %v5177 = vpop.f32.mrb[0].mxu0
      %v5178 = vadd.f32 %v4985, %v5177
      %5179 = vmatprep.mubr.bf16.mxu0 %v2229
      %5180 = vmatmul.mubr.bf16.gmra.mrb[0].mxu0 %v2228
      %v5181 = vpop.f32.mrb[0].mxu0
      %v5182 = vadd.f32 %v4989, %v5181
      %v5183 = vpop.f32.mrb[0].mxu0
      %v5184 = vadd.f32 %v4991, %v5183
      %v5185 = vpop.f32.mrb[0].mxu0
      %v5186 = vadd.f32 %v4993, %v5185
      %v5187 = vpop.f32.mrb[0].mxu0
      %v5188 = vadd.f32 %v4995, %v5187
      %5189 = vmatprep.mubr.bf16.mxu0 %v2234
      %5190 = vmatmul.mubr.bf16.gmra.mrb[0].mxu0 %v2233
      %v5191 = vpop.f32.mrb[0].mxu0
      %v5192 = vadd.f32 %v4999, %v5191
      %v5193 = vpop.f32.mrb[0].mxu0
      %v5194 = vadd.f32 %v5001, %v5193
      %v5195 = vpop.f32.mrb[0].mxu0
      %v5196 = vadd.f32 %v5003, %v5195
      %v5197 = vpop.f32.mrb[0].mxu0
      %v5198 = vadd.f32 %v5005, %v5197
      %5199 = vmatprep.mubr.bf16.mxu0 %v2239
      %5200 = vmatmul.mubr.bf16.gmra.mrb[0].mxu0 %v2238
      %v5201 = vpop.f32.mrb[0].mxu0
      %v5202 = vadd.f32 %v5009, %v5201
      %v5203 = vpop.f32.mrb[0].mxu0
      %v5204 = vadd.f32 %v5011, %v5203
      %v5205 = vpop.f32.mrb[0].mxu0
      %v5206 = vadd.f32 %v5013, %v5205
      %v5207 = vpop.f32.mrb[0].mxu0
      %v5208 = vadd.f32 %v5015, %v5207
      %5209 = vmatprep.mubr.bf16.mxu0 %v2244
      %5210 = vmatmul.mubr.bf16.gmra.mrb[0].mxu0 %v2243
      %v5211 = vpop.f32.mrb[0].mxu0
      %v5212 = vadd.f32 %v5019, %v5211
      %v5213 = vpop.f32.mrb[0].mxu0
      %v5214 = vadd.f32 %v5021, %v5213
      %v5215 = vpop.f32.mrb[0].mxu0
      %v5216 = vadd.f32 %v5023, %v5215
      %v5217 = vpop.f32.mrb[0].mxu0
      %v5218 = vadd.f32 %v5025, %v5217
      %5219 = vmatprep.mubr.bf16.mxu0 %v2249
      %5220 = vmatmul.mubr.bf16.gmra.mrb[0].mxu0 %v2248
      %v5221 = vpop.f32.mrb[0].mxu0
      %v5222 = vadd.f32 %v5029, %v5221
      %v5223 = vpop.f32.mrb[0].mxu0
      %v5224 = vadd.f32 %v5031, %v5223
      %v5225 = vpop.f32.mrb[0].mxu0
      %v5226 = vadd.f32 %v5033, %v5225
      %v5227 = vpop.f32.mrb[0].mxu0
      %v5228 = vadd.f32 %v5035, %v5227
      %5229 = vmatprep.mubr.bf16.mxu0 %v2254
      %5230 = vmatmul.mubr.bf16.gmra.mrb[0].mxu0 %v2253
      %v5231 = vpop.f32.mrb[0].mxu0
      %v5232 = vadd.f32 %v5039, %v5231
      %v5233 = vpop.f32.mrb[0].mxu0
      %v5234 = vadd.f32 %v5041, %v5233
      %v5235 = vpop.f32.mrb[0].mxu0
      %v5236 = vadd.f32 %v5043, %v5235
      %v5237 = vpop.f32.mrb[0].mxu0
      %v5238 = vadd.f32 %v5045, %v5237
      %5239 = vdwg.mxu0
      %5240 = vmatprep.subr.bf16.mxu0 %v3413
      %5241 = vmatpush1.bf16.msra.mxu0 %v3412
      %5242 = vmatprep.subr.bf16.mxu0 %v3419
      %5243 = vmatpush1.bf16.msra.mxu0 %v3418
      %5244 = vmatprep.subr.bf16.mxu0 %v3425
      %5245 = vmatpush1.bf16.msra.mxu0 %v3424
      %5246 = vmatprep.subr.bf16.mxu0 %v3431
      %5247 = vmatpush1.bf16.msra.mxu0 %v3430
      %5248 = vmatprep.subr.bf16.mxu0 %v3437
      %5249 = vmatpush1.bf16.msra.mxu0 %v3436
      %5250 = vmatprep.subr.bf16.mxu0 %v3443
      %5251 = vmatpush1.bf16.msra.mxu0 %v3442
      %5252 = vmatprep.subr.bf16.mxu0 %v3449
      %5253 = vmatpush1.bf16.msra.mxu0 %v3448
      %5254 = vmatprep.subr.bf16.mxu0 %v3455
      %5255 = vmatpush1.bf16.msra.mxu0 %v3454
      %5256 = vmatprep.subr.bf16.mxu0 0
      %5257 = vmatpush1.bf16.msra.mxu0 0
      %5258 = vmatprep.subr.bf16.mxu0 0
      %5259 = vmatpush1.bf16.msra.mxu0 0
      %5260 = vmatprep.subr.bf16.mxu0 0
      %5261 = vmatpush1.bf16.msra.mxu0 0
      %5262 = vmatprep.subr.bf16.mxu0 0
      %5263 = vmatpush1.bf16.msra.mxu0 0
      %5264 = vmatprep.subr.bf16.mxu0 0
      %5265 = vmatpush1.bf16.msra.mxu0 0
      %5266 = vmatprep.subr.bf16.mxu0 0
      %5267 = vmatpush1.bf16.msra.mxu0 0
      %5268 = vmatprep.subr.bf16.mxu0 0
      %5269 = vmatpush1.bf16.msra.mxu0 0
      %5270 = vmatprep.subr.bf16.mxu0 0
      %5271 = vmatpush1.bf16.msra.mxu0 0
      %5272 = vmatprep.mubr.bf16.mxu0 0
      %5273 = vmatmul.mubr.bf16.gmra.mrb[0].mxu0 %v2180
      %v5274 = vpop.f32.mrb[0].mxu0
      %v5275 = vadd.f32 %v5082, %v5274
      %v5276 = vpop.f32.mrb[0].mxu0
      %v5277 = vadd.f32 %v5084, %v5276
      %v5278 = vpop.f32.mrb[0].mxu0
      %v5279 = vadd.f32 %v5086, %v5278
      %v5280 = vpop.f32.mrb[0].mxu0
      %v5281 = vadd.f32 %v5088, %v5280
      %5282 = vmatprep.mubr.bf16.mxu0 0
      %5283 = vmatmul.mubr.bf16.gmra.mrb[0].mxu0 %v2185
      %v5284 = vpop.f32.mrb[0].mxu0
      %v5285 = vadd.f32 %v5092, %v5284
      %v5286 = vpop.f32.mrb[0].mxu0
      %v5287 = vadd.f32 %v5094, %v5286
      %v5288 = vpop.f32.mrb[0].mxu0
      %v5289 = vadd.f32 %v5096, %v5288
      %v5290 = vpop.f32.mrb[0].mxu0
      %v5291 = vadd.f32 %v5098, %v5290
      %5292 = vmatprep.mubr.bf16.mxu0 0
      %5293 = vmatmul.mubr.bf16.gmra.mrb[0].mxu0 %v2190
      %v5294 = vpop.f32.mrb[0].mxu0
      %v5295 = vadd.f32 %v5102, %v5294
      %v5296 = vpop.f32.mrb[0].mxu0
      %v5297 = vadd.f32 %v5104, %v5296
      %v5298 = vpop.f32.mrb[0].mxu0
      %v5299 = vadd.f32 %v5106, %v5298
      %v5300 = vpop.f32.mrb[0].mxu0
      %v5301 = vadd.f32 %v5108, %v5300
      %5302 = vmatprep.mubr.bf16.mxu0 0
      %5303 = vmatmul.mubr.bf16.gmra.mrb[0].mxu0 %v2195
      %v5304 = vpop.f32.mrb[0].mxu0
      %v5305 = vadd.f32 %v5112, %v5304
      %v5306 = vpop.f32.mrb[0].mxu0
      %v5307 = vadd.f32 %v5114, %v5306
      %v5308 = vpop.f32.mrb[0].mxu0
      %v5309 = vadd.f32 %v5116, %v5308
      %v5310 = vpop.f32.mrb[0].mxu0
      %v5311 = vadd.f32 %v5118, %v5310
      %5312 = vmatprep.mubr.bf16.mxu0 0
      %5313 = vmatmul.mubr.bf16.gmra.mrb[0].mxu0 %v2200
      %v5314 = vpop.f32.mrb[0].mxu0
      %v5315 = vadd.f32 %v5122, %v5314
      %v5316 = vpop.f32.mrb[0].mxu0
      %v5317 = vadd.f32 %v5124, %v5316
      %v5318 = vpop.f32.mrb[0].mxu0
      %v5319 = vadd.f32 %v5126, %v5318
      %v5320 = vpop.f32.mrb[0].mxu0
      %v5321 = vadd.f32 %v5128, %v5320
      %5322 = vmatprep.mubr.bf16.mxu0 0
      %5323 = vmatmul.mubr.bf16.gmra.mrb[0].mxu0 %v2205
      %v5324 = vpop.f32.mrb[0].mxu0
      %v5325 = vadd.f32 %v5132, %v5324
      %v5326 = vpop.f32.mrb[0].mxu0
      %v5327 = vadd.f32 %v5134, %v5326
      %v5328 = vpop.f32.mrb[0].mxu0
      %v5329 = vadd.f32 %v5136, %v5328
      %v5330 = vpop.f32.mrb[0].mxu0
      %v5331 = vadd.f32 %v5138, %v5330
      %5332 = vmatprep.mubr.bf16.mxu0 0
      %5333 = vmatmul.mubr.bf16.gmra.mrb[0].mxu0 %v2210
      %v5334 = vpop.f32.mrb[0].mxu0
      %v5335 = vadd.f32 %v5142, %v5334
      %v5336 = vpop.f32.mrb[0].mxu0
      %v5337 = vadd.f32 %v5144, %v5336
      %v5338 = vpop.f32.mrb[0].mxu0
      %v5339 = vadd.f32 %v5146, %v5338
      %v5340 = vpop.f32.mrb[0].mxu0
      %v5341 = vadd.f32 %v5148, %v5340
      %5342 = vmatprep.mubr.bf16.mxu0 0
      %5343 = vmatmul.mubr.bf16.gmra.mrb[0].mxu0 %v2215
      %v5344 = vpop.f32.mrb[0].mxu0
      %v5345 = vadd.f32 %v5152, %v5344
      %v5346 = vpop.f32.mrb[0].mxu0
      %v5347 = vadd.f32 %v5154, %v5346
      %v5348 = vpop.f32.mrb[0].mxu0
      %v5349 = vadd.f32 %v5156, %v5348
      %v5350 = vpop.f32.mrb[0].mxu0
      %v5351 = vadd.f32 %v5158, %v5350
      %5352 = vmatprep.mubr.bf16.mxu0 0
      %5353 = vmatmul.mubr.bf16.gmra.mrb[0].mxu0 %v2220
      %v5354 = vpop.f32.mrb[0].mxu0
      %v5355 = vadd.f32 %v5162, %v5354
      %v5356 = vpop.f32.mrb[0].mxu0
      %v5357 = vadd.f32 %v5164, %v5356
      %v5358 = vpop.f32.mrb[0].mxu0
      %v5359 = vadd.f32 %v5166, %v5358
      %v5360 = vpop.f32.mrb[0].mxu0
      %v5361 = vadd.f32 %v5168, %v5360
      %5362 = vmatprep.mubr.bf16.mxu0 0
      %5363 = vmatmul.mubr.bf16.gmra.mrb[0].mxu0 %v2225
      %v5364 = vpop.f32.mrb[0].mxu0
      %v5365 = vadd.f32 %v5172, %v5364
      %v5366 = vpop.f32.mrb[0].mxu0
      %v5367 = vadd.f32 %v5174, %v5366
      %v5368 = vpop.f32.mrb[0].mxu0
      %v5369 = vadd.f32 %v5176, %v5368
      %v5370 = vpop.f32.mrb[0].mxu0
      %v5371 = vadd.f32 %v5178, %v5370
      %5372 = vmatprep.mubr.bf16.mxu0 0
      %5373 = vmatmul.mubr.bf16.gmra.mrb[0].mxu0 %v2230
      %v5374 = vpop.f32.mrb[0].mxu0
      %v5375 = vadd.f32 %v5182, %v5374
      %v5376 = vpop.f32.mrb[0].mxu0
      %v5377 = vadd.f32 %v5184, %v5376
      %v5378 = vpop.f32.mrb[0].mxu0
      %v5379 = vadd.f32 %v5186, %v5378
      %v5380 = vpop.f32.mrb[0].mxu0
      %v5381 = vadd.f32 %v5188, %v5380
      %5382 = vmatprep.mubr.bf16.mxu0 0
      %5383 = vmatmul.mubr.bf16.gmra.mrb[0].mxu0 %v2235
      %v5384 = vpop.f32.mrb[0].mxu0
      %v5385 = vadd.f32 %v5192, %v5384
      %v5386 = vpop.f32.mrb[0].mxu0
      %v5387 = vadd.f32 %v5194, %v5386
      %v5388 = vpop.f32.mrb[0].mxu0
      %v5389 = vadd.f32 %v5196, %v5388
      %v5390 = vpop.f32.mrb[0].mxu0
      %v5391 = vadd.f32 %v5198, %v5390
      %5392 = vmatprep.mubr.bf16.mxu0 0
      %5393 = vmatmul.mubr.bf16.gmra.mrb[0].mxu0 %v2240
      %v5394 = vpop.f32.mrb[0].mxu0
      %v5395 = vadd.f32 %v5202, %v5394
      %v5396 = vpop.f32.mrb[0].mxu0
      %v5397 = vadd.f32 %v5204, %v5396
      %v5398 = vpop.f32.mrb[0].mxu0
      %v5399 = vadd.f32 %v5206, %v5398
      %v5400 = vpop.f32.mrb[0].mxu0
      %v5401 = vadd.f32 %v5208, %v5400
      %5402 = vmatprep.mubr.bf16.mxu0 0
      %5403 = vmatmul.mubr.bf16.gmra.mrb[0].mxu0 %v2245
      %v5404 = vpop.f32.mrb[0].mxu0
      %v5405 = vadd.f32 %v5212, %v5404
      %v5406 = vpop.f32.mrb[0].mxu0
      %v5407 = vadd.f32 %v5214, %v5406
      %v5408 = vpop.f32.mrb[0].mxu0
      %v5409 = vadd.f32 %v5216, %v5408
      %v5410 = vpop.f32.mrb[0].mxu0
      %v5411 = vadd.f32 %v5218, %v5410
      %5412 = vmatprep.mubr.bf16.mxu0 0
      %5413 = vmatmul.mubr.bf16.gmra.mrb[0].mxu0 %v2250
      %v5414 = vpop.f32.mrb[0].mxu0
      %v5415 = vadd.f32 %v5222, %v5414
      %v5416 = vpop.f32.mrb[0].mxu0
      %v5417 = vadd.f32 %v5224, %v5416
      %v5418 = vpop.f32.mrb[0].mxu0
      %v5419 = vadd.f32 %v5226, %v5418
      %v5420 = vpop.f32.mrb[0].mxu0
      %v5421 = vadd.f32 %v5228, %v5420
      %5422 = vmatprep.mubr.bf16.mxu0 0
      %5423 = vmatmul.mubr.bf16.gmra.mrb[0].mxu0 %v2255
      %v5424 = vpop.f32.mrb[0].mxu0
      %v5425 = vadd.f32 %v5232, %v5424
      %v5426 = vpop.f32.mrb[0].mxu0
      %v5427 = vadd.f32 %v5234, %v5426
      %v5428 = vpop.f32.mrb[0].mxu0
      %v5429 = vadd.f32 %v5236, %v5428
      %v5430 = vpop.f32.mrb[0].mxu0
      %v5431 = vadd.f32 %v5238, %v5430
      %5432 = vdwg.mxu0
      %v5433 = vmul.f32 %v4117, %v4117
      %v5434 = vmul.f32 %v4119, %v4119
      %v5435 = vmul.f32 %v4696, %v4696
      %v5436 = vmul.f32 %v4121, %v4121
      %v5437 = vmul.f32 %v4123, %v4123
      %v5438 = vmul.f32 %v4700, %v4700
      %v5439 = vmul.f32 %v4127, %v4127
      %v5440 = vmul.f32 %v4129, %v4129
      %v5441 = vmul.f32 %v4706, %v4706
      %v5442 = vmul.f32 %v4131, %v4131
      %v5443 = vmul.f32 %v4133, %v4133
      %v5444 = vmul.f32 %v4710, %v4710
      %v5445 = vmul.f32 %v4137, %v4137
      %v5446 = vmul.f32 %v4139, %v4139
      %v5447 = vmul.f32 %v4716, %v4716
      %v5448 = vmul.f32 %v4141, %v4141
      %v5449 = vmul.f32 %v4143, %v4143
      %v5450 = vmul.f32 %v4720, %v4720
      %v5451 = vmul.f32 %v4147, %v4147
      %v5452 = vmul.f32 %v4149, %v4149
      %v5453 = vmul.f32 %v4726, %v4726
      %v5454 = vmul.f32 %v4151, %v4151
      %v5455 = vmul.f32 %v4153, %v4153
      %v5456 = vmul.f32 %v4730, %v4730
      %v5457 = vmul.f32 %v4157, %v4157
      %v5458 = vmul.f32 %v4159, %v4159
      %v5459 = vmul.f32 %v4736, %v4736
      %v5460 = vmul.f32 %v4161, %v4161
      %v5461 = vmul.f32 %v4163, %v4163
      %v5462 = vmul.f32 %v4740, %v4740
      %v5463 = vmul.f32 %v4167, %v4167
      %v5464 = vmul.f32 %v4169, %v4169
      %v5465 = vmul.f32 %v4746, %v4746
      %v5466 = vmul.f32 %v4171, %v4171
      %v5467 = vmul.f32 %v4173, %v4173
      %v5468 = vmul.f32 %v4750, %v4750
      %v5469 = vmul.f32 %v4177, %v4177
      %v5470 = vmul.f32 %v4179, %v4179
      %v5471 = vmul.f32 %v4756, %v4756
      %v5472 = vmul.f32 %v4181, %v4181
      %v5473 = vmul.f32 %v4183, %v4183
      %v5474 = vmul.f32 %v4760, %v4760
      %v5475 = vmul.f32 %v4187, %v4187
      %v5476 = vmul.f32 %v4189, %v4189
      %v5477 = vmul.f32 %v4766, %v4766
      %v5478 = vmul.f32 %v4191, %v4191
      %v5479 = vmul.f32 %v4193, %v4193
      %v5480 = vmul.f32 %v4770, %v4770
      %v5481 = vmul.f32 %v4197, %v4197
      %v5482 = vmul.f32 %v4199, %v4199
      %v5483 = vmul.f32 %v4776, %v4776
      %v5484 = vmul.f32 %v4201, %v4201
      %v5485 = vmul.f32 %v4203, %v4203
      %v5486 = vmul.f32 %v4780, %v4780
      %v5487 = vmul.f32 %v4207, %v4207
      %v5488 = vmul.f32 %v4209, %v4209
      %v5489 = vmul.f32 %v4786, %v4786
      %v5490 = vmul.f32 %v4211, %v4211
      %v5491 = vmul.f32 %v4213, %v4213
      %v5492 = vmul.f32 %v4790, %v4790
      %v5493 = vmul.f32 %v4217, %v4217
      %v5494 = vmul.f32 %v4219, %v4219
      %v5495 = vmul.f32 %v4796, %v4796
      %v5496 = vmul.f32 %v4221, %v4221
      %v5497 = vmul.f32 %v4223, %v4223
      %v5498 = vmul.f32 %v4800, %v4800
      %v5499 = vmul.f32 %v4227, %v4227
      %v5500 = vmul.f32 %v4229, %v4229
      %v5501 = vmul.f32 %v4806, %v4806
      %v5502 = vmul.f32 %v4231, %v4231
      %v5503 = vmul.f32 %v4233, %v4233
      %v5504 = vmul.f32 %v4810, %v4810
      %v5505 = vmul.f32 %v4237, %v4237
      %v5506 = vmul.f32 %v4239, %v4239
      %v5507 = vmul.f32 %v4816, %v4816
      %v5508 = vmul.f32 %v4241, %v4241
      %v5509 = vmul.f32 %v4243, %v4243
      %v5510 = vmul.f32 %v4820, %v4820
      %v5511 = vmul.f32 %v4247, %v4247
      %v5512 = vmul.f32 %v4249, %v4249
      %v5513 = vmul.f32 %v4826, %v4826
      %v5514 = vmul.f32 %v4251, %v4251
      %v5515 = vmul.f32 %v4253, %v4253
      %v5516 = vmul.f32 %v4830, %v4830
      %v5517 = vmul.f32 %v4257, %v4257
      %v5518 = vmul.f32 %v4259, %v4259
      %v5519 = vmul.f32 %v4836, %v4836
      %v5520 = vmul.f32 %v4261, %v4261
      %v5521 = vmul.f32 %v4263, %v4263
      %v5522 = vmul.f32 %v4840, %v4840
      %v5523 = vmul.f32 %v4267, %v4267
      %v5524 = vmul.f32 %v4269, %v4269
      %v5525 = vmul.f32 %v4846, %v4846
      %v5526 = vmul.f32 %v4271, %v4271
      %v5527 = vmul.f32 %v4273, %v4273
      %v5528 = vmul.f32 %v4850, %v4850
      %v5529 = vmul.f32 %v4698, %v4698
      %v5530 = vmul.f32 %v5275, %v5275
      %v5531 = vmul.f32 %v5277, %v5277
      %v5532 = vmul.f32 %v4702, %v4702
      %v5533 = vmul.f32 %v5279, %v5279
      %v5534 = vmul.f32 %v5281, %v5281
      %v5535 = vmul.f32 %v4708, %v4708
      %v5536 = vmul.f32 %v5285, %v5285
      %v5537 = vmul.f32 %v5287, %v5287
      %v5538 = vmul.f32 %v4712, %v4712
      %v5539 = vmul.f32 %v5289, %v5289
      %v5540 = vmul.f32 %v5291, %v5291
      %v5541 = vmul.f32 %v4718, %v4718
      %v5542 = vmul.f32 %v5295, %v5295
      %v5543 = vmul.f32 %v5297, %v5297
      %v5544 = vmul.f32 %v4722, %v4722
      %v5545 = vmul.f32 %v5299, %v5299
      %v5546 = vmul.f32 %v5301, %v5301
      %v5547 = vmul.f32 %v4728, %v4728
      %v5548 = vmul.f32 %v5305, %v5305
      %v5549 = vmul.f32 %v5307, %v5307
      %v5550 = vmul.f32 %v4732, %v4732
      %v5551 = vmul.f32 %v5309, %v5309
      %v5552 = vmul.f32 %v5311, %v5311
      %v5553 = vmul.f32 %v4738, %v4738
      %v5554 = vmul.f32 %v5315, %v5315
      %v5555 = vmul.f32 %v5317, %v5317
      %v5556 = vmul.f32 %v4742, %v4742
      %v5557 = vmul.f32 %v5319, %v5319
      %v5558 = vmul.f32 %v5321, %v5321
      %v5559 = vmul.f32 %v4748, %v4748
      %v5560 = vmul.f32 %v5325, %v5325
      %v5561 = vmul.f32 %v5327, %v5327
      %v5562 = vmul.f32 %v4752, %v4752
      %v5563 = vmul.f32 %v5329, %v5329
      %v5564 = vmul.f32 %v5331, %v5331
      %v5565 = vmul.f32 %v4758, %v4758
      %v5566 = vmul.f32 %v5335, %v5335
      %v5567 = vmul.f32 %v5337, %v5337
      %v5568 = vmul.f32 %v4762, %v4762
      %v5569 = vmul.f32 %v5339, %v5339
      %v5570 = vmul.f32 %v5341, %v5341
      %v5571 = vmul.f32 %v4768, %v4768
      %v5572 = vmul.f32 %v5345, %v5345
      %v5573 = vmul.f32 %v5347, %v5347
      %v5574 = vmul.f32 %v4772, %v4772
      %v5575 = vmul.f32 %v5349, %v5349
      %v5576 = vmul.f32 %v5351, %v5351
      %v5577 = vmul.f32 %v4778, %v4778
      %v5578 = vmul.f32 %v5355, %v5355
      %v5579 = vmul.f32 %v5357, %v5357
      %v5580 = vmul.f32 %v4782, %v4782
      %v5581 = vmul.f32 %v5359, %v5359
      %v5582 = vmul.f32 %v5361, %v5361
      %v5583 = vmul.f32 %v4788, %v4788
      %v5584 = vmul.f32 %v5365, %v5365
      %v5585 = vmul.f32 %v5367, %v5367
      %v5586 = vmul.f32 %v4792, %v4792
      %v5587 = vmul.f32 %v5369, %v5369
      %v5588 = vmul.f32 %v5371, %v5371
      %v5589 = vmul.f32 %v4798, %v4798
      %v5590 = vmul.f32 %v5375, %v5375
      %v5591 = vmul.f32 %v5377, %v5377
      %v5592 = vmul.f32 %v4802, %v4802
      %v5593 = vmul.f32 %v5379, %v5379
      %v5594 = vmul.f32 %v5381, %v5381
      %v5595 = vmul.f32 %v4808, %v4808
      %v5596 = vmul.f32 %v5385, %v5385
      %v5597 = vmul.f32 %v5387, %v5387
      %v5598 = vmul.f32 %v4812, %v4812
      %v5599 = vmul.f32 %v5389, %v5389
      %v5600 = vmul.f32 %v5391, %v5391
      %v5601 = vmul.f32 %v4818, %v4818
      %v5602 = vmul.f32 %v5395, %v5395
      %v5603 = vmul.f32 %v5397, %v5397
      %v5604 = vmul.f32 %v4822, %v4822
      %v5605 = vmul.f32 %v5399, %v5399
      %v5606 = vmul.f32 %v5401, %v5401
      %v5607 = vmul.f32 %v4828, %v4828
      %v5608 = vmul.f32 %v5405, %v5405
      %v5609 = vmul.f32 %v5407, %v5407
      %v5610 = vmul.f32 %v4832, %v4832
      %v5611 = vmul.f32 %v5409, %v5409
      %v5612 = vmul.f32 %v5411, %v5411
      %v5613 = vmul.f32 %v4838, %v4838
      %v5614 = vmul.f32 %v5415, %v5415
      %v5615 = vmul.f32 %v5417, %v5417
      %v5616 = vmul.f32 %v4842, %v4842
      %v5617 = vmul.f32 %v5419, %v5419
      %v5618 = vmul.f32 %v5421, %v5421
      %v5619 = vmul.f32 %v4848, %v4848
      %v5620 = vmul.f32 %v5425, %v5425
      %v5621 = vmul.f32 %v5427, %v5427
      %v5622 = vmul.f32 %v4852, %v4852
      %v5623 = vmul.f32 %v5429, %v5429
      %v5624 = vmul.f32 %v5431, %v5431
      %v5625 = vadd.f32 %v5433, %v5529
      %v5626 = vadd.f32 %v5434, %v5530
      %v5627 = vadd.f32 %v5435, %v5531
      %v5628 = vadd.f32 %v5436, %v5532
      %v5629 = vadd.f32 %v5437, %v5533
      %v5630 = vadd.f32 %v5438, %v5534
      %v5631 = vadd.f32 %v5439, %v5535
      %v5632 = vadd.f32 %v5440, %v5536
      %v5633 = vadd.f32 %v5441, %v5537
      %v5634 = vadd.f32 %v5442, %v5538
      %v5635 = vadd.f32 %v5443, %v5539
      %v5636 = vadd.f32 %v5444, %v5540
      %v5637 = vadd.f32 %v5445, %v5541
      %v5638 = vadd.f32 %v5446, %v5542
      %v5639 = vadd.f32 %v5447, %v5543
      %v5640 = vadd.f32 %v5448, %v5544
      %v5641 = vadd.f32 %v5449, %v5545
      %v5642 = vadd.f32 %v5450, %v5546
      %v5643 = vadd.f32 %v5451, %v5547
      %v5644 = vadd.f32 %v5452, %v5548
      %v5645 = vadd.f32 %v5453, %v5549
      %v5646 = vadd.f32 %v5454, %v5550
      %v5647 = vadd.f32 %v5455, %v5551
      %v5648 = vadd.f32 %v5456, %v5552
      %v5649 = vadd.f32 %v5457, %v5553
      %v5650 = vadd.f32 %v5458, %v5554
      %v5651 = vadd.f32 %v5459, %v5555
      %v5652 = vadd.f32 %v5460, %v5556
      %v5653 = vadd.f32 %v5461, %v5557
      %v5654 = vadd.f32 %v5462, %v5558
      %v5655 = vadd.f32 %v5463, %v5559
      %v5656 = vadd.f32 %v5464, %v5560
      %v5657 = vadd.f32 %v5465, %v5561
      %v5658 = vadd.f32 %v5466, %v5562
      %v5659 = vadd.f32 %v5467, %v5563
      %v5660 = vadd.f32 %v5468, %v5564
      %v5661 = vadd.f32 %v5469, %v5565
      %v5662 = vadd.f32 %v5470, %v5566
      %v5663 = vadd.f32 %v5471, %v5567
      %v5664 = vadd.f32 %v5472, %v5568
      %v5665 = vadd.f32 %v5473, %v5569
      %v5666 = vadd.f32 %v5474, %v5570
      %v5667 = vadd.f32 %v5475, %v5571
      %v5668 = vadd.f32 %v5476, %v5572
      %v5669 = vadd.f32 %v5477, %v5573
      %v5670 = vadd.f32 %v5478, %v5574
      %v5671 = vadd.f32 %v5479, %v5575
      %v5672 = vadd.f32 %v5480, %v5576
      %v5673 = vadd.f32 %v5481, %v5577
      %v5674 = vadd.f32 %v5482, %v5578
      %v5675 = vadd.f32 %v5483, %v5579
      %v5676 = vadd.f32 %v5484, %v5580
      %v5677 = vadd.f32 %v5485, %v5581
      %v5678 = vadd.f32 %v5486, %v5582
      %v5679 = vadd.f32 %v5487, %v5583
      %v5680 = vadd.f32 %v5488, %v5584
      %v5681 = vadd.f32 %v5489, %v5585
      %v5682 = vadd.f32 %v5490, %v5586
      %v5683 = vadd.f32 %v5491, %v5587
      %v5684 = vadd.f32 %v5492, %v5588
      %v5685 = vadd.f32 %v5493, %v5589
      %v5686 = vadd.f32 %v5494, %v5590
      %v5687 = vadd.f32 %v5495, %v5591
      %v5688 = vadd.f32 %v5496, %v5592
      %v5689 = vadd.f32 %v5497, %v5593
      %v5690 = vadd.f32 %v5498, %v5594
      %v5691 = vadd.f32 %v5499, %v5595
      %v5692 = vadd.f32 %v5500, %v5596
      %v5693 = vadd.f32 %v5501, %v5597
      %v5694 = vadd.f32 %v5502, %v5598
      %v5695 = vadd.f32 %v5503, %v5599
      %v5696 = vadd.f32 %v5504, %v5600
      %v5697 = vadd.f32 %v5505, %v5601
      %v5698 = vadd.f32 %v5506, %v5602
      %v5699 = vadd.f32 %v5507, %v5603
      %v5700 = vadd.f32 %v5508, %v5604
      %v5701 = vadd.f32 %v5509, %v5605
      %v5702 = vadd.f32 %v5510, %v5606
      %v5703 = vadd.f32 %v5511, %v5607
      %v5704 = vadd.f32 %v5512, %v5608
      %v5705 = vadd.f32 %v5513, %v5609
      %v5706 = vadd.f32 %v5514, %v5610
      %v5707 = vadd.f32 %v5515, %v5611
      %v5708 = vadd.f32 %v5516, %v5612
      %v5709 = vadd.f32 %v5517, %v5613
      %v5710 = vadd.f32 %v5518, %v5614
      %v5711 = vadd.f32 %v5519, %v5615
      %v5712 = vadd.f32 %v5520, %v5616
      %v5713 = vadd.f32 %v5521, %v5617
      %v5714 = vadd.f32 %v5522, %v5618
      %v5715 = vadd.f32 %v5523, %v5619
      %v5716 = vadd.f32 %v5524, %v5620
      %v5717 = vadd.f32 %v5525, %v5621
      %v5718 = vadd.f32 %v5526, %v5622
      %v5719 = vadd.f32 %v5527, %v5623
      %v5720 = vadd.f32 %v5528, %v5624
      %v5721 = vld [vmem:[%s3] sm:$0xff]
      %v5722 = vld [vmem:[%s3 + $0x8] sm:$0xff]
      %v5723 = vld [vmem:[%s3 + $0x10] sm:$0xff]
      %v5724 = vld [vmem:[%s3 + $0x18] sm:$0xff]
      %v5725 = vld [vmem:[%s3 + $0x20] sm:$0xff]
      %v5726 = vld [vmem:[%s3 + $0x28] sm:$0xff]
      %v5727 = vld [vmem:[%s3 + $0x30] sm:$0xff]
      %v5728 = vld [vmem:[%s3 + $0x38] sm:$0xff]
      %v5729 = vld [vmem:[%s3 + $0x40] sm:$0xff]
      %v5730 = vld [vmem:[%s3 + $0x48] sm:$0xff]
      %v5731 = vld [vmem:[%s3 + $0x50] sm:$0xff]
      %v5732 = vld [vmem:[%s3 + $0x58] sm:$0xff]
      %v5733 = vld [vmem:[%s3 + $0x60] sm:$0xff]
      %v5734 = vld [vmem:[%s3 + $0x68] sm:$0xff]
      %v5735 = vld [vmem:[%s3 + $0x70] sm:$0xff]
      %v5736 = vld [vmem:[%s3 + $0x78] sm:$0xff]
      %v5737 = vld [vmem:[%s3 + $0x80] sm:$0xff]
      %v5738 = vld [vmem:[%s3 + $0x88] sm:$0xff]
      %v5739 = vld [vmem:[%s3 + $0x90] sm:$0xff]
      %v5740 = vld [vmem:[%s3 + $0x98] sm:$0xff]
      %v5741 = vld [vmem:[%s3 + $0xa0] sm:$0xff]
      %v5742 = vld [vmem:[%s3 + $0xa8] sm:$0xff]
      %v5743 = vld [vmem:[%s3 + $0xb0] sm:$0xff]
      %v5744 = vld [vmem:[%s3 + $0xb8] sm:$0xff]
      %v5745 = vld [vmem:[%s3 + $0xc0] sm:$0xff]
      %v5746 = vld [vmem:[%s3 + $0xc8] sm:$0xff]
      %v5747 = vld [vmem:[%s3 + $0xd0] sm:$0xff]
      %v5748 = vld [vmem:[%s3 + $0xd8] sm:$0xff]
      %v5749 = vld [vmem:[%s3 + $0xe0] sm:$0xff]
      %v5750 = vld [vmem:[%s3 + $0xe8] sm:$0xff]
      %v5751 = vld [vmem:[%s3 + $0xf0] sm:$0xff]
      %v5752 = vld [vmem:[%s3 + $0xf8] sm:$0xff]
      %v5753 = vld [vmem:[%s3 + $0x100] sm:$0xff]
      %v5754 = vld [vmem:[%s3 + $0x108] sm:$0xff]
      %v5755 = vld [vmem:[%s3 + $0x110] sm:$0xff]
      %v5756 = vld [vmem:[%s3 + $0x118] sm:$0xff]
      %v5757 = vld [vmem:[%s3 + $0x120] sm:$0xff]
      %v5758 = vld [vmem:[%s3 + $0x128] sm:$0xff]
      %v5759 = vld [vmem:[%s3 + $0x130] sm:$0xff]
      %v5760 = vld [vmem:[%s3 + $0x138] sm:$0xff]
      %v5761 = vld [vmem:[%s3 + $0x140] sm:$0xff]
      %v5762 = vld [vmem:[%s3 + $0x148] sm:$0xff]
      %v5763 = vld [vmem:[%s3 + $0x150] sm:$0xff]
      %v5764 = vld [vmem:[%s3 + $0x158] sm:$0xff]
      %v5765 = vld [vmem:[%s3 + $0x160] sm:$0xff]
      %v5766 = vld [vmem:[%s3 + $0x168] sm:$0xff]
      %v5767 = vld [vmem:[%s3 + $0x170] sm:$0xff]
      %v5768 = vld [vmem:[%s3 + $0x178] sm:$0xff]
      %5769 = vmatprep.subr.mxu0 0.0
      %5770 = vmatpush1.msra.mxu0 %v5721
      %5771 = vmatprep.subr.mxu0 0.0
      %5772 = vmatpush1.msra.mxu0 %v5722
      %5773 = vmatprep.subr.mxu0 0.0
      %5774 = vmatpush1.msra.mxu0 %v5723
      %5775 = vmatprep.subr.mxu0 0.0
      %5776 = vmatpush1.msra.mxu0 %v5724
      %5777 = vmatprep.subr.mxu0 0.0
      %5778 = vmatpush1.msra.mxu0 %v5725
      %5779 = vmatprep.subr.mxu0 0.0
      %5780 = vmatpush1.msra.mxu0 %v5726
      %5781 = vmatprep.subr.mxu0 0.0
      %5782 = vmatpush1.msra.mxu0 %v5727
      %5783 = vmatprep.subr.mxu0 0.0
      %5784 = vmatpush1.msra.mxu0 %v5728
      %5785 = vmatprep.subr.mxu0 0.0
      %5786 = vmatpush1.msra.mxu0 %v5729
      %5787 = vmatprep.subr.mxu0 0.0
      %5788 = vmatpush1.msra.mxu0 %v5730
      %5789 = vmatprep.subr.mxu0 0.0
      %5790 = vmatpush1.msra.mxu0 %v5731
      %5791 = vmatprep.subr.mxu0 0.0
      %5792 = vmatpush1.msra.mxu0 %v5732
      %5793 = vmatprep.subr.mxu0 0.0
      %5794 = vmatpush1.msra.mxu0 %v5733
      %5795 = vmatprep.subr.mxu0 0.0
      %5796 = vmatpush1.msra.mxu0 %v5734
      %5797 = vmatprep.subr.mxu0 0.0
      %5798 = vmatpush1.msra.mxu0 %v5735
      %5799 = vmatprep.subr.mxu0 0.0
      %5800 = vmatpush1.msra.mxu0 %v5736
      %5801 = vmatprep.subr.mxu0 0.0
      %5802 = vmatpush1.msra.mxu0 %v5737
      %5803 = vmatprep.subr.mxu0 0.0
      %5804 = vmatpush1.msra.mxu0 %v5738
      %5805 = vmatprep.subr.mxu0 0.0
      %5806 = vmatpush1.msra.mxu0 %v5739
      %5807 = vmatprep.subr.mxu0 0.0
      %5808 = vmatpush1.msra.mxu0 %v5740
      %5809 = vmatprep.subr.mxu0 0.0
      %5810 = vmatpush1.msra.mxu0 %v5741
      %5811 = vmatprep.subr.mxu0 0.0
      %5812 = vmatpush1.msra.mxu0 %v5742
      %5813 = vmatprep.subr.mxu0 0.0
      %5814 = vmatpush1.msra.mxu0 %v5743
      %5815 = vmatprep.subr.mxu0 0.0
      %5816 = vmatpush1.msra.mxu0 %v5744
      %5817 = vmatprep.subr.mxu0 0.0
      %5818 = vmatpush1.msra.mxu0 %v5745
      %5819 = vmatprep.subr.mxu0 0.0
      %5820 = vmatpush1.msra.mxu0 %v5746
      %5821 = vmatprep.subr.mxu0 0.0
      %5822 = vmatpush1.msra.mxu0 %v5747
      %5823 = vmatprep.subr.mxu0 0.0
      %5824 = vmatpush1.msra.mxu0 %v5748
      %5825 = vmatprep.subr.mxu0 0.0
      %5826 = vmatpush1.msra.mxu0 %v5749
      %5827 = vmatprep.subr.mxu0 0.0
      %5828 = vmatpush1.msra.mxu0 %v5750
      %5829 = vmatprep.subr.mxu0 0.0
      %5830 = vmatpush1.msra.mxu0 %v5751
      %5831 = vmatprep.subr.mxu0 0.0
      %5832 = vmatpush1.msra.mxu0 %v5752
      %5833 = vmatprep.mubr.f32.mxu0 %v5626
      %5834 = vmatmul.mubr.f32.gmra.mrb[0].mxu0 %v5625
      %v5835 = vpop.f32.mrb[0].mxu0
      %v5836 = vadd.f32 0.0, %v5835
      %v5837 = vpop.f32.mrb[0].mxu0
      %5838 = vmatprep.mubr.f32.mxu0 %v5629
      %5839 = vmatmul.mubr.f32.gmra.mrb[0].mxu0 %v5628
      %v5840 = vpop.f32.mrb[0].mxu0
      %v5841 = vadd.f32 0.0, %v5840
      %v5842 = vpop.f32.mrb[0].mxu0
      %5843 = vmatprep.mubr.f32.mxu0 %v5632
      %5844 = vmatmul.mubr.f32.gmra.mrb[0].mxu0 %v5631
      %v5845 = vpop.f32.mrb[0].mxu0
      %v5846 = vadd.f32 0.0, %v5845
      %v5847 = vpop.f32.mrb[0].mxu0
      %5848 = vmatprep.mubr.f32.mxu0 %v5635
      %5849 = vmatmul.mubr.f32.gmra.mrb[0].mxu0 %v5634
      %v5850 = vpop.f32.mrb[0].mxu0
      %v5851 = vadd.f32 0.0, %v5850
      %v5852 = vpop.f32.mrb[0].mxu0
      %5853 = vmatprep.mubr.f32.mxu0 %v5638
      %5854 = vmatmul.mubr.f32.gmra.mrb[0].mxu0 %v5637
      %v5855 = vpop.f32.mrb[0].mxu0
      %v5856 = vadd.f32 0.0, %v5855
      %v5857 = vpop.f32.mrb[0].mxu0
      %5858 = vmatprep.mubr.f32.mxu0 %v5641
      %5859 = vmatmul.mubr.f32.gmra.mrb[0].mxu0 %v5640
      %v5860 = vpop.f32.mrb[0].mxu0
      %v5861 = vadd.f32 0.0, %v5860
      %v5862 = vpop.f32.mrb[0].mxu0
      %5863 = vmatprep.mubr.f32.mxu0 %v5644
      %5864 = vmatmul.mubr.f32.gmra.mrb[0].mxu0 %v5643
      %v5865 = vpop.f32.mrb[0].mxu0
      %v5866 = vadd.f32 0.0, %v5865
      %v5867 = vpop.f32.mrb[0].mxu0
      %5868 = vmatprep.mubr.f32.mxu0 %v5647
      %5869 = vmatmul.mubr.f32.gmra.mrb[0].mxu0 %v5646
      %v5870 = vpop.f32.mrb[0].mxu0
      %v5871 = vadd.f32 0.0, %v5870
      %v5872 = vpop.f32.mrb[0].mxu0
      %5873 = vmatprep.mubr.f32.mxu0 %v5650
      %5874 = vmatmul.mubr.f32.gmra.mrb[0].mxu0 %v5649
      %v5875 = vpop.f32.mrb[0].mxu0
      %v5876 = vadd.f32 0.0, %v5875
      %v5877 = vpop.f32.mrb[0].mxu0
      %5878 = vmatprep.mubr.f32.mxu0 %v5653
      %5879 = vmatmul.mubr.f32.gmra.mrb[0].mxu0 %v5652
      %v5880 = vpop.f32.mrb[0].mxu0
      %v5881 = vadd.f32 0.0, %v5880
      %v5882 = vpop.f32.mrb[0].mxu0
      %5883 = vmatprep.mubr.f32.mxu0 %v5656
      %5884 = vmatmul.mubr.f32.gmra.mrb[0].mxu0 %v5655
      %v5885 = vpop.f32.mrb[0].mxu0
      %v5886 = vadd.f32 0.0, %v5885
      %v5887 = vpop.f32.mrb[0].mxu0
      %5888 = vmatprep.mubr.f32.mxu0 %v5659
      %5889 = vmatmul.mubr.f32.gmra.mrb[0].mxu0 %v5658
      %v5890 = vpop.f32.mrb[0].mxu0
      %v5891 = vadd.f32 0.0, %v5890
      %v5892 = vpop.f32.mrb[0].mxu0
      %5893 = vmatprep.mubr.f32.mxu0 %v5662
      %5894 = vmatmul.mubr.f32.gmra.mrb[0].mxu0 %v5661
      %v5895 = vpop.f32.mrb[0].mxu0
      %v5896 = vadd.f32 0.0, %v5895
      %v5897 = vpop.f32.mrb[0].mxu0
      %5898 = vmatprep.mubr.f32.mxu0 %v5665
      %5899 = vmatmul.mubr.f32.gmra.mrb[0].mxu0 %v5664
      %v5900 = vpop.f32.mrb[0].mxu0
      %v5901 = vadd.f32 0.0, %v5900
      %v5902 = vpop.f32.mrb[0].mxu0
      %5903 = vmatprep.mubr.f32.mxu0 %v5668
      %5904 = vmatmul.mubr.f32.gmra.mrb[0].mxu0 %v5667
      %v5905 = vpop.f32.mrb[0].mxu0
      %v5906 = vadd.f32 0.0, %v5905
      %v5907 = vpop.f32.mrb[0].mxu0
      %5908 = vmatprep.mubr.f32.mxu0 %v5671
      %5909 = vmatmul.mubr.f32.gmra.mrb[0].mxu0 %v5670
      %v5910 = vpop.f32.mrb[0].mxu0
      %v5911 = vadd.f32 0.0, %v5910
      %v5912 = vpop.f32.mrb[0].mxu0
      %5913 = vmatprep.mubr.f32.mxu0 %v5674
      %5914 = vmatmul.mubr.f32.gmra.mrb[0].mxu0 %v5673
      %v5915 = vpop.f32.mrb[0].mxu0
      %v5916 = vadd.f32 0.0, %v5915
      %v5917 = vpop.f32.mrb[0].mxu0
      %5918 = vmatprep.mubr.f32.mxu0 %v5677
      %5919 = vmatmul.mubr.f32.gmra.mrb[0].mxu0 %v5676
      %v5920 = vpop.f32.mrb[0].mxu0
      %v5921 = vadd.f32 0.0, %v5920
      %v5922 = vpop.f32.mrb[0].mxu0
      %5923 = vmatprep.mubr.f32.mxu0 %v5680
      %5924 = vmatmul.mubr.f32.gmra.mrb[0].mxu0 %v5679
      %v5925 = vpop.f32.mrb[0].mxu0
      %v5926 = vadd.f32 0.0, %v5925
      %v5927 = vpop.f32.mrb[0].mxu0
      %5928 = vmatprep.mubr.f32.mxu0 %v5683
      %5929 = vmatmul.mubr.f32.gmra.mrb[0].mxu0 %v5682
      %v5930 = vpop.f32.mrb[0].mxu0
      %v5931 = vadd.f32 0.0, %v5930
      %v5932 = vpop.f32.mrb[0].mxu0
      %5933 = vmatprep.mubr.f32.mxu0 %v5686
      %5934 = vmatmul.mubr.f32.gmra.mrb[0].mxu0 %v5685
      %v5935 = vpop.f32.mrb[0].mxu0
      %v5936 = vadd.f32 0.0, %v5935
      %v5937 = vpop.f32.mrb[0].mxu0
      %5938 = vmatprep.mubr.f32.mxu0 %v5689
      %5939 = vmatmul.mubr.f32.gmra.mrb[0].mxu0 %v5688
      %v5940 = vpop.f32.mrb[0].mxu0
      %v5941 = vadd.f32 0.0, %v5940
      %v5942 = vpop.f32.mrb[0].mxu0
      %5943 = vmatprep.mubr.f32.mxu0 %v5692
      %5944 = vmatmul.mubr.f32.gmra.mrb[0].mxu0 %v5691
      %v5945 = vpop.f32.mrb[0].mxu0
      %v5946 = vadd.f32 0.0, %v5945
      %v5947 = vpop.f32.mrb[0].mxu0
      %5948 = vmatprep.mubr.f32.mxu0 %v5695
      %5949 = vmatmul.mubr.f32.gmra.mrb[0].mxu0 %v5694
      %v5950 = vpop.f32.mrb[0].mxu0
      %v5951 = vadd.f32 0.0, %v5950
      %v5952 = vpop.f32.mrb[0].mxu0
      %5953 = vmatprep.mubr.f32.mxu0 %v5698
      %5954 = vmatmul.mubr.f32.gmra.mrb[0].mxu0 %v5697
      %v5955 = vpop.f32.mrb[0].mxu0
      %v5956 = vadd.f32 0.0, %v5955
      %v5957 = vpop.f32.mrb[0].mxu0
      %5958 = vmatprep.mubr.f32.mxu0 %v5701
      %5959 = vmatmul.mubr.f32.gmra.mrb[0].mxu0 %v5700
      %v5960 = vpop.f32.mrb[0].mxu0
      %v5961 = vadd.f32 0.0, %v5960
      %v5962 = vpop.f32.mrb[0].mxu0
      %5963 = vmatprep.mubr.f32.mxu0 %v5704
      %5964 = vmatmul.mubr.f32.gmra.mrb[0].mxu0 %v5703
      %v5965 = vpop.f32.mrb[0].mxu0
      %v5966 = vadd.f32 0.0, %v5965
      %v5967 = vpop.f32.mrb[0].mxu0
      %5968 = vmatprep.mubr.f32.mxu0 %v5707
      %5969 = vmatmul.mubr.f32.gmra.mrb[0].mxu0 %v5706
      %v5970 = vpop.f32.mrb[0].mxu0
      %v5971 = vadd.f32 0.0, %v5970
      %v5972 = vpop.f32.mrb[0].mxu0
      %5973 = vmatprep.mubr.f32.mxu0 %v5710
      %5974 = vmatmul.mubr.f32.gmra.mrb[0].mxu0 %v5709
      %v5975 = vpop.f32.mrb[0].mxu0
      %v5976 = vadd.f32 0.0, %v5975
      %v5977 = vpop.f32.mrb[0].mxu0
      %5978 = vmatprep.mubr.f32.mxu0 %v5713
      %5979 = vmatmul.mubr.f32.gmra.mrb[0].mxu0 %v5712
      %v5980 = vpop.f32.mrb[0].mxu0
      %v5981 = vadd.f32 0.0, %v5980
      %v5982 = vpop.f32.mrb[0].mxu0
      %5983 = vmatprep.mubr.f32.mxu0 %v5716
      %5984 = vmatmul.mubr.f32.gmra.mrb[0].mxu0 %v5715
      %v5985 = vpop.f32.mrb[0].mxu0
      %v5986 = vadd.f32 0.0, %v5985
      %v5987 = vpop.f32.mrb[0].mxu0
      %5988 = vmatprep.mubr.f32.mxu0 %v5719
      %5989 = vmatmul.mubr.f32.gmra.mrb[0].mxu0 %v5718
      %v5990 = vpop.f32.mrb[0].mxu0
      %v5991 = vadd.f32 0.0, %v5990
      %v5992 = vpop.f32.mrb[0].mxu0
      %5993 = vdwg.mxu0
      %5994 = vmatprep.subr.mxu0 0.0
      %5995 = vmatpush1.msra.mxu0 %v5753
      %5996 = vmatprep.subr.mxu0 0.0
      %5997 = vmatpush1.msra.mxu0 %v5754
      %5998 = vmatprep.subr.mxu0 0.0
      %5999 = vmatpush1.msra.mxu0 %v5755
      %6000 = vmatprep.subr.mxu0 0.0
      %6001 = vmatpush1.msra.mxu0 %v5756
      %6002 = vmatprep.subr.mxu0 0.0
      %6003 = vmatpush1.msra.mxu0 %v5757
      %6004 = vmatprep.subr.mxu0 0.0
      %6005 = vmatpush1.msra.mxu0 %v5758
      %6006 = vmatprep.subr.mxu0 0.0
      %6007 = vmatpush1.msra.mxu0 %v5759
      %6008 = vmatprep.subr.mxu0 0.0
      %6009 = vmatpush1.msra.mxu0 %v5760
      %6010 = vmatprep.subr.mxu0 0.0
      %6011 = vmatpush1.msra.mxu0 %v5761
      %6012 = vmatprep.subr.mxu0 0.0
      %6013 = vmatpush1.msra.mxu0 %v5762
      %6014 = vmatprep.subr.mxu0 0.0
      %6015 = vmatpush1.msra.mxu0 %v5763
      %6016 = vmatprep.subr.mxu0 0.0
      %6017 = vmatpush1.msra.mxu0 %v5764
      %6018 = vmatprep.subr.mxu0 0.0
      %6019 = vmatpush1.msra.mxu0 %v5765
      %6020 = vmatprep.subr.mxu0 0.0
      %6021 = vmatpush1.msra.mxu0 %v5766
      %6022 = vmatprep.subr.mxu0 0.0
      %6023 = vmatpush1.msra.mxu0 %v5767
      %6024 = vmatprep.subr.mxu0 0.0
      %6025 = vmatpush1.msra.mxu0 %v5768
      %6026 = vmatprep.subr.mxu0 0.0
      %6027 = vmatpush1.msra.mxu0 0.0
      %6028 = vmatprep.subr.mxu0 0.0
      %6029 = vmatpush1.msra.mxu0 0.0
      %6030 = vmatprep.subr.mxu0 0.0
      %6031 = vmatpush1.msra.mxu0 0.0
      %6032 = vmatprep.subr.mxu0 0.0
      %6033 = vmatpush1.msra.mxu0 0.0
      %6034 = vmatprep.subr.mxu0 0.0
      %6035 = vmatpush1.msra.mxu0 0.0
      %6036 = vmatprep.subr.mxu0 0.0
      %6037 = vmatpush1.msra.mxu0 0.0
      %6038 = vmatprep.subr.mxu0 0.0
      %6039 = vmatpush1.msra.mxu0 0.0
      %6040 = vmatprep.subr.mxu0 0.0
      %6041 = vmatpush1.msra.mxu0 0.0
      %6042 = vmatprep.subr.mxu0 0.0
      %6043 = vmatpush1.msra.mxu0 0.0
      %6044 = vmatprep.subr.mxu0 0.0
      %6045 = vmatpush1.msra.mxu0 0.0
      %6046 = vmatprep.subr.mxu0 0.0
      %6047 = vmatpush1.msra.mxu0 0.0
      %6048 = vmatprep.subr.mxu0 0.0
      %6049 = vmatpush1.msra.mxu0 0.0
      %6050 = vmatprep.subr.mxu0 0.0
      %6051 = vmatpush1.msra.mxu0 0.0
      %6052 = vmatprep.subr.mxu0 0.0
      %6053 = vmatpush1.msra.mxu0 0.0
      %6054 = vmatprep.subr.mxu0 0.0
      %6055 = vmatpush1.msra.mxu0 0.0
      %6056 = vmatprep.subr.mxu0 0.0
      %6057 = vmatpush1.msra.mxu0 0.0
      %6058 = vmatprep.mubr.f32.mxu0 0.0
      %6059 = vmatmul.mubr.f32.gmra.mrb[0].mxu0 %v5627
      %v6060 = vpop.f32.mrb[0].mxu0
      %v6061 = vadd.f32 %v5836, %v6060
      %v6062 = vpop.f32.mrb[0].mxu0
      %6063 = vmatprep.mubr.f32.mxu0 0.0
      %6064 = vmatmul.mubr.f32.gmra.mrb[0].mxu0 %v5630
      %v6065 = vpop.f32.mrb[0].mxu0
      %v6066 = vadd.f32 %v5841, %v6065
      %v6067 = vpop.f32.mrb[0].mxu0
      %6068 = vmatprep.mubr.f32.mxu0 0.0
      %6069 = vmatmul.mubr.f32.gmra.mrb[0].mxu0 %v5633
      %v6070 = vpop.f32.mrb[0].mxu0
      %v6071 = vadd.f32 %v5846, %v6070
      %v6072 = vpop.f32.mrb[0].mxu0
      %6073 = vmatprep.mubr.f32.mxu0 0.0
      %6074 = vmatmul.mubr.f32.gmra.mrb[0].mxu0 %v5636
      %v6075 = vpop.f32.mrb[0].mxu0
      %v6076 = vadd.f32 %v5851, %v6075
      %v6077 = vpop.f32.mrb[0].mxu0
      %6078 = vmatprep.mubr.f32.mxu0 0.0
      %6079 = vmatmul.mubr.f32.gmra.mrb[0].mxu0 %v5639
      %v6080 = vpop.f32.mrb[0].mxu0
      %v6081 = vadd.f32 %v5856, %v6080
      %v6082 = vpop.f32.mrb[0].mxu0
      %6083 = vmatprep.mubr.f32.mxu0 0.0
      %6084 = vmatmul.mubr.f32.gmra.mrb[0].mxu0 %v5642
      %v6085 = vpop.f32.mrb[0].mxu0
      %v6086 = vadd.f32 %v5861, %v6085
      %v6087 = vpop.f32.mrb[0].mxu0
      %6088 = vmatprep.mubr.f32.mxu0 0.0
      %6089 = vmatmul.mubr.f32.gmra.mrb[0].mxu0 %v5645
      %v6090 = vpop.f32.mrb[0].mxu0
      %v6091 = vadd.f32 %v5866, %v6090
      %v6092 = vpop.f32.mrb[0].mxu0
      %6093 = vmatprep.mubr.f32.mxu0 0.0
      %6094 = vmatmul.mubr.f32.gmra.mrb[0].mxu0 %v5648
      %v6095 = vpop.f32.mrb[0].mxu0
      %v6096 = vadd.f32 %v5871, %v6095
      %v6097 = vpop.f32.mrb[0].mxu0
      %6098 = vmatprep.mubr.f32.mxu0 0.0
      %6099 = vmatmul.mubr.f32.gmra.mrb[0].mxu0 %v5651
      %v6100 = vpop.f32.mrb[0].mxu0
      %v6101 = vadd.f32 %v5876, %v6100
      %v6102 = vpop.f32.mrb[0].mxu0
      %6103 = vmatprep.mubr.f32.mxu0 0.0
      %6104 = vmatmul.mubr.f32.gmra.mrb[0].mxu0 %v5654
      %v6105 = vpop.f32.mrb[0].mxu0
      %v6106 = vadd.f32 %v5881, %v6105
      %v6107 = vpop.f32.mrb[0].mxu0
      %6108 = vmatprep.mubr.f32.mxu0 0.0
      %6109 = vmatmul.mubr.f32.gmra.mrb[0].mxu0 %v5657
      %v6110 = vpop.f32.mrb[0].mxu0
      %v6111 = vadd.f32 %v5886, %v6110
      %v6112 = vpop.f32.mrb[0].mxu0
      %6113 = vmatprep.mubr.f32.mxu0 0.0
      %6114 = vmatmul.mubr.f32.gmra.mrb[0].mxu0 %v5660
      %v6115 = vpop.f32.mrb[0].mxu0
      %v6116 = vadd.f32 %v5891, %v6115
      %v6117 = vpop.f32.mrb[0].mxu0
      %6118 = vmatprep.mubr.f32.mxu0 0.0
      %6119 = vmatmul.mubr.f32.gmra.mrb[0].mxu0 %v5663
      %v6120 = vpop.f32.mrb[0].mxu0
      %v6121 = vadd.f32 %v5896, %v6120
      %v6122 = vpop.f32.mrb[0].mxu0
      %6123 = vmatprep.mubr.f32.mxu0 0.0
      %6124 = vmatmul.mubr.f32.gmra.mrb[0].mxu0 %v5666
      %v6125 = vpop.f32.mrb[0].mxu0
      %v6126 = vadd.f32 %v5901, %v6125
      %v6127 = vpop.f32.mrb[0].mxu0
      %6128 = vmatprep.mubr.f32.mxu0 0.0
      %6129 = vmatmul.mubr.f32.gmra.mrb[0].mxu0 %v5669
      %v6130 = vpop.f32.mrb[0].mxu0
      %v6131 = vadd.f32 %v5906, %v6130
      %v6132 = vpop.f32.mrb[0].mxu0
      %6133 = vmatprep.mubr.f32.mxu0 0.0
      %6134 = vmatmul.mubr.f32.gmra.mrb[0].mxu0 %v5672
      %v6135 = vpop.f32.mrb[0].mxu0
      %v6136 = vadd.f32 %v5911, %v6135
      %v6137 = vpop.f32.mrb[0].mxu0
      %6138 = vmatprep.mubr.f32.mxu0 0.0
      %6139 = vmatmul.mubr.f32.gmra.mrb[0].mxu0 %v5675
      %v6140 = vpop.f32.mrb[0].mxu0
      %v6141 = vadd.f32 %v5916, %v6140
      %v6142 = vpop.f32.mrb[0].mxu0
      %6143 = vmatprep.mubr.f32.mxu0 0.0
      %6144 = vmatmul.mubr.f32.gmra.mrb[0].mxu0 %v5678
      %v6145 = vpop.f32.mrb[0].mxu0
      %v6146 = vadd.f32 %v5921, %v6145
      %v6147 = vpop.f32.mrb[0].mxu0
      %6148 = vmatprep.mubr.f32.mxu0 0.0
      %6149 = vmatmul.mubr.f32.gmra.mrb[0].mxu0 %v5681
      %v6150 = vpop.f32.mrb[0].mxu0
      %v6151 = vadd.f32 %v5926, %v6150
      %v6152 = vpop.f32.mrb[0].mxu0
      %6153 = vmatprep.mubr.f32.mxu0 0.0
      %6154 = vmatmul.mubr.f32.gmra.mrb[0].mxu0 %v5684
      %v6155 = vpop.f32.mrb[0].mxu0
      %v6156 = vadd.f32 %v5931, %v6155
      %v6157 = vpop.f32.mrb[0].mxu0
      %6158 = vmatprep.mubr.f32.mxu0 0.0
      %6159 = vmatmul.mubr.f32.gmra.mrb[0].mxu0 %v5687
      %v6160 = vpop.f32.mrb[0].mxu0
      %v6161 = vadd.f32 %v5936, %v6160
      %v6162 = vpop.f32.mrb[0].mxu0
      %6163 = vmatprep.mubr.f32.mxu0 0.0
      %6164 = vmatmul.mubr.f32.gmra.mrb[0].mxu0 %v5690
      %v6165 = vpop.f32.mrb[0].mxu0
      %v6166 = vadd.f32 %v5941, %v6165
      %v6167 = vpop.f32.mrb[0].mxu0
      %6168 = vmatprep.mubr.f32.mxu0 0.0
      %6169 = vmatmul.mubr.f32.gmra.mrb[0].mxu0 %v5693
      %v6170 = vpop.f32.mrb[0].mxu0
      %v6171 = vadd.f32 %v5946, %v6170
      %v6172 = vpop.f32.mrb[0].mxu0
      %6173 = vmatprep.mubr.f32.mxu0 0.0
      %6174 = vmatmul.mubr.f32.gmra.mrb[0].mxu0 %v5696
      %v6175 = vpop.f32.mrb[0].mxu0
      %v6176 = vadd.f32 %v5951, %v6175
      %v6177 = vpop.f32.mrb[0].mxu0
      %6178 = vmatprep.mubr.f32.mxu0 0.0
      %6179 = vmatmul.mubr.f32.gmra.mrb[0].mxu0 %v5699
      %v6180 = vpop.f32.mrb[0].mxu0
      %v6181 = vadd.f32 %v5956, %v6180
      %v6182 = vpop.f32.mrb[0].mxu0
      %6183 = vmatprep.mubr.f32.mxu0 0.0
      %6184 = vmatmul.mubr.f32.gmra.mrb[0].mxu0 %v5702
      %v6185 = vpop.f32.mrb[0].mxu0
      %v6186 = vadd.f32 %v5961, %v6185
      %v6187 = vpop.f32.mrb[0].mxu0
      %6188 = vmatprep.mubr.f32.mxu0 0.0
      %6189 = vmatmul.mubr.f32.gmra.mrb[0].mxu0 %v5705
      %v6190 = vpop.f32.mrb[0].mxu0
      %v6191 = vadd.f32 %v5966, %v6190
      %v6192 = vpop.f32.mrb[0].mxu0
      %6193 = vmatprep.mubr.f32.mxu0 0.0
      %6194 = vmatmul.mubr.f32.gmra.mrb[0].mxu0 %v5708
      %v6195 = vpop.f32.mrb[0].mxu0
      %v6196 = vadd.f32 %v5971, %v6195
      %v6197 = vpop.f32.mrb[0].mxu0
      %6198 = vmatprep.mubr.f32.mxu0 0.0
      %6199 = vmatmul.mubr.f32.gmra.mrb[0].mxu0 %v5711
      %v6200 = vpop.f32.mrb[0].mxu0
      %v6201 = vadd.f32 %v5976, %v6200
      %v6202 = vpop.f32.mrb[0].mxu0
      %6203 = vmatprep.mubr.f32.mxu0 0.0
      %6204 = vmatmul.mubr.f32.gmra.mrb[0].mxu0 %v5714
      %v6205 = vpop.f32.mrb[0].mxu0
      %v6206 = vadd.f32 %v5981, %v6205
      %v6207 = vpop.f32.mrb[0].mxu0
      %6208 = vmatprep.mubr.f32.mxu0 0.0
      %6209 = vmatmul.mubr.f32.gmra.mrb[0].mxu0 %v5717
      %v6210 = vpop.f32.mrb[0].mxu0
      %v6211 = vadd.f32 %v5986, %v6210
      %v6212 = vpop.f32.mrb[0].mxu0
      %6213 = vmatprep.mubr.f32.mxu0 0.0
      %6214 = vmatmul.mubr.f32.gmra.mrb[0].mxu0 %v5720
      %v6215 = vpop.f32.mrb[0].mxu0
      %v6216 = vadd.f32 %v5991, %v6215
      %v6217 = vpop.f32.mrb[0].mxu0
      %6218 = vdwg.mxu0
      %6219 = vxpose.xlu0.b32.start [1/16] %v6061, 128
      %6220 = vxpose.xlu0.b32.cont [2/16] %v6066, 128
      %6221 = vxpose.xlu0.b32.cont [3/16] %v6071, 128
      %6222 = vxpose.xlu0.b32.cont [4/16] %v6076, 128
      %6223 = vxpose.xlu0.b32.cont [5/16] %v6081, 128
      %6224 = vxpose.xlu0.b32.cont [6/16] %v6086, 128
      %6225 = vxpose.xlu0.b32.cont [7/16] %v6091, 128
      %6226 = vxpose.xlu0.b32.cont [8/16] %v6096, 128
      %6227 = vxpose.xlu0.b32.cont [9/16] %v6101, 128
      %6228 = vxpose.xlu0.b32.cont [10/16] %v6106, 128
      %6229 = vxpose.xlu0.b32.cont [11/16] %v6111, 128
      %6230 = vxpose.xlu0.b32.cont [12/16] %v6116, 128
      %6231 = vxpose.xlu0.b32.cont [13/16] %v6121, 128
      %6232 = vxpose.xlu0.b32.cont [14/16] %v6126, 128
      %6233 = vxpose.xlu0.b32.cont [15/16] %v6131, 128
      %6234 = vxpose.xlu0.b32.end [16/16] %v6136, 128
      %v6235 = vpop.trf.xlu0
      %v6236 = vpop.trf.xlu0
      %v6237 = vpop.trf.xlu0
      %v6238 = vpop.trf.xlu0
      %v6239 = vpop.trf.xlu0
      %v6240 = vpop.trf.xlu0
      %v6241 = vpop.trf.xlu0
      %v6242 = vpop.trf.xlu0
      %v6243 = vpop.trf.xlu0
      %v6244 = vpop.trf.xlu0
      %v6245 = vpop.trf.xlu0
      %v6246 = vpop.trf.xlu0
      %v6247 = vpop.trf.xlu0
      %v6248 = vpop.trf.xlu0
      %v6249 = vpop.trf.xlu0
      %v6250 = vpop.trf.xlu0
      %6251 = vxpose.xlu0.b32.start [1/16] %v6141, 128
      %6252 = vxpose.xlu0.b32.cont [2/16] %v6146, 128
      %6253 = vxpose.xlu0.b32.cont [3/16] %v6151, 128
      %6254 = vxpose.xlu0.b32.cont [4/16] %v6156, 128
      %6255 = vxpose.xlu0.b32.cont [5/16] %v6161, 128
      %6256 = vxpose.xlu0.b32.cont [6/16] %v6166, 128
      %6257 = vxpose.xlu0.b32.cont [7/16] %v6171, 128
      %6258 = vxpose.xlu0.b32.cont [8/16] %v6176, 128
      %6259 = vxpose.xlu0.b32.cont [9/16] %v6181, 128
      %6260 = vxpose.xlu0.b32.cont [10/16] %v6186, 128
      %6261 = vxpose.xlu0.b32.cont [11/16] %v6191, 128
      %6262 = vxpose.xlu0.b32.cont [12/16] %v6196, 128
      %6263 = vxpose.xlu0.b32.cont [13/16] %v6201, 128
      %6264 = vxpose.xlu0.b32.cont [14/16] %v6206, 128
      %6265 = vxpose.xlu0.b32.cont [15/16] %v6211, 128
      %6266 = vxpose.xlu0.b32.end [16/16] %v6216, 128
      %v6267 = vpop.trf.xlu0
      %v6268 = vpop.trf.xlu0
      %v6269 = vpop.trf.xlu0
      %v6270 = vpop.trf.xlu0
      %v6271 = vpop.trf.xlu0
      %v6272 = vpop.trf.xlu0
      %v6273 = vpop.trf.xlu0
      %v6274 = vpop.trf.xlu0
      %v6275 = vpop.trf.xlu0
      %v6276 = vpop.trf.xlu0
      %v6277 = vpop.trf.xlu0
      %v6278 = vpop.trf.xlu0
      %v6279 = vpop.trf.xlu0
      %v6280 = vpop.trf.xlu0
      %v6281 = vpop.trf.xlu0
      %v6282 = vpop.trf.xlu0
      %v6283 = vadd.f32 %v6235, 1e-06
      %v6284 = vadd.f32 %v6267, 1e-06
      %v6285 = vadd.f32 %v6236, 1e-06
      %v6286 = vadd.f32 %v6268, 1e-06
      %v6287 = vadd.f32 %v6237, 1e-06
      %v6288 = vadd.f32 %v6269, 1e-06
      %v6289 = vadd.f32 %v6238, 1e-06
      %v6290 = vadd.f32 %v6270, 1e-06
      %v6291 = vadd.f32 %v6239, 1e-06
      %v6292 = vadd.f32 %v6271, 1e-06
      %v6293 = vadd.f32 %v6240, 1e-06
      %v6294 = vadd.f32 %v6272, 1e-06
      %v6295 = vadd.f32 %v6241, 1e-06
      %v6296 = vadd.f32 %v6273, 1e-06
      %v6297 = vadd.f32 %v6242, 1e-06
      %v6298 = vadd.f32 %v6274, 1e-06
      %v6299 = vadd.f32 %v6243, 1e-06
      %v6300 = vadd.f32 %v6275, 1e-06
      %v6301 = vadd.f32 %v6244, 1e-06
      %v6302 = vadd.f32 %v6276, 1e-06
      %6303 = vst [vmem:[%s316] sm:$0xff] %v6283
      %6304 = vst [vmem:[%s316 + $0x8] sm:$0xff] %v6284
      %6305 = vst [vmem:[%s316 + $0x10] sm:$0xff] %v6285
      %6306 = vst [vmem:[%s316 + $0x18] sm:$0xff] %v6286
      %6307 = vst [vmem:[%s316 + $0x20] sm:$0xff] %v6287
      %6308 = vst [vmem:[%s316 + $0x28] sm:$0xff] %v6288
      %6309 = vst [vmem:[%s316 + $0x30] sm:$0xff] %v6289
      %6310 = vst [vmem:[%s316 + $0x38] sm:$0xff] %v6290
      %6311 = vst [vmem:[%s316 + $0x40] sm:$0xff] %v6291
      %6312 = vst [vmem:[%s316 + $0x48] sm:$0xff] %v6292
      %6313 = vst [vmem:[%s316 + $0x50] sm:$0xff] %v6293
      %6314 = vst [vmem:[%s316 + $0x58] sm:$0xff] %v6294
      %6315 = vst [vmem:[%s316 + $0x60] sm:$0xff] %v6295
      %6316 = vst [vmem:[%s316 + $0x68] sm:$0xff] %v6296
      %6317 = vst [vmem:[%s316 + $0x70] sm:$0xff] %v6297
      %6318 = vst [vmem:[%s316 + $0x78] sm:$0xff] %v6298
      %6319 = vst [vmem:[%s316 + $0x80] sm:$0xff] %v6299
      %6320 = vst [vmem:[%s316 + $0x88] sm:$0xff] %v6300
      %6321 = vst [vmem:[%s316 + $0x90] sm:$0xff] %v6301
      %6322 = vst [vmem:[%s316 + $0x98] sm:$0xff] %v6302
      %s6323 = smul.u32 2, %s20
      %p6324 = scmp.lt.s32.totalorder %s19, 1
      %s6325 = scalar_select %p6324, %s19, 1
      %p6326 = scmp.lt.s32.totalorder %s6323, 1
      %s6327 = scalar_select %p6326, %s6323, 1
      %s6328 = smul.addr %s6325, 20
      %s6329 = sadd.s32 %s6327, %s6328
      %s6330 = smul.addr %s6329, 8
      %s6331 = scalar_lea.vmem %s4, %s6330
      // Predicated region
      $region37: #{mel_spectrogram.1} parent=35 // pred_check
        %p6332 = pneg %p149
      $region38: #{mel_spectrogram.1} parent=35 // pred_check_branch
        %6334 = sbr.rel (%p6332) target = $region40
      $region39: #{mel_spectrogram.1} parent=35 // pred_region
        %s6335 = smul.u32 2, %s20
      $region40: #{mel_spectrogram.1} parent=35 // pred_fallthru
        _
    $region36: #{mel_spectrogram.1} parent=5 // pred_fallthru
      _
    %p6336 = scmp.le.s32.totalorder 2, %s10
    // Predicated region
    $region41: #{mel_spectrogram.1} parent=5 // pred_check
      %p6337 = pneg %p6336
    $region42: #{mel_spectrogram.1} parent=5 // pred_check_branch
      %6339 = sbr.rel (%p6337) target = $region44
    $region43: #{mel_spectrogram.1} parent=5 // pred_region
      %s6340 = ssub.s32 %s10, 2
      // Predicated region
      $region45: #{mel_spectrogram.1} parent=43 // pred_check
        %p6341 = pneg %p155
      $region46: #{mel_spectrogram.1} parent=43 // pred_check_branch
        %6343 = sbr.rel (%p6341) target = $region48
      $region47: #{mel_spectrogram.1} parent=43 // pred_region
        %s6344 = smul.u32 2, %s22
        %p6345 = scmp.lt.s32.totalorder %s21, 1
        %s6346 = scalar_select %p6345, %s21, 1
        %p6347 = scmp.lt.s32.totalorder %s6344, 1
        %s6348 = scalar_select %p6347, %s6344, 1
        %s6349 = smul.addr %s6346, 20
        %s6350 = sadd.s32 %s6348, %s6349
        %s6351 = smul.addr %s6350, 8
        %s6352 = scalar_lea.vmem %s4, %s6351
      $region48: #{mel_spectrogram.1} parent=43 // pred_fallthru
        _
    $region44: #{mel_spectrogram.1} parent=5 // pred_fallthru
      _
  $region6: #{mel_spectrogram.1} parent=0 // loop_footer
    %s14 = sadd.s32 1, %s10
  $region7: #{mel_spectrogram.1} parent=0 // loop_footer_branch
    %9 = sbr.rel target = $region3
  $region8: #{mel_spectrogram.1} parent=0 // loop_exit
    _

</llo_original>
